<compile_context>
chip_gen: v7x
topology: tpu7x:2x2x1
jax: 0.10.0
libtpu: 0.0.40
codegen_flags: <defaults>
</compile_context>

<pallas_src>
import functools

import jax
import jax.numpy as jnp
from jax import lax
from jax.experimental import pallas as pl
from jax.experimental.pallas import tpu as pltpu


# --------------------------------------------------------------------------
# Pallas kernels
# --------------------------------------------------------------------------

def _proj_kernel(n_parts, *refs):
    """gates_x = sum_k x_k @ W_k + b  (both directions' gates at once).

    refs = (x_0..x_{n-1}, w_0..w_{n-1}, b, out)
      x_k : (N, D_k)      w_k : (D_k, 8H)      b : (1, 8H)      out : (N, 8H)
    """
    x_refs = refs[:n_parts]
    w_refs = refs[n_parts:2 * n_parts]
    b_ref = refs[2 * n_parts]
    o_ref = refs[2 * n_parts + 1]

    acc = jnp.dot(x_refs[0][...], w_refs[0][...],
                  preferred_element_type=jnp.float32) + b_ref[...]
    for k in range(1, n_parts):
        acc = acc + jnp.dot(x_refs[k][...], w_refs[k][...],
                            preferred_element_type=jnp.float32)
    o_ref[...] = acc.astype(o_ref.dtype)


def _bilstm_recurrence_kernel(gx_ref, whh_f_ref, whh_b_ref, out_ref):
    """Fused fwd+bwd LSTM recurrence for one layer, whole sequence per call.

    gx_ref   : (T, B, 8H)  precomputed x@W_ih + (b_ih+b_hh);
               lanes [0:4H] = forward gates, [4H:8H] = backward gates
    whh_f_ref: (H, 4H)     forward  hidden->gates weights (pre-transposed)
    whh_b_ref: (H, 4H)     backward hidden->gates weights (pre-transposed)
    out_ref  : (2, T, B, H)  out[0,t] = fwd hidden at t, out[1,t] = bwd hidden at t
    """
    T, B, _ = gx_ref.shape
    H = whh_f_ref.shape[0]
    G = 4 * H

    whh_f = whh_f_ref[...]
    whh_b = whh_b_ref[...]

    def cell(gates, c):
        # PyTorch gate order: i, f, g, o
        i_g = jax.nn.sigmoid(gates[:, 0 * H:1 * H])
        f_g = jax.nn.sigmoid(gates[:, 1 * H:2 * H])
        g_g = jnp.tanh(gates[:, 2 * H:3 * H])
        o_g = jax.nn.sigmoid(gates[:, 3 * H:4 * H])
        c_new = f_g * c + i_g * g_g
        h_new = o_g * jnp.tanh(c_new)
        return h_new, c_new

    def body(t, carry):
        h_f, c_f, h_b, c_b = carry
        rt = T - 1 - t
        gx_t = gx_ref[t]        # (B, 8H)  forward direction's timestep
        gx_rt = gx_ref[rt]      # (B, 8H)  backward direction's timestep
        gates_f = gx_t[:, 0:G] + jnp.dot(h_f, whh_f,
                                         preferred_element_type=jnp.float32)
        gates_b = gx_rt[:, G:2 * G] + jnp.dot(h_b, whh_b,
                                              preferred_element_type=jnp.float32)
        h_f, c_f = cell(gates_f, c_f)
        h_b, c_b = cell(gates_b, c_b)
        out_ref[0, t] = h_f.astype(out_ref.dtype)
        out_ref[1, rt] = h_b.astype(out_ref.dtype)
        return h_f, c_f, h_b, c_b

    zeros = jnp.zeros((B, H), jnp.float32)
    carry = (zeros, zeros, zeros, zeros)
    if T <= 32:
        # Short fixed trip-count: fully unroll (gives scheduler full visibility,
        # all loads/stores become static).
        for t in range(T):
            carry = body(t, carry)
    else:
        lax.fori_loop(0, T, body, carry)


# --------------------------------------------------------------------------
# pallas_call wrappers
# --------------------------------------------------------------------------

def input_projection(xs, ws, b):
    """sum_k xs[k] @ ws[k] + b  ->  (N, 8H), lane-dense output."""
    n = len(xs)
    N = xs[0].shape[0]
    G8 = ws[0].shape[1]
    kernel = functools.partial(_proj_kernel, n)
    in_specs = ([pl.BlockSpec(x.shape, lambda i: (0, 0)) for x in xs]
                + [pl.BlockSpec(w.shape, lambda i: (0, 0)) for w in ws]
                + [pl.BlockSpec(b.shape, lambda i: (0, 0))])
    return pl.pallas_call(
        kernel,
        out_shape=jax.ShapeDtypeStruct((N, G8), jnp.float32),
        grid=(1,),
        in_specs=in_specs,
        out_specs=pl.BlockSpec((N, G8), lambda i: (0, 0)),
    )(*xs, *ws, b)


def bilstm_layer(gx, whh_f, whh_b):
    """gx: (T, B, 8H) precomputed gates -> (2, T, B, H) fwd/bwd hidden states."""
    T, B, G8 = gx.shape
    H = whh_f.shape[0]
    return pl.pallas_call(
        _bilstm_recurrence_kernel,
        out_shape=jax.ShapeDtypeStruct((2, T, B, H), jnp.float32),
        grid=(1,),
        in_specs=[
            pl.BlockSpec((T, B, G8), lambda i: (0, 0, 0)),
            pl.BlockSpec((H, 4 * H), lambda i: (0, 0)),
            pl.BlockSpec((H, 4 * H), lambda i: (0, 0)),
        ],
        out_specs=pl.BlockSpec((2, T, B, H), lambda i: (0, 0, 0, 0)),
        compiler_params=pltpu.CompilerParams(
            dimension_semantics=("arbitrary",),  # recurrence: sequential
        ),
    )(gx, whh_f, whh_b)


def rnn_classifier_forward(x, params):
    """x: (B, T, D) batch-first (like nn.LSTM(batch_first=True)). Returns (B, 2)."""
    # LockedDropout -> identity (inference).
    B, T, D = x.shape
    x_tm = jnp.transpose(x, (1, 0, 2))           # time-major (T, B, D)
    h_parts = [x_tm.reshape(T * B, D)]           # per-direction feature parts

    last_hs_parts = None
    for layer in params["lstm"]:
        gx = input_projection(h_parts, layer["w_ih_parts"], layer["b"])  # (T*B, 8H)
        gx = gx.reshape(T, B, -1)
        hs = bilstm_layer(gx, layer["whh_f"], layer["whh_b"])            # (2, T, B, H)
        h_parts = [hs[0].reshape(T * B, -1), hs[1].reshape(T * B, -1)]
        last_hs_parts = (hs[0, -1], hs[1, -1])   # == hs_batch_first[:, -1] halves

    # Classification head (tiny): plain JAX, split over the two direction halves
    # so the (T,B,2H) concat is never materialized.
    logits = (last_hs_parts[0] @ params["out_w_f"]
              + last_hs_parts[1] @ params["out_w_b"]
              + params["out_b"])
    return logits


# --------------------------------------------------------------------------
# Deterministic parameter init (PyTorch nn.LSTM / nn.Linear layout) + packing
# --------------------------------------------------------------------------

def init_torch_like_params(key, hidden):
    k = float(1.0 / (hidden ** 0.5))

    def uni(key, shape, bound):
        return jax.random.uniform(key, shape, jnp.float32, -bound, bound)

    keys = iter(jax.random.split(key, 64))
    layers = []
    for layer_idx in range(2):                    # num_layers=2
        d_in = hidden if layer_idx == 0 else 2 * hidden
        dirs = {}
        for dname in ("fwd", "bwd"):
            dirs[dname] = dict(
                w_ih=uni(next(keys), (4 * hidden, d_in), k),   # weight_ih_l{l}[_reverse]
                w_hh=uni(next(keys), (4 * hidden, hidden), k), # weight_hh_l{l}[_reverse]
                b_ih=uni(next(keys), (4 * hidden,), k),
                b_hh=uni(next(keys), (4 * hidden,), k),
            )
        layers.append(dirs)

    ko = float(1.0 / ((2.0 * hidden) ** 0.5))
    out_w = uni(next(keys), (2, 2 * hidden), ko)
    out_b = uni(next(keys), (2,), ko)
    return dict(lstm=layers, out_w=out_w, out_b=out_b)


def pack_params(raw, hidden):
    """Repack PyTorch-layout weights into the kernel-friendly layout."""
    H = hidden
    layers = []
    for li, layer in enumerate(raw["lstm"]):
        f, bw = layer["fwd"], layer["bwd"]
        # (d_in, 8H): fwd gates in cols [0:4H], bwd gates in cols [4H:8H]
        w_cat = jnp.concatenate([f["w_ih"].T, bw["w_ih"].T], axis=1)
        if li == 0:
            w_parts = [w_cat]
        else:
            # layer input is [fwd_hidden | bwd_hidden]: split rows into halves
            w_parts = [w_cat[:H], w_cat[H:]]
        bias = jnp.concatenate(
            [f["b_ih"] + f["b_hh"], bw["b_ih"] + bw["b_hh"]]).reshape(1, 8 * H)
        layers.append(dict(
            w_ih_parts=w_parts,
            whh_f=f["w_hh"].T,       # (H, 4H)
            whh_b=bw["w_hh"].T,      # (H, 4H)
            b=bias,                  # (1, 8H)
        ))
    out_w_t = raw["out_w"].T         # (2H, 2)
    return dict(lstm=layers,
                out_w_f=out_w_t[:H], out_w_b=out_w_t[H:],
                out_b=raw["out_b"])


# --------------------------------------------------------------------------
# Pure-JAX reference (independent math, PyTorch layout) for a sanity check
# --------------------------------------------------------------------------

def _ref_lstm_dir(x_tm, w_ih, w_hh, b_ih, b_hh, reverse):
    _, B, _ = x_tm.shape
    H = w_hh.shape[1]

    def step(carry, x_t):
        h, c = carry
        gates = x_t @ w_ih.T + h @ w_hh.T + b_ih + b_hh
        i = jax.nn.sigmoid(gates[:, 0 * H:1 * H])
        f = jax.nn.sigmoid(gates[:, 1 * H:2 * H])
        g = jnp.tanh(gates[:, 2 * H:3 * H])
        o = jax.nn.sigmoid(gates[:, 3 * H:4 * H])
        c = f * c + i * g
        h = o * jnp.tanh(c)
        return (h, c), h

    init = (jnp.zeros((B, H), jnp.float32), jnp.zeros((B, H), jnp.float32))
    _, hs = lax.scan(step, init, x_tm, reverse=reverse)
    return hs


def _ref_forward(x, raw):
    h = jnp.transpose(x, (1, 0, 2))
    for layer in raw["lstm"]:
        f, bw = layer["fwd"], layer["bwd"]
        hf = _ref_lstm_dir(h, f["w_ih"], f["w_hh"], f["b_ih"], f["b_hh"], reverse=False)
        hb = _ref_lstm_dir(h, bw["w_ih"], bw["w_hh"], bw["b_ih"], bw["b_hh"], reverse=True)
        h = jnp.concatenate([hf, hb], axis=-1)
    return h[-1] @ raw["out_w"].T + raw["out_b"]


# --------------------------------------------------------------------------

if __name__ == "__main__":
    B, T, H = 2, 8, 32  # batch=2, seq=8, hidden_state_size=32

    key = jax.random.PRNGKey(0)
    kx, kp = jax.random.split(key)
    x = jax.random.normal(kx, (B, T, H), jnp.float32)

    raw = init_torch_like_params(kp, H)
    params = pack_params(raw, H)

    forward = jax.jit(rnn_classifier_forward)
    out = jax.block_until_ready(forward(x, params))
    ref = jax.block_until_ready(_ref_forward(x, raw))

    assert out.shape == (B, 2), out.shape
    assert jnp.allclose(out, ref, atol=1e-4, rtol=1e-4), (out, ref)
    print("KERNEL_OK")
</pallas_src>

<mosaic_0001>
module attributes {stable_mosaic.version = 11 : i64} {
  func.func @_bilstm_recurrence_kernel(%arg0: i32, %arg1: memref<8x2x256xf32, #tpu.memory_space<vmem>>, %arg2: memref<32x128xf32, #tpu.memory_space<vmem>>, %arg3: memref<32x128xf32, #tpu.memory_space<vmem>>, %arg4: memref<2x8x2x32xf32, #tpu.memory_space<vmem>>) attributes {dimension_semantics = [#tpu.dimension_semantics<arbitrary>], iteration_bounds = array<i64: 1>, scalar_prefetch = 0 : i64, scratch_operands = 0 : i64, tpu.core_type = #tpu.core_type<tc>, window_params = [{pipeline_mode = #tpu.pipeline_mode<synchronous>, transform_indices = @transform_0, window_bounds = array<i64: 8, 2, 256>}, {pipeline_mode = #tpu.pipeline_mode<synchronous>, transform_indices = @transform_1, window_bounds = array<i64: 32, 128>}, {pipeline_mode = #tpu.pipeline_mode<synchronous>, transform_indices = @transform_2, window_bounds = array<i64: 32, 128>}, {pipeline_mode = #tpu.pipeline_mode<synchronous>, transform_indices = @transform_3, window_bounds = array<i64: 2, 8, 2, 32>}]} {
    %c0 = arith.constant 0 : index
    %c0_0 = arith.constant 0 : index
    %0 = vector.load %arg2[%c0, %c0_0] : memref<32x128xf32, #tpu.memory_space<vmem>>, vector<32x128xf32>
    %c0_1 = arith.constant 0 : index
    %c0_2 = arith.constant 0 : index
    %1 = vector.load %arg3[%c0_1, %c0_2] : memref<32x128xf32, #tpu.memory_space<vmem>>, vector<32x128xf32>
    %cst = arith.constant 0.000000e+00 : f32
    %2 = vector.broadcast %cst : f32 to vector<2x32xf32>
    %c0_3 = arith.constant 0 : index
    %c0_4 = arith.constant 0 : index
    %c0_5 = arith.constant 0 : index
    %3 = vector.load %arg1[%c0_3, %c0_4, %c0_5] : memref<8x2x256xf32, #tpu.memory_space<vmem>>, vector<1x2x256xf32>
    %4 = vector.shape_cast %3 : vector<1x2x256xf32> to vector<2x256xf32>
    %c7 = arith.constant 7 : index
    %c0_6 = arith.constant 0 : index
    %c0_7 = arith.constant 0 : index
    %5 = vector.load %arg1[%c7, %c0_6, %c0_7] : memref<8x2x256xf32, #tpu.memory_space<vmem>>, vector<1x2x256xf32>
    %6 = vector.shape_cast %5 : vector<1x2x256xf32> to vector<2x256xf32>
    %7 = vector.extract_strided_slice %4 {offsets = [0, 0], sizes = [2, 128], strides = [1, 1]} : vector<2x256xf32> to vector<2x128xf32>
    %cst_8 = arith.constant dense<0.000000e+00> : vector<2x128xf32>
    %8 = tpu.matmul %2, %0, %cst_8 {dimension_numbers = #tpu.dot_dimension_numbers<[1], [0], [0], [1], [0, 0, 1, 1], [], []>} : vector<2x32xf32>, vector<32x128xf32>, vector<2x128xf32> -> vector<2x128xf32>
    %9 = arith.addf %7, %8 : vector<2x128xf32>
    %10 = vector.extract_strided_slice %6 {offsets = [0, 128], sizes = [2, 128], strides = [1, 1]} : vector<2x256xf32> to vector<2x128xf32>
    %cst_9 = arith.constant dense<0.000000e+00> : vector<2x128xf32>
    %11 = tpu.matmul %2, %1, %cst_9 {dimension_numbers = #tpu.dot_dimension_numbers<[1], [0], [0], [1], [0, 0, 1, 1], [], []>} : vector<2x32xf32>, vector<32x128xf32>, vector<2x128xf32> -> vector<2x128xf32>
    %12 = arith.addf %10, %11 : vector<2x128xf32>
    %13 = vector.extract_strided_slice %9 {offsets = [0, 0], sizes = [2, 32], strides = [1, 1]} : vector<2x128xf32> to vector<2x32xf32>
    %14 = arith.negf %13 : vector<2x32xf32>
    %15 = math.exp %14 : vector<2x32xf32>
    %cst_10 = arith.constant 1.000000e+00 : f32
    %16 = vector.broadcast %cst_10 : f32 to vector<2x32xf32>
    %17 = arith.addf %16, %15 : vector<2x32xf32>
    %18 = arith.divf %16, %17 : vector<2x32xf32>
    %19 = vector.extract_strided_slice %9 {offsets = [0, 32], sizes = [2, 32], strides = [1, 1]} : vector<2x128xf32> to vector<2x32xf32>
    %20 = arith.negf %19 : vector<2x32xf32>
    %21 = math.exp %20 : vector<2x32xf32>
    %cst_11 = arith.constant 1.000000e+00 : f32
    %22 = vector.broadcast %cst_11 : f32 to vector<2x32xf32>
    %23 = arith.addf %22, %21 : vector<2x32xf32>
    %24 = arith.divf %22, %23 : vector<2x32xf32>
    %25 = vector.extract_strided_slice %9 {offsets = [0, 64], sizes = [2, 32], strides = [1, 1]} : vector<2x128xf32> to vector<2x32xf32>
    %26 = math.tanh %25 : vector<2x32xf32>
    %27 = vector.extract_strided_slice %9 {offsets = [0, 96], sizes = [2, 32], strides = [1, 1]} : vector<2x128xf32> to vector<2x32xf32>
    %28 = arith.negf %27 : vector<2x32xf32>
    %29 = math.exp %28 : vector<2x32xf32>
    %cst_12 = arith.constant 1.000000e+00 : f32
    %30 = vector.broadcast %cst_12 : f32 to vector<2x32xf32>
    %31 = arith.addf %30, %29 : vector<2x32xf32>
    %32 = arith.divf %30, %31 : vector<2x32xf32>
    %33 = arith.mulf %24, %2 : vector<2x32xf32>
    %34 = arith.mulf %18, %26 : vector<2x32xf32>
    %35 = arith.addf %33, %34 : vector<2x32xf32>
    %36 = math.tanh %35 : vector<2x32xf32>
    %37 = arith.mulf %32, %36 : vector<2x32xf32>
    %38 = vector.extract_strided_slice %12 {offsets = [0, 0], sizes = [2, 32], strides = [1, 1]} : vector<2x128xf32> to vector<2x32xf32>
    %39 = arith.negf %38 : vector<2x32xf32>
    %40 = math.exp %39 : vector<2x32xf32>
    %cst_13 = arith.constant 1.000000e+00 : f32
    %41 = vector.broadcast %cst_13 : f32 to vector<2x32xf32>
    %42 = arith.addf %41, %40 : vector<2x32xf32>
    %43 = arith.divf %41, %42 : vector<2x32xf32>
    %44 = vector.extract_strided_slice %12 {offsets = [0, 32], sizes = [2, 32], strides = [1, 1]} : vector<2x128xf32> to vector<2x32xf32>
    %45 = arith.negf %44 : vector<2x32xf32>
    %46 = math.exp %45 : vector<2x32xf32>
    %cst_14 = arith.constant 1.000000e+00 : f32
    %47 = vector.broadcast %cst_14 : f32 to vector<2x32xf32>
    %48 = arith.addf %47, %46 : vector<2x32xf32>
    %49 = arith.divf %47, %48 : vector<2x32xf32>
    %50 = vector.extract_strided_slice %12 {offsets = [0, 64], sizes = [2, 32], strides = [1, 1]} : vector<2x128xf32> to vector<2x32xf32>
    %51 = math.tanh %50 : vector<2x32xf32>
    %52 = vector.extract_strided_slice %12 {offsets = [0, 96], sizes = [2, 32], strides = [1, 1]} : vector<2x128xf32> to vector<2x32xf32>
    %53 = arith.negf %52 : vector<2x32xf32>
    %54 = math.exp %53 : vector<2x32xf32>
    %cst_15 = arith.constant 1.000000e+00 : f32
    %55 = vector.broadcast %cst_15 : f32 to vector<2x32xf32>
    %56 = arith.addf %55, %54 : vector<2x32xf32>
    %57 = arith.divf %55, %56 : vector<2x32xf32>
    %58 = arith.mulf %49, %2 : vector<2x32xf32>
    %59 = arith.mulf %43, %51 : vector<2x32xf32>
    %60 = arith.addf %58, %59 : vector<2x32xf32>
    %61 = math.tanh %60 : vector<2x32xf32>
    %62 = arith.mulf %57, %61 : vector<2x32xf32>
    %c0_16 = arith.constant 0 : index
    %c0_17 = arith.constant 0 : index
    %c0_18 = arith.constant 0 : index
    %c0_19 = arith.constant 0 : index
    %63 = vector.load %arg4[%c0_16, %c0_17, %c0_18, %c0_19] : memref<2x8x2x32xf32, #tpu.memory_space<vmem>>, vector<1x1x2x32xf32>
    %64 = vector.shape_cast %63 : vector<1x1x2x32xf32> to vector<2x32xf32>
    %65 = vector.shape_cast %37 : vector<2x32xf32> to vector<1x1x2x32xf32>
    tpu.vector_store %arg4[%c0_16, %c0_17, %c0_18, %c0_19], %65 {strides = array<i32>} : memref<2x8x2x32xf32, #tpu.memory_space<vmem>>, vector<1x1x2x32xf32>,
    %c1 = arith.constant 1 : index
    %c7_20 = arith.constant 7 : index
    %c0_21 = arith.constant 0 : index
    %c0_22 = arith.constant 0 : index
    %66 = vector.load %arg4[%c1, %c7_20, %c0_21, %c0_22] : memref<2x8x2x32xf32, #tpu.memory_space<vmem>>, vector<1x1x2x32xf32>
    %67 = vector.shape_cast %66 : vector<1x1x2x32xf32> to vector<2x32xf32>
    %68 = vector.shape_cast %62 : vector<2x32xf32> to vector<1x1x2x32xf32>
    tpu.vector_store %arg4[%c1, %c7_20, %c0_21, %c0_22], %68 {strides = array<i32>} : memref<2x8x2x32xf32, #tpu.memory_space<vmem>>, vector<1x1x2x32xf32>,
    %c1_23 = arith.constant 1 : index
    %c0_24 = arith.constant 0 : index
    %c0_25 = arith.constant 0 : index
    %69 = vector.load %arg1[%c1_23, %c0_24, %c0_25] : memref<8x2x256xf32, #tpu.memory_space<vmem>>, vector<1x2x256xf32>
    %70 = vector.shape_cast %69 : vector<1x2x256xf32> to vector<2x256xf32>
    %c6 = arith.constant 6 : index
    %c0_26 = arith.constant 0 : index
    %c0_27 = arith.constant 0 : index
    %71 = vector.load %arg1[%c6, %c0_26, %c0_27] : memref<8x2x256xf32, #tpu.memory_space<vmem>>, vector<1x2x256xf32>
    %72 = vector.shape_cast %71 : vector<1x2x256xf32> to vector<2x256xf32>
    %73 = vector.extract_strided_slice %70 {offsets = [0, 0], sizes = [2, 128], strides = [1, 1]} : vector<2x256xf32> to vector<2x128xf32>
    %cst_28 = arith.constant dense<0.000000e+00> : vector<2x128xf32>
    %74 = tpu.matmul %37, %0, %cst_28 {dimension_numbers = #tpu.dot_dimension_numbers<[1], [0], [0], [1], [0, 0, 1, 1], [], []>} : vector<2x32xf32>, vector<32x128xf32>, vector<2x128xf32> -> vector<2x128xf32>
    %75 = arith.addf %73, %74 : vector<2x128xf32>
    %76 = vector.extract_strided_slice %72 {offsets = [0, 128], sizes = [2, 128], strides = [1, 1]} : vector<2x256xf32> to vector<2x128xf32>
    %cst_29 = arith.constant dense<0.000000e+00> : vector<2x128xf32>
    %77 = tpu.matmul %62, %1, %cst_29 {dimension_numbers = #tpu.dot_dimension_numbers<[1], [0], [0], [1], [0, 0, 1, 1], [], []>} : vector<2x32xf32>, vector<32x128xf32>, vector<2x128xf32> -> vector<2x128xf32>
    %78 = arith.addf %76, %77 : vector<2x128xf32>
    %79 = vector.extract_strided_slice %75 {offsets = [0, 0], sizes = [2, 32], strides = [1, 1]} : vector<2x128xf32> to vector<2x32xf32>
    %80 = arith.negf %79 : vector<2x32xf32>
    %81 = math.exp %80 : vector<2x32xf32>
    %cst_30 = arith.constant 1.000000e+00 : f32
    %82 = vector.broadcast %cst_30 : f32 to vector<2x32xf32>
    %83 = arith.addf %82, %81 : vector<2x32xf32>
    %84 = arith.divf %82, %83 : vector<2x32xf32>
    %85 = vector.extract_strided_slice %75 {offsets = [0, 32], sizes = [2, 32], strides = [1, 1]} : vector<2x128xf32> to vector<2x32xf32>
    %86 = arith.negf %85 : vector<2x32xf32>
    %87 = math.exp %86 : vector<2x32xf32>
    %cst_31 = arith.constant 1.000000e+00 : f32
    %88 = vector.broadcast %cst_31 : f32 to vector<2x32xf32>
    %89 = arith.addf %88, %87 : vector<2x32xf32>
    %90 = arith.divf %88, %89 : vector<2x32xf32>
    %91 = vector.extract_strided_slice %75 {offsets = [0, 64], sizes = [2, 32], strides = [1, 1]} : vector<2x128xf32> to vector<2x32xf32>
    %92 = math.tanh %91 : vector<2x32xf32>
    %93 = vector.extract_strided_slice %75 {offsets = [0, 96], sizes = [2, 32], strides = [1, 1]} : vector<2x128xf32> to vector<2x32xf32>
    %94 = arith.negf %93 : vector<2x32xf32>
    %95 = math.exp %94 : vector<2x32xf32>
    %cst_32 = arith.constant 1.000000e+00 : f32
    %96 = vector.broadcast %cst_32 : f32 to vector<2x32xf32>
    %97 = arith.addf %96, %95 : vector<2x32xf32>
    %98 = arith.divf %96, %97 : vector<2x32xf32>
    %99 = arith.mulf %90, %35 : vector<2x32xf32>
    %100 = arith.mulf %84, %92 : vector<2x32xf32>
    %101 = arith.addf %99, %100 : vector<2x32xf32>
    %102 = math.tanh %101 : vector<2x32xf32>
    %103 = arith.mulf %98, %102 : vector<2x32xf32>
    %104 = vector.extract_strided_slice %78 {offsets = [0, 0], sizes = [2, 32], strides = [1, 1]} : vector<2x128xf32> to vector<2x32xf32>
    %105 = arith.negf %104 : vector<2x32xf32>
    %106 = math.exp %105 : vector<2x32xf32>
    %cst_33 = arith.constant 1.000000e+00 : f32
    %107 = vector.broadcast %cst_33 : f32 to vector<2x32xf32>
    %108 = arith.addf %107, %106 : vector<2x32xf32>
    %109 = arith.divf %107, %108 : vector<2x32xf32>
    %110 = vector.extract_strided_slice %78 {offsets = [0, 32], sizes = [2, 32], strides = [1, 1]} : vector<2x128xf32> to vector<2x32xf32>
    %111 = arith.negf %110 : vector<2x32xf32>
    %112 = math.exp %111 : vector<2x32xf32>
    %cst_34 = arith.constant 1.000000e+00 : f32
    %113 = vector.broadcast %cst_34 : f32 to vector<2x32xf32>
    %114 = arith.addf %113, %112 : vector<2x32xf32>
    %115 = arith.divf %113, %114 : vector<2x32xf32>
    %116 = vector.extract_strided_slice %78 {offsets = [0, 64], sizes = [2, 32], strides = [1, 1]} : vector<2x128xf32> to vector<2x32xf32>
    %117 = math.tanh %116 : vector<2x32xf32>
    %118 = vector.extract_strided_slice %78 {offsets = [0, 96], sizes = [2, 32], strides = [1, 1]} : vector<2x128xf32> to vector<2x32xf32>
    %119 = arith.negf %118 : vector<2x32xf32>
    %120 = math.exp %119 : vector<2x32xf32>
    %cst_35 = arith.constant 1.000000e+00 : f32
    %121 = vector.broadcast %cst_35 : f32 to vector<2x32xf32>
    %122 = arith.addf %121, %120 : vector<2x32xf32>
    %123 = arith.divf %121, %122 : vector<2x32xf32>
    %124 = arith.mulf %115, %60 : vector<2x32xf32>
    %125 = arith.mulf %109, %117 : vector<2x32xf32>
    %126 = arith.addf %124, %125 : vector<2x32xf32>
    %127 = math.tanh %126 : vector<2x32xf32>
    %128 = arith.mulf %123, %127 : vector<2x32xf32>
    %c0_36 = arith.constant 0 : index
    %c1_37 = arith.constant 1 : index
    %c0_38 = arith.constant 0 : index
    %c0_39 = arith.constant 0 : index
    %129 = vector.load %arg4[%c0_36, %c1_37, %c0_38, %c0_39] : memref<2x8x2x32xf32, #tpu.memory_space<vmem>>, vector<1x1x2x32xf32>
    %130 = vector.shape_cast %129 : vector<1x1x2x32xf32> to vector<2x32xf32>
    %131 = vector.shape_cast %103 : vector<2x32xf32> to vector<1x1x2x32xf32>
    tpu.vector_store %arg4[%c0_36, %c1_37, %c0_38, %c0_39], %131 {strides = array<i32>} : memref<2x8x2x32xf32, #tpu.memory_space<vmem>>, vector<1x1x2x32xf32>,
    %c1_40 = arith.constant 1 : index
    %c6_41 = arith.constant 6 : index
    %c0_42 = arith.constant 0 : index
    %c0_43 = arith.constant 0 : index
    %132 = vector.load %arg4[%c1_40, %c6_41, %c0_42, %c0_43] : memref<2x8x2x32xf32, #tpu.memory_space<vmem>>, vector<1x1x2x32xf32>
    %133 = vector.shape_cast %132 : vector<1x1x2x32xf32> to vector<2x32xf32>
    %134 = vector.shape_cast %128 : vector<2x32xf32> to vector<1x1x2x32xf32>
    tpu.vector_store %arg4[%c1_40, %c6_41, %c0_42, %c0_43], %134 {strides = array<i32>} : memref<2x8x2x32xf32, #tpu.memory_space<vmem>>, vector<1x1x2x32xf32>,
    %c2 = arith.constant 2 : index
    %c0_44 = arith.constant 0 : index
    %c0_45 = arith.constant 0 : index
    %135 = vector.load %arg1[%c2, %c0_44, %c0_45] : memref<8x2x256xf32, #tpu.memory_space<vmem>>, vector<1x2x256xf32>
    %136 = vector.shape_cast %135 : vector<1x2x256xf32> to vector<2x256xf32>
    %c5 = arith.constant 5 : index
    %c0_46 = arith.constant 0 : index
    %c0_47 = arith.constant 0 : index
    %137 = vector.load %arg1[%c5, %c0_46, %c0_47] : memref<8x2x256xf32, #tpu.memory_space<vmem>>, vector<1x2x256xf32>
    %138 = vector.shape_cast %137 : vector<1x2x256xf32> to vector<2x256xf32>
    %139 = vector.extract_strided_slice %136 {offsets = [0, 0], sizes = [2, 128], strides = [1, 1]} : vector<2x256xf32> to vector<2x128xf32>
    %cst_48 = arith.constant dense<0.000000e+00> : vector<2x128xf32>
    %140 = tpu.matmul %103, %0, %cst_48 {dimension_numbers = #tpu.dot_dimension_numbers<[1], [0], [0], [1], [0, 0, 1, 1], [], []>} : vector<2x32xf32>, vector<32x128xf32>, vector<2x128xf32> -> vector<2x128xf32>
    %141 = arith.addf %139, %140 : vector<2x128xf32>
    %142 = vector.extract_strided_slice %138 {offsets = [0, 128], sizes = [2, 128], strides = [1, 1]} : vector<2x256xf32> to vector<2x128xf32>
    %cst_49 = arith.constant dense<0.000000e+00> : vector<2x128xf32>
    %143 = tpu.matmul %128, %1, %cst_49 {dimension_numbers = #tpu.dot_dimension_numbers<[1], [0], [0], [1], [0, 0, 1, 1], [], []>} : vector<2x32xf32>, vector<32x128xf32>, vector<2x128xf32> -> vector<2x128xf32>
    %144 = arith.addf %142, %143 : vector<2x128xf32>
    %145 = vector.extract_strided_slice %141 {offsets = [0, 0], sizes = [2, 32], strides = [1, 1]} : vector<2x128xf32> to vector<2x32xf32>
    %146 = arith.negf %145 : vector<2x32xf32>
    %147 = math.exp %146 : vector<2x32xf32>
    %cst_50 = arith.constant 1.000000e+00 : f32
    %148 = vector.broadcast %cst_50 : f32 to vector<2x32xf32>
    %149 = arith.addf %148, %147 : vector<2x32xf32>
    %150 = arith.divf %148, %149 : vector<2x32xf32>
    %151 = vector.extract_strided_slice %141 {offsets = [0, 32], sizes = [2, 32], strides = [1, 1]} : vector<2x128xf32> to vector<2x32xf32>
    %152 = arith.negf %151 : vector<2x32xf32>
    %153 = math.exp %152 : vector<2x32xf32>
    %cst_51 = arith.constant 1.000000e+00 : f32
    %154 = vector.broadcast %cst_51 : f32 to vector<2x32xf32>
    %155 = arith.addf %154, %153 : vector<2x32xf32>
    %156 = arith.divf %154, %155 : vector<2x32xf32>
    %157 = vector.extract_strided_slice %141 {offsets = [0, 64], sizes = [2, 32], strides = [1, 1]} : vector<2x128xf32> to vector<2x32xf32>
    %158 = math.tanh %157 : vector<2x32xf32>
    %159 = vector.extract_strided_slice %141 {offsets = [0, 96], sizes = [2, 32], strides = [1, 1]} : vector<2x128xf32> to vector<2x32xf32>
    %160 = arith.negf %159 : vector<2x32xf32>
    %161 = math.exp %160 : vector<2x32xf32>
    %cst_52 = arith.constant 1.000000e+00 : f32
    %162 = vector.broadcast %cst_52 : f32 to vector<2x32xf32>
    %163 = arith.addf %162, %161 : vector<2x32xf32>
    %164 = arith.divf %162, %163 : vector<2x32xf32>
    %165 = arith.mulf %156, %101 : vector<2x32xf32>
    %166 = arith.mulf %150, %158 : vector<2x32xf32>
    %167 = arith.addf %165, %166 : vector<2x32xf32>
    %168 = math.tanh %167 : vector<2x32xf32>
    %169 = arith.mulf %164, %168 : vector<2x32xf32>
    %170 = vector.extract_strided_slice %144 {offsets = [0, 0], sizes = [2, 32], strides = [1, 1]} : vector<2x128xf32> to vector<2x32xf32>
    %171 = arith.negf %170 : vector<2x32xf32>
    %172 = math.exp %171 : vector<2x32xf32>
    %cst_53 = arith.constant 1.000000e+00 : f32
    %173 = vector.broadcast %cst_53 : f32 to vector<2x32xf32>
    %174 = arith.addf %173, %172 : vector<2x32xf32>
    %175 = arith.divf %173, %174 : vector<2x32xf32>
    %176 = vector.extract_strided_slice %144 {offsets = [0, 32], sizes = [2, 32], strides = [1, 1]} : vector<2x128xf32> to vector<2x32xf32>
    %177 = arith.negf %176 : vector<2x32xf32>
    %178 = math.exp %177 : vector<2x32xf32>
    %cst_54 = arith.constant 1.000000e+00 : f32
    %179 = vector.broadcast %cst_54 : f32 to vector<2x32xf32>
    %180 = arith.addf %179, %178 : vector<2x32xf32>
    %181 = arith.divf %179, %180 : vector<2x32xf32>
    %182 = vector.extract_strided_slice %144 {offsets = [0, 64], sizes = [2, 32], strides = [1, 1]} : vector<2x128xf32> to vector<2x32xf32>
    %183 = math.tanh %182 : vector<2x32xf32>
    %184 = vector.extract_strided_slice %144 {offsets = [0, 96], sizes = [2, 32], strides = [1, 1]} : vector<2x128xf32> to vector<2x32xf32>
    %185 = arith.negf %184 : vector<2x32xf32>
    %186 = math.exp %185 : vector<2x32xf32>
    %cst_55 = arith.constant 1.000000e+00 : f32
    %187 = vector.broadcast %cst_55 : f32 to vector<2x32xf32>
    %188 = arith.addf %187, %186 : vector<2x32xf32>
    %189 = arith.divf %187, %188 : vector<2x32xf32>
    %190 = arith.mulf %181, %126 : vector<2x32xf32>
    %191 = arith.mulf %175, %183 : vector<2x32xf32>
    %192 = arith.addf %190, %191 : vector<2x32xf32>
    %193 = math.tanh %192 : vector<2x32xf32>
    %194 = arith.mulf %189, %193 : vector<2x32xf32>
    %c0_56 = arith.constant 0 : index
    %c2_57 = arith.constant 2 : index
    %c0_58 = arith.constant 0 : index
    %c0_59 = arith.constant 0 : index
    %195 = vector.load %arg4[%c0_56, %c2_57, %c0_58, %c0_59] : memref<2x8x2x32xf32, #tpu.memory_space<vmem>>, vector<1x1x2x32xf32>
    %196 = vector.shape_cast %195 : vector<1x1x2x32xf32> to vector<2x32xf32>
    %197 = vector.shape_cast %169 : vector<2x32xf32> to vector<1x1x2x32xf32>
    tpu.vector_store %arg4[%c0_56, %c2_57, %c0_58, %c0_59], %197 {strides = array<i32>} : memref<2x8x2x32xf32, #tpu.memory_space<vmem>>, vector<1x1x2x32xf32>,
    %c1_60 = arith.constant 1 : index
    %c5_61 = arith.constant 5 : index
    %c0_62 = arith.constant 0 : index
    %c0_63 = arith.constant 0 : index
    %198 = vector.load %arg4[%c1_60, %c5_61, %c0_62, %c0_63] : memref<2x8x2x32xf32, #tpu.memory_space<vmem>>, vector<1x1x2x32xf32>
    %199 = vector.shape_cast %198 : vector<1x1x2x32xf32> to vector<2x32xf32>
    %200 = vector.shape_cast %194 : vector<2x32xf32> to vector<1x1x2x32xf32>
    tpu.vector_store %arg4[%c1_60, %c5_61, %c0_62, %c0_63], %200 {strides = array<i32>} : memref<2x8x2x32xf32, #tpu.memory_space<vmem>>, vector<1x1x2x32xf32>,
    %c3 = arith.constant 3 : index
    %c0_64 = arith.constant 0 : index
    %c0_65 = arith.constant 0 : index
    %201 = vector.load %arg1[%c3, %c0_64, %c0_65] : memref<8x2x256xf32, #tpu.memory_space<vmem>>, vector<1x2x256xf32>
    %202 = vector.shape_cast %201 : vector<1x2x256xf32> to vector<2x256xf32>
    %c4 = arith.constant 4 : index
    %c0_66 = arith.constant 0 : index
    %c0_67 = arith.constant 0 : index
    %203 = vector.load %arg1[%c4, %c0_66, %c0_67] : memref<8x2x256xf32, #tpu.memory_space<vmem>>, vector<1x2x256xf32>
    %204 = vector.shape_cast %203 : vector<1x2x256xf32> to vector<2x256xf32>
    %205 = vector.extract_strided_slice %202 {offsets = [0, 0], sizes = [2, 128], strides = [1, 1]} : vector<2x256xf32> to vector<2x128xf32>
    %cst_68 = arith.constant dense<0.000000e+00> : vector<2x128xf32>
    %206 = tpu.matmul %169, %0, %cst_68 {dimension_numbers = #tpu.dot_dimension_numbers<[1], [0], [0], [1], [0, 0, 1, 1], [], []>} : vector<2x32xf32>, vector<32x128xf32>, vector<2x128xf32> -> vector<2x128xf32>
    %207 = arith.addf %205, %206 : vector<2x128xf32>
    %208 = vector.extract_strided_slice %204 {offsets = [0, 128], sizes = [2, 128], strides = [1, 1]} : vector<2x256xf32> to vector<2x128xf32>
    %cst_69 = arith.constant dense<0.000000e+00> : vector<2x128xf32>
    %209 = tpu.matmul %194, %1, %cst_69 {dimension_numbers = #tpu.dot_dimension_numbers<[1], [0], [0], [1], [0, 0, 1, 1], [], []>} : vector<2x32xf32>, vector<32x128xf32>, vector<2x128xf32> -> vector<2x128xf32>
    %210 = arith.addf %208, %209 : vector<2x128xf32>
    %211 = vector.extract_strided_slice %207 {offsets = [0, 0], sizes = [2, 32], strides = [1, 1]} : vector<2x128xf32> to vector<2x32xf32>
    %212 = arith.negf %211 : vector<2x32xf32>
    %213 = math.exp %212 : vector<2x32xf32>
    %cst_70 = arith.constant 1.000000e+00 : f32
    %214 = vector.broadcast %cst_70 : f32 to vector<2x32xf32>
    %215 = arith.addf %214, %213 : vector<2x32xf32>
    %216 = arith.divf %214, %215 : vector<2x32xf32>
    %217 = vector.extract_strided_slice %207 {offsets = [0, 32], sizes = [2, 32], strides = [1, 1]} : vector<2x128xf32> to vector<2x32xf32>
    %218 = arith.negf %217 : vector<2x32xf32>
    %219 = math.exp %218 : vector<2x32xf32>
    %cst_71 = arith.constant 1.000000e+00 : f32
    %220 = vector.broadcast %cst_71 : f32 to vector<2x32xf32>
    %221 = arith.addf %220, %219 : vector<2x32xf32>
    %222 = arith.divf %220, %221 : vector<2x32xf32>
    %223 = vector.extract_strided_slice %207 {offsets = [0, 64], sizes = [2, 32], strides = [1, 1]} : vector<2x128xf32> to vector<2x32xf32>
    %224 = math.tanh %223 : vector<2x32xf32>
    %225 = vector.extract_strided_slice %207 {offsets = [0, 96], sizes = [2, 32], strides = [1, 1]} : vector<2x128xf32> to vector<2x32xf32>
    %226 = arith.negf %225 : vector<2x32xf32>
    %227 = math.exp %226 : vector<2x32xf32>
    %cst_72 = arith.constant 1.000000e+00 : f32
    %228 = vector.broadcast %cst_72 : f32 to vector<2x32xf32>
    %229 = arith.addf %228, %227 : vector<2x32xf32>
    %230 = arith.divf %228, %229 : vector<2x32xf32>
    %231 = arith.mulf %222, %167 : vector<2x32xf32>
    %232 = arith.mulf %216, %224 : vector<2x32xf32>
    %233 = arith.addf %231, %232 : vector<2x32xf32>
    %234 = math.tanh %233 : vector<2x32xf32>
    %235 = arith.mulf %230, %234 : vector<2x32xf32>
    %236 = vector.extract_strided_slice %210 {offsets = [0, 0], sizes = [2, 32], strides = [1, 1]} : vector<2x128xf32> to vector<2x32xf32>
    %237 = arith.negf %236 : vector<2x32xf32>
    %238 = math.exp %237 : vector<2x32xf32>
    %cst_73 = arith.constant 1.000000e+00 : f32
    %239 = vector.broadcast %cst_73 : f32 to vector<2x32xf32>
    %240 = arith.addf %239, %238 : vector<2x32xf32>
    %241 = arith.divf %239, %240 : vector<2x32xf32>
    %242 = vector.extract_strided_slice %210 {offsets = [0, 32], sizes = [2, 32], strides = [1, 1]} : vector<2x128xf32> to vector<2x32xf32>
    %243 = arith.negf %242 : vector<2x32xf32>
    %244 = math.exp %243 : vector<2x32xf32>
    %cst_74 = arith.constant 1.000000e+00 : f32
    %245 = vector.broadcast %cst_74 : f32 to vector<2x32xf32>
    %246 = arith.addf %245, %244 : vector<2x32xf32>
    %247 = arith.divf %245, %246 : vector<2x32xf32>
    %248 = vector.extract_strided_slice %210 {offsets = [0, 64], sizes = [2, 32], strides = [1, 1]} : vector<2x128xf32> to vector<2x32xf32>
    %249 = math.tanh %248 : vector<2x32xf32>
    %250 = vector.extract_strided_slice %210 {offsets = [0, 96], sizes = [2, 32], strides = [1, 1]} : vector<2x128xf32> to vector<2x32xf32>
    %251 = arith.negf %250 : vector<2x32xf32>
    %252 = math.exp %251 : vector<2x32xf32>
    %cst_75 = arith.constant 1.000000e+00 : f32
    %253 = vector.broadcast %cst_75 : f32 to vector<2x32xf32>
    %254 = arith.addf %253, %252 : vector<2x32xf32>
    %255 = arith.divf %253, %254 : vector<2x32xf32>
    %256 = arith.mulf %247, %192 : vector<2x32xf32>
    %257 = arith.mulf %241, %249 : vector<2x32xf32>
    %258 = arith.addf %256, %257 : vector<2x32xf32>
    %259 = math.tanh %258 : vector<2x32xf32>
    %260 = arith.mulf %255, %259 : vector<2x32xf32>
    %c0_76 = arith.constant 0 : index
    %c3_77 = arith.constant 3 : index
    %c0_78 = arith.constant 0 : index
    %c0_79 = arith.constant 0 : index
    %261 = vector.load %arg4[%c0_76, %c3_77, %c0_78, %c0_79] : memref<2x8x2x32xf32, #tpu.memory_space<vmem>>, vector<1x1x2x32xf32>
    %262 = vector.shape_cast %261 : vector<1x1x2x32xf32> to vector<2x32xf32>
    %263 = vector.shape_cast %235 : vector<2x32xf32> to vector<1x1x2x32xf32>
    tpu.vector_store %arg4[%c0_76, %c3_77, %c0_78, %c0_79], %263 {strides = array<i32>} : memref<2x8x2x32xf32, #tpu.memory_space<vmem>>, vector<1x1x2x32xf32>,
    %c1_80 = arith.constant 1 : index
    %c4_81 = arith.constant 4 : index
    %c0_82 = arith.constant 0 : index
    %c0_83 = arith.constant 0 : index
    %264 = vector.load %arg4[%c1_80, %c4_81, %c0_82, %c0_83] : memref<2x8x2x32xf32, #tpu.memory_space<vmem>>, vector<1x1x2x32xf32>
    %265 = vector.shape_cast %264 : vector<1x1x2x32xf32> to vector<2x32xf32>
    %266 = vector.shape_cast %260 : vector<2x32xf32> to vector<1x1x2x32xf32>
    tpu.vector_store %arg4[%c1_80, %c4_81, %c0_82, %c0_83], %266 {strides = array<i32>} : memref<2x8x2x32xf32, #tpu.memory_space<vmem>>, vector<1x1x2x32xf32>,
    %c4_84 = arith.constant 4 : index
    %c0_85 = arith.constant 0 : index
    %c0_86 = arith.constant 0 : index
    %267 = vector.load %arg1[%c4_84, %c0_85, %c0_86] : memref<8x2x256xf32, #tpu.memory_space<vmem>>, vector<1x2x256xf32>
    %268 = vector.shape_cast %267 : vector<1x2x256xf32> to vector<2x256xf32>
    %c3_87 = arith.constant 3 : index
    %c0_88 = arith.constant 0 : index
    %c0_89 = arith.constant 0 : index
    %269 = vector.load %arg1[%c3_87, %c0_88, %c0_89] : memref<8x2x256xf32, #tpu.memory_space<vmem>>, vector<1x2x256xf32>
    %270 = vector.shape_cast %269 : vector<1x2x256xf32> to vector<2x256xf32>
    %271 = vector.extract_strided_slice %268 {offsets = [0, 0], sizes = [2, 128], strides = [1, 1]} : vector<2x256xf32> to vector<2x128xf32>
    %cst_90 = arith.constant dense<0.000000e+00> : vector<2x128xf32>
    %272 = tpu.matmul %235, %0, %cst_90 {dimension_numbers = #tpu.dot_dimension_numbers<[1], [0], [0], [1], [0, 0, 1, 1], [], []>} : vector<2x32xf32>, vector<32x128xf32>, vector<2x128xf32> -> vector<2x128xf32>
    %273 = arith.addf %271, %272 : vector<2x128xf32>
    %274 = vector.extract_strided_slice %270 {offsets = [0, 128], sizes = [2, 128], strides = [1, 1]} : vector<2x256xf32> to vector<2x128xf32>
    %cst_91 = arith.constant dense<0.000000e+00> : vector<2x128xf32>
    %275 = tpu.matmul %260, %1, %cst_91 {dimension_numbers = #tpu.dot_dimension_numbers<[1], [0], [0], [1], [0, 0, 1, 1], [], []>} : vector<2x32xf32>, vector<32x128xf32>, vector<2x128xf32> -> vector<2x128xf32>
    %276 = arith.addf %274, %275 : vector<2x128xf32>
    %277 = vector.extract_strided_slice %273 {offsets = [0, 0], sizes = [2, 32], strides = [1, 1]} : vector<2x128xf32> to vector<2x32xf32>
    %278 = arith.negf %277 : vector<2x32xf32>
    %279 = math.exp %278 : vector<2x32xf32>
    %cst_92 = arith.constant 1.000000e+00 : f32
    %280 = vector.broadcast %cst_92 : f32 to vector<2x32xf32>
    %281 = arith.addf %280, %279 : vector<2x32xf32>
    %282 = arith.divf %280, %281 : vector<2x32xf32>
    %283 = vector.extract_strided_slice %273 {offsets = [0, 32], sizes = [2, 32], strides = [1, 1]} : vector<2x128xf32> to vector<2x32xf32>
    %284 = arith.negf %283 : vector<2x32xf32>
    %285 = math.exp %284 : vector<2x32xf32>
    %cst_93 = arith.constant 1.000000e+00 : f32
    %286 = vector.broadcast %cst_93 : f32 to vector<2x32xf32>
    %287 = arith.addf %286, %285 : vector<2x32xf32>
    %288 = arith.divf %286, %287 : vector<2x32xf32>
    %289 = vector.extract_strided_slice %273 {offsets = [0, 64], sizes = [2, 32], strides = [1, 1]} : vector<2x128xf32> to vector<2x32xf32>
    %290 = math.tanh %289 : vector<2x32xf32>
    %291 = vector.extract_strided_slice %273 {offsets = [0, 96], sizes = [2, 32], strides = [1, 1]} : vector<2x128xf32> to vector<2x32xf32>
    %292 = arith.negf %291 : vector<2x32xf32>
    %293 = math.exp %292 : vector<2x32xf32>
    %cst_94 = arith.constant 1.000000e+00 : f32
    %294 = vector.broadcast %cst_94 : f32 to vector<2x32xf32>
    %295 = arith.addf %294, %293 : vector<2x32xf32>
    %296 = arith.divf %294, %295 : vector<2x32xf32>
    %297 = arith.mulf %288, %233 : vector<2x32xf32>
    %298 = arith.mulf %282, %290 : vector<2x32xf32>
    %299 = arith.addf %297, %298 : vector<2x32xf32>
    %300 = math.tanh %299 : vector<2x32xf32>
    %301 = arith.mulf %296, %300 : vector<2x32xf32>
    %302 = vector.extract_strided_slice %276 {offsets = [0, 0], sizes = [2, 32], strides = [1, 1]} : vector<2x128xf32> to vector<2x32xf32>
    %303 = arith.negf %302 : vector<2x32xf32>
    %304 = math.exp %303 : vector<2x32xf32>
    %cst_95 = arith.constant 1.000000e+00 : f32
    %305 = vector.broadcast %cst_95 : f32 to vector<2x32xf32>
    %306 = arith.addf %305, %304 : vector<2x32xf32>
    %307 = arith.divf %305, %306 : vector<2x32xf32>
    %308 = vector.extract_strided_slice %276 {offsets = [0, 32], sizes = [2, 32], strides = [1, 1]} : vector<2x128xf32> to vector<2x32xf32>
    %309 = arith.negf %308 : vector<2x32xf32>
    %310 = math.exp %309 : vector<2x32xf32>
    %cst_96 = arith.constant 1.000000e+00 : f32
    %311 = vector.broadcast %cst_96 : f32 to vector<2x32xf32>
    %312 = arith.addf %311, %310 : vector<2x32xf32>
    %313 = arith.divf %311, %312 : vector<2x32xf32>
    %314 = vector.extract_strided_slice %276 {offsets = [0, 64], sizes = [2, 32], strides = [1, 1]} : vector<2x128xf32> to vector<2x32xf32>
    %315 = math.tanh %314 : vector<2x32xf32>
    %316 = vector.extract_strided_slice %276 {offsets = [0, 96], sizes = [2, 32], strides = [1, 1]} : vector<2x128xf32> to vector<2x32xf32>
    %317 = arith.negf %316 : vector<2x32xf32>
    %318 = math.exp %317 : vector<2x32xf32>
    %cst_97 = arith.constant 1.000000e+00 : f32
    %319 = vector.broadcast %cst_97 : f32 to vector<2x32xf32>
    %320 = arith.addf %319, %318 : vector<2x32xf32>
    %321 = arith.divf %319, %320 : vector<2x32xf32>
    %322 = arith.mulf %313, %258 : vector<2x32xf32>
    %323 = arith.mulf %307, %315 : vector<2x32xf32>
    %324 = arith.addf %322, %323 : vector<2x32xf32>
    %325 = math.tanh %324 : vector<2x32xf32>
    %326 = arith.mulf %321, %325 : vector<2x32xf32>
    %c0_98 = arith.constant 0 : index
    %c4_99 = arith.constant 4 : index
    %c0_100 = arith.constant 0 : index
    %c0_101 = arith.constant 0 : index
    %327 = vector.load %arg4[%c0_98, %c4_99, %c0_100, %c0_101] : memref<2x8x2x32xf32, #tpu.memory_space<vmem>>, vector<1x1x2x32xf32>
    %328 = vector.shape_cast %327 : vector<1x1x2x32xf32> to vector<2x32xf32>
    %329 = vector.shape_cast %301 : vector<2x32xf32> to vector<1x1x2x32xf32>
    tpu.vector_store %arg4[%c0_98, %c4_99, %c0_100, %c0_101], %329 {strides = array<i32>} : memref<2x8x2x32xf32, #tpu.memory_space<vmem>>, vector<1x1x2x32xf32>,
    %c1_102 = arith.constant 1 : index
    %c3_103 = arith.constant 3 : index
    %c0_104 = arith.constant 0 : index
    %c0_105 = arith.constant 0 : index
    %330 = vector.load %arg4[%c1_102, %c3_103, %c0_104, %c0_105] : memref<2x8x2x32xf32, #tpu.memory_space<vmem>>, vector<1x1x2x32xf32>
    %331 = vector.shape_cast %330 : vector<1x1x2x32xf32> to vector<2x32xf32>
    %332 = vector.shape_cast %326 : vector<2x32xf32> to vector<1x1x2x32xf32>
    tpu.vector_store %arg4[%c1_102, %c3_103, %c0_104, %c0_105], %332 {strides = array<i32>} : memref<2x8x2x32xf32, #tpu.memory_space<vmem>>, vector<1x1x2x32xf32>,
    %c5_106 = arith.constant 5 : index
    %c0_107 = arith.constant 0 : index
    %c0_108 = arith.constant 0 : index
    %333 = vector.load %arg1[%c5_106, %c0_107, %c0_108] : memref<8x2x256xf32, #tpu.memory_space<vmem>>, vector<1x2x256xf32>
    %334 = vector.shape_cast %333 : vector<1x2x256xf32> to vector<2x256xf32>
    %c2_109 = arith.constant 2 : index
    %c0_110 = arith.constant 0 : index
    %c0_111 = arith.constant 0 : index
    %335 = vector.load %arg1[%c2_109, %c0_110, %c0_111] : memref<8x2x256xf32, #tpu.memory_space<vmem>>, vector<1x2x256xf32>
    %336 = vector.shape_cast %335 : vector<1x2x256xf32> to vector<2x256xf32>
    %337 = vector.extract_strided_slice %334 {offsets = [0, 0], sizes = [2, 128], strides = [1, 1]} : vector<2x256xf32> to vector<2x128xf32>
    %cst_112 = arith.constant dense<0.000000e+00> : vector<2x128xf32>
    %338 = tpu.matmul %301, %0, %cst_112 {dimension_numbers = #tpu.dot_dimension_numbers<[1], [0], [0], [1], [0, 0, 1, 1], [], []>} : vector<2x32xf32>, vector<32x128xf32>, vector<2x128xf32> -> vector<2x128xf32>
    %339 = arith.addf %337, %338 : vector<2x128xf32>
    %340 = vector.extract_strided_slice %336 {offsets = [0, 128], sizes = [2, 128], strides = [1, 1]} : vector<2x256xf32> to vector<2x128xf32>
    %cst_113 = arith.constant dense<0.000000e+00> : vector<2x128xf32>
    %341 = tpu.matmul %326, %1, %cst_113 {dimension_numbers = #tpu.dot_dimension_numbers<[1], [0], [0], [1], [0, 0, 1, 1], [], []>} : vector<2x32xf32>, vector<32x128xf32>, vector<2x128xf32> -> vector<2x128xf32>
    %342 = arith.addf %340, %341 : vector<2x128xf32>
    %343 = vector.extract_strided_slice %339 {offsets = [0, 0], sizes = [2, 32], strides = [1, 1]} : vector<2x128xf32> to vector<2x32xf32>
    %344 = arith.negf %343 : vector<2x32xf32>
    %345 = math.exp %344 : vector<2x32xf32>
    %cst_114 = arith.constant 1.000000e+00 : f32
    %346 = vector.broadcast %cst_114 : f32 to vector<2x32xf32>
    %347 = arith.addf %346, %345 : vector<2x32xf32>
    %348 = arith.divf %346, %347 : vector<2x32xf32>
    %349 = vector.extract_strided_slice %339 {offsets = [0, 32], sizes = [2, 32], strides = [1, 1]} : vector<2x128xf32> to vector<2x32xf32>
    %350 = arith.negf %349 : vector<2x32xf32>
    %351 = math.exp %350 : vector<2x32xf32>
    %cst_115 = arith.constant 1.000000e+00 : f32
    %352 = vector.broadcast %cst_115 : f32 to vector<2x32xf32>
    %353 = arith.addf %352, %351 : vector<2x32xf32>
    %354 = arith.divf %352, %353 : vector<2x32xf32>
    %355 = vector.extract_strided_slice %339 {offsets = [0, 64], sizes = [2, 32], strides = [1, 1]} : vector<2x128xf32> to vector<2x32xf32>
    %356 = math.tanh %355 : vector<2x32xf32>
    %357 = vector.extract_strided_slice %339 {offsets = [0, 96], sizes = [2, 32], strides = [1, 1]} : vector<2x128xf32> to vector<2x32xf32>
    %358 = arith.negf %357 : vector<2x32xf32>
    %359 = math.exp %358 : vector<2x32xf32>
    %cst_116 = arith.constant 1.000000e+00 : f32
    %360 = vector.broadcast %cst_116 : f32 to vector<2x32xf32>
    %361 = arith.addf %360, %359 : vector<2x32xf32>
    %362 = arith.divf %360, %361 : vector<2x32xf32>
    %363 = arith.mulf %354, %299 : vector<2x32xf32>
    %364 = arith.mulf %348, %356 : vector<2x32xf32>
    %365 = arith.addf %363, %364 : vector<2x32xf32>
    %366 = math.tanh %365 : vector<2x32xf32>
    %367 = arith.mulf %362, %366 : vector<2x32xf32>
    %368 = vector.extract_strided_slice %342 {offsets = [0, 0], sizes = [2, 32], strides = [1, 1]} : vector<2x128xf32> to vector<2x32xf32>
    %369 = arith.negf %368 : vector<2x32xf32>
    %370 = math.exp %369 : vector<2x32xf32>
    %cst_117 = arith.constant 1.000000e+00 : f32
    %371 = vector.broadcast %cst_117 : f32 to vector<2x32xf32>
    %372 = arith.addf %371, %370 : vector<2x32xf32>
    %373 = arith.divf %371, %372 : vector<2x32xf32>
    %374 = vector.extract_strided_slice %342 {offsets = [0, 32], sizes = [2, 32], strides = [1, 1]} : vector<2x128xf32> to vector<2x32xf32>
    %375 = arith.negf %374 : vector<2x32xf32>
    %376 = math.exp %375 : vector<2x32xf32>
    %cst_118 = arith.constant 1.000000e+00 : f32
    %377 = vector.broadcast %cst_118 : f32 to vector<2x32xf32>
    %378 = arith.addf %377, %376 : vector<2x32xf32>
    %379 = arith.divf %377, %378 : vector<2x32xf32>
    %380 = vector.extract_strided_slice %342 {offsets = [0, 64], sizes = [2, 32], strides = [1, 1]} : vector<2x128xf32> to vector<2x32xf32>
    %381 = math.tanh %380 : vector<2x32xf32>
    %382 = vector.extract_strided_slice %342 {offsets = [0, 96], sizes = [2, 32], strides = [1, 1]} : vector<2x128xf32> to vector<2x32xf32>
    %383 = arith.negf %382 : vector<2x32xf32>
    %384 = math.exp %383 : vector<2x32xf32>
    %cst_119 = arith.constant 1.000000e+00 : f32
    %385 = vector.broadcast %cst_119 : f32 to vector<2x32xf32>
    %386 = arith.addf %385, %384 : vector<2x32xf32>
    %387 = arith.divf %385, %386 : vector<2x32xf32>
    %388 = arith.mulf %379, %324 : vector<2x32xf32>
    %389 = arith.mulf %373, %381 : vector<2x32xf32>
    %390 = arith.addf %388, %389 : vector<2x32xf32>
    %391 = math.tanh %390 : vector<2x32xf32>
    %392 = arith.mulf %387, %391 : vector<2x32xf32>
    %c0_120 = arith.constant 0 : index
    %c5_121 = arith.constant 5 : index
    %c0_122 = arith.constant 0 : index
    %c0_123 = arith.constant 0 : index
    %393 = vector.load %arg4[%c0_120, %c5_121, %c0_122, %c0_123] : memref<2x8x2x32xf32, #tpu.memory_space<vmem>>, vector<1x1x2x32xf32>
    %394 = vector.shape_cast %393 : vector<1x1x2x32xf32> to vector<2x32xf32>
    %395 = vector.shape_cast %367 : vector<2x32xf32> to vector<1x1x2x32xf32>
    tpu.vector_store %arg4[%c0_120, %c5_121, %c0_122, %c0_123], %395 {strides = array<i32>} : memref<2x8x2x32xf32, #tpu.memory_space<vmem>>, vector<1x1x2x32xf32>,
    %c1_124 = arith.constant 1 : index
    %c2_125 = arith.constant 2 : index
    %c0_126 = arith.constant 0 : index
    %c0_127 = arith.constant 0 : index
    %396 = vector.load %arg4[%c1_124, %c2_125, %c0_126, %c0_127] : memref<2x8x2x32xf32, #tpu.memory_space<vmem>>, vector<1x1x2x32xf32>
    %397 = vector.shape_cast %396 : vector<1x1x2x32xf32> to vector<2x32xf32>
    %398 = vector.shape_cast %392 : vector<2x32xf32> to vector<1x1x2x32xf32>
    tpu.vector_store %arg4[%c1_124, %c2_125, %c0_126, %c0_127], %398 {strides = array<i32>} : memref<2x8x2x32xf32, #tpu.memory_space<vmem>>, vector<1x1x2x32xf32>,
    %c6_128 = arith.constant 6 : index
    %c0_129 = arith.constant 0 : index
    %c0_130 = arith.constant 0 : index
    %399 = vector.load %arg1[%c6_128, %c0_129, %c0_130] : memref<8x2x256xf32, #tpu.memory_space<vmem>>, vector<1x2x256xf32>
    %400 = vector.shape_cast %399 : vector<1x2x256xf32> to vector<2x256xf32>
    %c1_131 = arith.constant 1 : index
    %c0_132 = arith.constant 0 : index
    %c0_133 = arith.constant 0 : index
    %401 = vector.load %arg1[%c1_131, %c0_132, %c0_133] : memref<8x2x256xf32, #tpu.memory_space<vmem>>, vector<1x2x256xf32>
    %402 = vector.shape_cast %401 : vector<1x2x256xf32> to vector<2x256xf32>
    %403 = vector.extract_strided_slice %400 {offsets = [0, 0], sizes = [2, 128], strides = [1, 1]} : vector<2x256xf32> to vector<2x128xf32>
    %cst_134 = arith.constant dense<0.000000e+00> : vector<2x128xf32>
    %404 = tpu.matmul %367, %0, %cst_134 {dimension_numbers = #tpu.dot_dimension_numbers<[1], [0], [0], [1], [0, 0, 1, 1], [], []>} : vector<2x32xf32>, vector<32x128xf32>, vector<2x128xf32> -> vector<2x128xf32>
    %405 = arith.addf %403, %404 : vector<2x128xf32>
    %406 = vector.extract_strided_slice %402 {offsets = [0, 128], sizes = [2, 128], strides = [1, 1]} : vector<2x256xf32> to vector<2x128xf32>
    %cst_135 = arith.constant dense<0.000000e+00> : vector<2x128xf32>
    %407 = tpu.matmul %392, %1, %cst_135 {dimension_numbers = #tpu.dot_dimension_numbers<[1], [0], [0], [1], [0, 0, 1, 1], [], []>} : vector<2x32xf32>, vector<32x128xf32>, vector<2x128xf32> -> vector<2x128xf32>
    %408 = arith.addf %406, %407 : vector<2x128xf32>
    %409 = vector.extract_strided_slice %405 {offsets = [0, 0], sizes = [2, 32], strides = [1, 1]} : vector<2x128xf32> to vector<2x32xf32>
    %410 = arith.negf %409 : vector<2x32xf32>
    %411 = math.exp %410 : vector<2x32xf32>
    %cst_136 = arith.constant 1.000000e+00 : f32
    %412 = vector.broadcast %cst_136 : f32 to vector<2x32xf32>
    %413 = arith.addf %412, %411 : vector<2x32xf32>
    %414 = arith.divf %412, %413 : vector<2x32xf32>
    %415 = vector.extract_strided_slice %405 {offsets = [0, 32], sizes = [2, 32], strides = [1, 1]} : vector<2x128xf32> to vector<2x32xf32>
    %416 = arith.negf %415 : vector<2x32xf32>
    %417 = math.exp %416 : vector<2x32xf32>
    %cst_137 = arith.constant 1.000000e+00 : f32
    %418 = vector.broadcast %cst_137 : f32 to vector<2x32xf32>
    %419 = arith.addf %418, %417 : vector<2x32xf32>
    %420 = arith.divf %418, %419 : vector<2x32xf32>
    %421 = vector.extract_strided_slice %405 {offsets = [0, 64], sizes = [2, 32], strides = [1, 1]} : vector<2x128xf32> to vector<2x32xf32>
    %422 = math.tanh %421 : vector<2x32xf32>
    %423 = vector.extract_strided_slice %405 {offsets = [0, 96], sizes = [2, 32], strides = [1, 1]} : vector<2x128xf32> to vector<2x32xf32>
    %424 = arith.negf %423 : vector<2x32xf32>
    %425 = math.exp %424 : vector<2x32xf32>
    %cst_138 = arith.constant 1.000000e+00 : f32
    %426 = vector.broadcast %cst_138 : f32 to vector<2x32xf32>
    %427 = arith.addf %426, %425 : vector<2x32xf32>
    %428 = arith.divf %426, %427 : vector<2x32xf32>
    %429 = arith.mulf %420, %365 : vector<2x32xf32>
    %430 = arith.mulf %414, %422 : vector<2x32xf32>
    %431 = arith.addf %429, %430 : vector<2x32xf32>
    %432 = math.tanh %431 : vector<2x32xf32>
    %433 = arith.mulf %428, %432 : vector<2x32xf32>
    %434 = vector.extract_strided_slice %408 {offsets = [0, 0], sizes = [2, 32], strides = [1, 1]} : vector<2x128xf32> to vector<2x32xf32>
    %435 = arith.negf %434 : vector<2x32xf32>
    %436 = math.exp %435 : vector<2x32xf32>
    %cst_139 = arith.constant 1.000000e+00 : f32
    %437 = vector.broadcast %cst_139 : f32 to vector<2x32xf32>
    %438 = arith.addf %437, %436 : vector<2x32xf32>
    %439 = arith.divf %437, %438 : vector<2x32xf32>
    %440 = vector.extract_strided_slice %408 {offsets = [0, 32], sizes = [2, 32], strides = [1, 1]} : vector<2x128xf32> to vector<2x32xf32>
    %441 = arith.negf %440 : vector<2x32xf32>
    %442 = math.exp %441 : vector<2x32xf32>
    %cst_140 = arith.constant 1.000000e+00 : f32
    %443 = vector.broadcast %cst_140 : f32 to vector<2x32xf32>
    %444 = arith.addf %443, %442 : vector<2x32xf32>
    %445 = arith.divf %443, %444 : vector<2x32xf32>
    %446 = vector.extract_strided_slice %408 {offsets = [0, 64], sizes = [2, 32], strides = [1, 1]} : vector<2x128xf32> to vector<2x32xf32>
    %447 = math.tanh %446 : vector<2x32xf32>
    %448 = vector.extract_strided_slice %408 {offsets = [0, 96], sizes = [2, 32], strides = [1, 1]} : vector<2x128xf32> to vector<2x32xf32>
    %449 = arith.negf %448 : vector<2x32xf32>
    %450 = math.exp %449 : vector<2x32xf32>
    %cst_141 = arith.constant 1.000000e+00 : f32
    %451 = vector.broadcast %cst_141 : f32 to vector<2x32xf32>
    %452 = arith.addf %451, %450 : vector<2x32xf32>
    %453 = arith.divf %451, %452 : vector<2x32xf32>
    %454 = arith.mulf %445, %390 : vector<2x32xf32>
    %455 = arith.mulf %439, %447 : vector<2x32xf32>
    %456 = arith.addf %454, %455 : vector<2x32xf32>
    %457 = math.tanh %456 : vector<2x32xf32>
    %458 = arith.mulf %453, %457 : vector<2x32xf32>
    %c0_142 = arith.constant 0 : index
    %c6_143 = arith.constant 6 : index
    %c0_144 = arith.constant 0 : index
    %c0_145 = arith.constant 0 : index
    %459 = vector.load %arg4[%c0_142, %c6_143, %c0_144, %c0_145] : memref<2x8x2x32xf32, #tpu.memory_space<vmem>>, vector<1x1x2x32xf32>
    %460 = vector.shape_cast %459 : vector<1x1x2x32xf32> to vector<2x32xf32>
    %461 = vector.shape_cast %433 : vector<2x32xf32> to vector<1x1x2x32xf32>
    tpu.vector_store %arg4[%c0_142, %c6_143, %c0_144, %c0_145], %461 {strides = array<i32>} : memref<2x8x2x32xf32, #tpu.memory_space<vmem>>, vector<1x1x2x32xf32>,
    %c1_146 = arith.constant 1 : index
    %c1_147 = arith.constant 1 : index
    %c0_148 = arith.constant 0 : index
    %c0_149 = arith.constant 0 : index
    %462 = vector.load %arg4[%c1_146, %c1_147, %c0_148, %c0_149] : memref<2x8x2x32xf32, #tpu.memory_space<vmem>>, vector<1x1x2x32xf32>
    %463 = vector.shape_cast %462 : vector<1x1x2x32xf32> to vector<2x32xf32>
    %464 = vector.shape_cast %458 : vector<2x32xf32> to vector<1x1x2x32xf32>
    tpu.vector_store %arg4[%c1_146, %c1_147, %c0_148, %c0_149], %464 {strides = array<i32>} : memref<2x8x2x32xf32, #tpu.memory_space<vmem>>, vector<1x1x2x32xf32>,
    %c7_150 = arith.constant 7 : index
    %c0_151 = arith.constant 0 : index
    %c0_152 = arith.constant 0 : index
    %465 = vector.load %arg1[%c7_150, %c0_151, %c0_152] : memref<8x2x256xf32, #tpu.memory_space<vmem>>, vector<1x2x256xf32>
    %466 = vector.shape_cast %465 : vector<1x2x256xf32> to vector<2x256xf32>
    %c0_153 = arith.constant 0 : index
    %c0_154 = arith.constant 0 : index
    %c0_155 = arith.constant 0 : index
    %467 = vector.load %arg1[%c0_153, %c0_154, %c0_155] : memref<8x2x256xf32, #tpu.memory_space<vmem>>, vector<1x2x256xf32>
    %468 = vector.shape_cast %467 : vector<1x2x256xf32> to vector<2x256xf32>
    %469 = vector.extract_strided_slice %466 {offsets = [0, 0], sizes = [2, 128], strides = [1, 1]} : vector<2x256xf32> to vector<2x128xf32>
    %cst_156 = arith.constant dense<0.000000e+00> : vector<2x128xf32>
    %470 = tpu.matmul %433, %0, %cst_156 {dimension_numbers = #tpu.dot_dimension_numbers<[1], [0], [0], [1], [0, 0, 1, 1], [], []>} : vector<2x32xf32>, vector<32x128xf32>, vector<2x128xf32> -> vector<2x128xf32>
    %471 = arith.addf %469, %470 : vector<2x128xf32>
    %472 = vector.extract_strided_slice %468 {offsets = [0, 128], sizes = [2, 128], strides = [1, 1]} : vector<2x256xf32> to vector<2x128xf32>
    %cst_157 = arith.constant dense<0.000000e+00> : vector<2x128xf32>
    %473 = tpu.matmul %458, %1, %cst_157 {dimension_numbers = #tpu.dot_dimension_numbers<[1], [0], [0], [1], [0, 0, 1, 1], [], []>} : vector<2x32xf32>, vector<32x128xf32>, vector<2x128xf32> -> vector<2x128xf32>
    %474 = arith.addf %472, %473 : vector<2x128xf32>
    %475 = vector.extract_strided_slice %471 {offsets = [0, 0], sizes = [2, 32], strides = [1, 1]} : vector<2x128xf32> to vector<2x32xf32>
    %476 = arith.negf %475 : vector<2x32xf32>
    %477 = math.exp %476 : vector<2x32xf32>
    %cst_158 = arith.constant 1.000000e+00 : f32
    %478 = vector.broadcast %cst_158 : f32 to vector<2x32xf32>
    %479 = arith.addf %478, %477 : vector<2x32xf32>
    %480 = arith.divf %478, %479 : vector<2x32xf32>
    %481 = vector.extract_strided_slice %471 {offsets = [0, 32], sizes = [2, 32], strides = [1, 1]} : vector<2x128xf32> to vector<2x32xf32>
    %482 = arith.negf %481 : vector<2x32xf32>
    %483 = math.exp %482 : vector<2x32xf32>
    %cst_159 = arith.constant 1.000000e+00 : f32
    %484 = vector.broadcast %cst_159 : f32 to vector<2x32xf32>
    %485 = arith.addf %484, %483 : vector<2x32xf32>
    %486 = arith.divf %484, %485 : vector<2x32xf32>
    %487 = vector.extract_strided_slice %471 {offsets = [0, 64], sizes = [2, 32], strides = [1, 1]} : vector<2x128xf32> to vector<2x32xf32>
    %488 = math.tanh %487 : vector<2x32xf32>
    %489 = vector.extract_strided_slice %471 {offsets = [0, 96], sizes = [2, 32], strides = [1, 1]} : vector<2x128xf32> to vector<2x32xf32>
    %490 = arith.negf %489 : vector<2x32xf32>
    %491 = math.exp %490 : vector<2x32xf32>
    %cst_160 = arith.constant 1.000000e+00 : f32
    %492 = vector.broadcast %cst_160 : f32 to vector<2x32xf32>
    %493 = arith.addf %492, %491 : vector<2x32xf32>
    %494 = arith.divf %492, %493 : vector<2x32xf32>
    %495 = arith.mulf %486, %431 : vector<2x32xf32>
    %496 = arith.mulf %480, %488 : vector<2x32xf32>
    %497 = arith.addf %495, %496 : vector<2x32xf32>
    %498 = math.tanh %497 : vector<2x32xf32>
    %499 = arith.mulf %494, %498 : vector<2x32xf32>
    %500 = vector.extract_strided_slice %474 {offsets = [0, 0], sizes = [2, 32], strides = [1, 1]} : vector<2x128xf32> to vector<2x32xf32>
    %501 = arith.negf %500 : vector<2x32xf32>
    %502 = math.exp %501 : vector<2x32xf32>
    %cst_161 = arith.constant 1.000000e+00 : f32
    %503 = vector.broadcast %cst_161 : f32 to vector<2x32xf32>
    %504 = arith.addf %503, %502 : vector<2x32xf32>
    %505 = arith.divf %503, %504 : vector<2x32xf32>
    %506 = vector.extract_strided_slice %474 {offsets = [0, 32], sizes = [2, 32], strides = [1, 1]} : vector<2x128xf32> to vector<2x32xf32>
    %507 = arith.negf %506 : vector<2x32xf32>
    %508 = math.exp %507 : vector<2x32xf32>
    %cst_162 = arith.constant 1.000000e+00 : f32
    %509 = vector.broadcast %cst_162 : f32 to vector<2x32xf32>
    %510 = arith.addf %509, %508 : vector<2x32xf32>
    %511 = arith.divf %509, %510 : vector<2x32xf32>
    %512 = vector.extract_strided_slice %474 {offsets = [0, 64], sizes = [2, 32], strides = [1, 1]} : vector<2x128xf32> to vector<2x32xf32>
    %513 = math.tanh %512 : vector<2x32xf32>
    %514 = vector.extract_strided_slice %474 {offsets = [0, 96], sizes = [2, 32], strides = [1, 1]} : vector<2x128xf32> to vector<2x32xf32>
    %515 = arith.negf %514 : vector<2x32xf32>
    %516 = math.exp %515 : vector<2x32xf32>
    %cst_163 = arith.constant 1.000000e+00 : f32
    %517 = vector.broadcast %cst_163 : f32 to vector<2x32xf32>
    %518 = arith.addf %517, %516 : vector<2x32xf32>
    %519 = arith.divf %517, %518 : vector<2x32xf32>
    %520 = arith.mulf %511, %456 : vector<2x32xf32>
    %521 = arith.mulf %505, %513 : vector<2x32xf32>
    %522 = arith.addf %520, %521 : vector<2x32xf32>
    %523 = math.tanh %522 : vector<2x32xf32>
    %524 = arith.mulf %519, %523 : vector<2x32xf32>
    %c0_164 = arith.constant 0 : index
    %c7_165 = arith.constant 7 : index
    %c0_166 = arith.constant 0 : index
    %c0_167 = arith.constant 0 : index
    %525 = vector.load %arg4[%c0_164, %c7_165, %c0_166, %c0_167] : memref<2x8x2x32xf32, #tpu.memory_space<vmem>>, vector<1x1x2x32xf32>
    %526 = vector.shape_cast %525 : vector<1x1x2x32xf32> to vector<2x32xf32>
    %527 = vector.shape_cast %499 : vector<2x32xf32> to vector<1x1x2x32xf32>
    tpu.vector_store %arg4[%c0_164, %c7_165, %c0_166, %c0_167], %527 {strides = array<i32>} : memref<2x8x2x32xf32, #tpu.memory_space<vmem>>, vector<1x1x2x32xf32>,
    %c1_168 = arith.constant 1 : index
    %c0_169 = arith.constant 0 : index
    %c0_170 = arith.constant 0 : index
    %c0_171 = arith.constant 0 : index
    %528 = vector.load %arg4[%c1_168, %c0_169, %c0_170, %c0_171] : memref<2x8x2x32xf32, #tpu.memory_space<vmem>>, vector<1x1x2x32xf32>
    %529 = vector.shape_cast %528 : vector<1x1x2x32xf32> to vector<2x32xf32>
    %530 = vector.shape_cast %524 : vector<2x32xf32> to vector<1x1x2x32xf32>
    tpu.vector_store %arg4[%c1_168, %c0_169, %c0_170, %c0_171], %530 {strides = array<i32>} : memref<2x8x2x32xf32, #tpu.memory_space<vmem>>, vector<1x1x2x32xf32>,
    return
  }
  func.func @transform_0(%arg0: i32) -> (i32, i32, i32) {
    %c0_i32 = arith.constant 0 : i32
    %c0_i32_0 = arith.constant 0 : i32
    %c0_i32_1 = arith.constant 0 : i32
    %c0_i32_2 = arith.constant 0 : i32
    return %c0_i32, %c0_i32_0, %c0_i32_1 : i32, i32, i32
  }
  func.func @transform_1(%arg0: i32) -> (i32, i32) {
    %c0_i32 = arith.constant 0 : i32
    %c0_i32_0 = arith.constant 0 : i32
    %c0_i32_1 = arith.constant 0 : i32
    return %c0_i32, %c0_i32_0 : i32, i32
  }
  func.func @transform_2(%arg0: i32) -> (i32, i32) {
    %c0_i32 = arith.constant 0 : i32
    %c0_i32_0 = arith.constant 0 : i32
    %c0_i32_1 = arith.constant 0 : i32
    return %c0_i32, %c0_i32_0 : i32, i32
  }
  func.func @transform_3(%arg0: i32) -> (i32, i32, i32, i32) {
    %c0_i32 = arith.constant 0 : i32
    %c0_i32_0 = arith.constant 0 : i32
    %c0_i32_1 = arith.constant 0 : i32
    %c0_i32_2 = arith.constant 0 : i32
    %c0_i32_3 = arith.constant 0 : i32
    return %c0_i32, %c0_i32_0, %c0_i32_1, %c0_i32_2 : i32, i32, i32, i32
  }
}

module attributes {stable_mosaic.version = 11 : i64} {
  func.func @_proj_kernel(%arg0: i32, %arg1: memref<16x32xf32, #tpu.memory_space<vmem>>, %arg2: memref<32x256xf32, #tpu.memory_space<vmem>>, %arg3: memref<1x256xf32, #tpu.memory_space<vmem>>, %arg4: memref<16x256xf32, #tpu.memory_space<vmem>>) attributes {dimension_semantics = [#tpu.dimension_semantics<arbitrary>], iteration_bounds = array<i64: 1>, scalar_prefetch = 0 : i64, scratch_operands = 0 : i64, tpu.core_type = #tpu.core_type<tc>, window_params = [{pipeline_mode = #tpu.pipeline_mode<synchronous>, transform_indices = @transform_0, window_bounds = array<i64: 16, 32>}, {pipeline_mode = #tpu.pipeline_mode<synchronous>, transform_indices = @transform_1, window_bounds = array<i64: 32, 256>}, {pipeline_mode = #tpu.pipeline_mode<synchronous>, transform_indices = @transform_2, window_bounds = array<i64: 1, 256>}, {pipeline_mode = #tpu.pipeline_mode<synchronous>, transform_indices = @transform_3, window_bounds = array<i64: 16, 256>}]} {
    %c0 = arith.constant 0 : index
    %c0_0 = arith.constant 0 : index
    %0 = vector.load %arg1[%c0, %c0_0] : memref<16x32xf32, #tpu.memory_space<vmem>>, vector<16x32xf32>
    %c0_1 = arith.constant 0 : index
    %c0_2 = arith.constant 0 : index
    %1 = vector.load %arg2[%c0_1, %c0_2] : memref<32x256xf32, #tpu.memory_space<vmem>>, vector<32x256xf32>
    %cst = arith.constant dense<0.000000e+00> : vector<16x256xf32>
    %2 = tpu.matmul %0, %1, %cst {dimension_numbers = #tpu.dot_dimension_numbers<[1], [0], [0], [1], [0, 0, 1, 1], [], []>} : vector<16x32xf32>, vector<32x256xf32>, vector<16x256xf32> -> vector<16x256xf32>
    %c0_3 = arith.constant 0 : index
    %c0_4 = arith.constant 0 : index
    %3 = vector.load %arg3[%c0_3, %c0_4] : memref<1x256xf32, #tpu.memory_space<vmem>>, vector<1x256xf32>
    %4 = vector.broadcast %3 : vector<1x256xf32> to vector<16x256xf32>
    %5 = arith.addf %2, %4 : vector<16x256xf32>
    %c0_5 = arith.constant 0 : index
    %c0_6 = arith.constant 0 : index
    %6 = vector.load %arg4[%c0_5, %c0_6] : memref<16x256xf32, #tpu.memory_space<vmem>>, vector<16x256xf32>
    tpu.vector_store %arg4[%c0_5, %c0_6], %5 {strides = array<i32>} : memref<16x256xf32, #tpu.memory_space<vmem>>, vector<16x256xf32>,
    return
  }
  func.func @transform_0(%arg0: i32) -> (i32, i32) {
    %c0_i32 = arith.constant 0 : i32
    %c0_i32_0 = arith.constant 0 : i32
    %c0_i32_1 = arith.constant 0 : i32
    return %c0_i32, %c0_i32_0 : i32, i32
  }
  func.func @transform_1(%arg0: i32) -> (i32, i32) {
    %c0_i32 = arith.constant 0 : i32
    %c0_i32_0 = arith.constant 0 : i32
    %c0_i32_1 = arith.constant 0 : i32
    return %c0_i32, %c0_i32_0 : i32, i32
  }
  func.func @transform_2(%arg0: i32) -> (i32, i32) {
    %c0_i32 = arith.constant 0 : i32
    %c0_i32_0 = arith.constant 0 : i32
    %c0_i32_1 = arith.constant 0 : i32
    return %c0_i32, %c0_i32_0 : i32, i32
  }
  func.func @transform_3(%arg0: i32) -> (i32, i32) {
    %c0_i32 = arith.constant 0 : i32
    %c0_i32_0 = arith.constant 0 : i32
    %c0_i32_1 = arith.constant 0 : i32
    return %c0_i32, %c0_i32_0 : i32, i32
  }
}

module attributes {stable_mosaic.version = 11 : i64} {
  func.func @_proj_kernel(%arg0: i32, %arg1: memref<16x32xf32, #tpu.memory_space<vmem>>, %arg2: memref<16x32xf32, #tpu.memory_space<vmem>>, %arg3: memref<32x256xf32, #tpu.memory_space<vmem>>, %arg4: memref<32x256xf32, #tpu.memory_space<vmem>>, %arg5: memref<1x256xf32, #tpu.memory_space<vmem>>, %arg6: memref<16x256xf32, #tpu.memory_space<vmem>>) attributes {dimension_semantics = [#tpu.dimension_semantics<arbitrary>], iteration_bounds = array<i64: 1>, scalar_prefetch = 0 : i64, scratch_operands = 0 : i64, tpu.core_type = #tpu.core_type<tc>, window_params = [{pipeline_mode = #tpu.pipeline_mode<synchronous>, transform_indices = @transform_0, window_bounds = array<i64: 16, 32>}, {pipeline_mode = #tpu.pipeline_mode<synchronous>, transform_indices = @transform_1, window_bounds = array<i64: 16, 32>}, {pipeline_mode = #tpu.pipeline_mode<synchronous>, transform_indices = @transform_2, window_bounds = array<i64: 32, 256>}, {pipeline_mode = #tpu.pipeline_mode<synchronous>, transform_indices = @transform_3, window_bounds = array<i64: 32, 256>}, {pipeline_mode = #tpu.pipeline_mode<synchronous>, transform_indices = @transform_4, window_bounds = array<i64: 1, 256>}, {pipeline_mode = #tpu.pipeline_mode<synchronous>, transform_indices = @transform_5, window_bounds = array<i64: 16, 256>}]} {
    %c0 = arith.constant 0 : index
    %c0_0 = arith.constant 0 : index
    %0 = vector.load %arg1[%c0, %c0_0] : memref<16x32xf32, #tpu.memory_space<vmem>>, vector<16x32xf32>
    %c0_1 = arith.constant 0 : index
    %c0_2 = arith.constant 0 : index
    %1 = vector.load %arg3[%c0_1, %c0_2] : memref<32x256xf32, #tpu.memory_space<vmem>>, vector<32x256xf32>
    %cst = arith.constant dense<0.000000e+00> : vector<16x256xf32>
    %2 = tpu.matmul %0, %1, %cst {dimension_numbers = #tpu.dot_dimension_numbers<[1], [0], [0], [1], [0, 0, 1, 1], [], []>} : vector<16x32xf32>, vector<32x256xf32>, vector<16x256xf32> -> vector<16x256xf32>
    %c0_3 = arith.constant 0 : index
    %c0_4 = arith.constant 0 : index
    %3 = vector.load %arg5[%c0_3, %c0_4] : memref<1x256xf32, #tpu.memory_space<vmem>>, vector<1x256xf32>
    %4 = vector.broadcast %3 : vector<1x256xf32> to vector<16x256xf32>
    %5 = arith.addf %2, %4 : vector<16x256xf32>
    %c0_5 = arith.constant 0 : index
    %c0_6 = arith.constant 0 : index
    %6 = vector.load %arg2[%c0_5, %c0_6] : memref<16x32xf32, #tpu.memory_space<vmem>>, vector<16x32xf32>
    %c0_7 = arith.constant 0 : index
    %c0_8 = arith.constant 0 : index
    %7 = vector.load %arg4[%c0_7, %c0_8] : memref<32x256xf32, #tpu.memory_space<vmem>>, vector<32x256xf32>
    %cst_9 = arith.constant dense<0.000000e+00> : vector<16x256xf32>
    %8 = tpu.matmul %6, %7, %cst_9 {dimension_numbers = #tpu.dot_dimension_numbers<[1], [0], [0], [1], [0, 0, 1, 1], [], []>} : vector<16x32xf32>, vector<32x256xf32>, vector<16x256xf32> -> vector<16x256xf32>
    %9 = arith.addf %5, %8 : vector<16x256xf32>
    %c0_10 = arith.constant 0 : index
    %c0_11 = arith.constant 0 : index
    %10 = vector.load %arg6[%c0_10, %c0_11] : memref<16x256xf32, #tpu.memory_space<vmem>>, vector<16x256xf32>
    tpu.vector_store %arg6[%c0_10, %c0_11], %9 {strides = array<i32>} : memref<16x256xf32, #tpu.memory_space<vmem>>, vector<16x256xf32>,
    return
  }
  func.func @transform_0(%arg0: i32) -> (i32, i32) {
    %c0_i32 = arith.constant 0 : i32
    %c0_i32_0 = arith.constant 0 : i32
    %c0_i32_1 = arith.constant 0 : i32
    return %c0_i32, %c0_i32_0 : i32, i32
  }
  func.func @transform_1(%arg0: i32) -> (i32, i32) {
    %c0_i32 = arith.constant 0 : i32
    %c0_i32_0 = arith.constant 0 : i32
    %c0_i32_1 = arith.constant 0 : i32
    return %c0_i32, %c0_i32_0 : i32, i32
  }
  func.func @transform_2(%arg0: i32) -> (i32, i32) {
    %c0_i32 = arith.constant 0 : i32
    %c0_i32_0 = arith.constant 0 : i32
    %c0_i32_1 = arith.constant 0 : i32
    return %c0_i32, %c0_i32_0 : i32, i32
  }
  func.func @transform_3(%arg0: i32) -> (i32, i32) {
    %c0_i32 = arith.constant 0 : i32
    %c0_i32_0 = arith.constant 0 : i32
    %c0_i32_1 = arith.constant 0 : i32
    return %c0_i32, %c0_i32_0 : i32, i32
  }
  func.func @transform_4(%arg0: i32) -> (i32, i32) {
    %c0_i32 = arith.constant 0 : i32
    %c0_i32_0 = arith.constant 0 : i32
    %c0_i32_1 = arith.constant 0 : i32
    return %c0_i32, %c0_i32_0 : i32, i32
  }
  func.func @transform_5(%arg0: i32) -> (i32, i32) {
    %c0_i32 = arith.constant 0 : i32
    %c0_i32_0 = arith.constant 0 : i32
    %c0_i32_1 = arith.constant 0 : i32
    return %c0_i32, %c0_i32_0 : i32, i32
  }
}

</mosaic_0001>

<llo_original>
// kernel: rnn_classifier_forward.6
$region0: #{rnn_classifier_forward.6}
  #allocation0 [shape = 'u32[]', space=smem, size = 0x4, offset = 0x4, fixed_abs, tag = 'smem constant byte address 0x4 - core index']
  #allocation1 [shape = 'u32[144,128]{1,0:T(1,128)}', space=vmem, size = 0x12000, scoped, tag = 'internal scratch']
  %s0 = inlined_call_operand.vmem [shape: f32[16,32], index: 0, kind: input, shape index: {}]
  %s1 = inlined_call_operand.vmem [shape: f32[16,32], index: 1, kind: input, shape index: {}]
  %s2 = inlined_call_operand.vmem [shape: f32[32,256], index: 2, kind: input, shape index: {}]
  %s3 = inlined_call_operand.vmem [shape: f32[32,256], index: 3, kind: input, shape index: {}]
  %s4 = inlined_call_operand.vmem [shape: f32[1,256], index: 4, kind: input, shape index: {}]
  %s5 = inlined_call_operand.vmem [shape: f32[16,256], index: 5, kind: output, shape index: {}]
  %s6 = sld [smem:[#allocation0]]
  $region30: #{rnn_classifier_forward.6} parent=0
    _
  %s8 = ssub.s32 1, %s6
  %s9 = scalar_select 0, %s8, %s6
  // Predicated region
  $region2: #{rnn_classifier_forward.6} parent=0 // pred_check
    _
  $region3: #{rnn_classifier_forward.6} parent=0 // pred_check_branch
    %11 = sbr.rel (0) target = $region5
  $region4: #{rnn_classifier_forward.6} parent=0 // pred_region
    _
  $region5: #{rnn_classifier_forward.6} parent=0 // pred_fallthru
    _
  // Predicated region
  $region6: #{rnn_classifier_forward.6} parent=0 // pred_check
    _
  $region7: #{rnn_classifier_forward.6} parent=0 // pred_check_branch
    %13 = sbr.rel (0) target = $region9
  $region8: #{rnn_classifier_forward.6} parent=0 // pred_region
    _
  $region9: #{rnn_classifier_forward.6} parent=0 // pred_fallthru
    _
  // Predicated region
  $region10: #{rnn_classifier_forward.6} parent=0 // pred_check
    _
  $region11: #{rnn_classifier_forward.6} parent=0 // pred_check_branch
    %15 = sbr.rel (0) target = $region13
  $region12: #{rnn_classifier_forward.6} parent=0 // pred_region
    _
  $region13: #{rnn_classifier_forward.6} parent=0 // pred_fallthru
    _
  // Predicated region
  $region14: #{rnn_classifier_forward.6} parent=0 // pred_check
    _
  $region15: #{rnn_classifier_forward.6} parent=0 // pred_check_branch
    %17 = sbr.rel (0) target = $region17
  $region16: #{rnn_classifier_forward.6} parent=0 // pred_region
    _
  $region17: #{rnn_classifier_forward.6} parent=0 // pred_fallthru
    _
  // Predicated region
  $region18: #{rnn_classifier_forward.6} parent=0 // pred_check
    _
  $region19: #{rnn_classifier_forward.6} parent=0 // pred_check_branch
    %19 = sbr.rel (0) target = $region21
  $region20: #{rnn_classifier_forward.6} parent=0 // pred_region
    _
  $region21: #{rnn_classifier_forward.6} parent=0 // pred_fallthru
    _
  %v20 = vld [vmem:[%s0] sm:$0xff]
  %v21 = vld [vmem:[%s0 + $0x8] sm:$0xff]
  %v22 = vld [vmem:[%s2] sm:$0xff]
  %v23 = vld [vmem:[%s2 + $0x8] sm:$0xff]
  %v24 = vld [vmem:[%s2 + $0x10] sm:$0xff]
  %v25 = vld [vmem:[%s2 + $0x18] sm:$0xff]
  %v26 = vld [vmem:[%s2 + $0x20] sm:$0xff]
  %v27 = vld [vmem:[%s2 + $0x28] sm:$0xff]
  %v28 = vld [vmem:[%s2 + $0x30] sm:$0xff]
  %v29 = vld [vmem:[%s2 + $0x38] sm:$0xff]
  %v30 = vld [vmem:[%s4] sm:$0x3]
  %v32 = vlaneseq
  %v33 = vshrl.u32 %v32, 7
  %v34 = vsub.s32 0, %v33
  %v35 = vrot.slane %v30, %v34
  %v36 = vlaneseq
  %v37 = vshrl.u32 %v36, 7
  %v38 = vsub.s32 1, %v37
  %v39 = vrot.slane %v30, %v38
  %vm42 = vcmask 261120
  %v44 = vsel %vm42, %v20, 0
  %v47 = vsel %vm42, %v21, 0
  %49 = vmatprep.subr.mxu0 %v23
  %50 = vmatpush1.msra.mxu0 %v22
  %51 = vmatprep.subr.mxu0 %v25
  %52 = vmatpush1.msra.mxu0 %v24
  %53 = vmatprep.subr.mxu0 %v27
  %54 = vmatpush1.msra.mxu0 %v26
  %55 = vmatprep.subr.mxu0 %v29
  %56 = vmatpush1.msra.mxu0 %v28
  %57 = vmatprep.subr.mxu0 0.0
  %58 = vmatpush1.msra.mxu0 0.0
  %59 = vmatprep.subr.mxu0 0.0
  %60 = vmatpush1.msra.mxu0 0.0
  %61 = vmatprep.subr.mxu0 0.0
  %62 = vmatpush1.msra.mxu0 0.0
  %63 = vmatprep.subr.mxu0 0.0
  %64 = vmatpush1.msra.mxu0 0.0
  %65 = vmatprep.subr.mxu0 0.0
  %66 = vmatpush1.msra.mxu0 0.0
  %67 = vmatprep.subr.mxu0 0.0
  %68 = vmatpush1.msra.mxu0 0.0
  %69 = vmatprep.subr.mxu0 0.0
  %70 = vmatpush1.msra.mxu0 0.0
  %71 = vmatprep.subr.mxu0 0.0
  %72 = vmatpush1.msra.mxu0 0.0
  %73 = vmatprep.subr.mxu0 0.0
  %74 = vmatpush1.msra.mxu0 0.0
  %75 = vmatprep.subr.mxu0 0.0
  %76 = vmatpush1.msra.mxu0 0.0
  %77 = vmatprep.subr.mxu0 0.0
  %78 = vmatpush1.msra.mxu0 0.0
  %79 = vmatprep.subr.mxu0 0.0
  %80 = vmatpush1.msra.mxu0 0.0
  %81 = vmatprep.subr.mxu0 0.0
  %82 = vmatpush1.msra.mxu0 0.0
  %83 = vmatprep.subr.mxu0 0.0
  %84 = vmatpush1.msra.mxu0 0.0
  %85 = vmatprep.subr.mxu0 0.0
  %86 = vmatpush1.msra.mxu0 0.0
  %87 = vmatprep.subr.mxu0 0.0
  %88 = vmatpush1.msra.mxu0 0.0
  %89 = vmatprep.subr.mxu0 0.0
  %90 = vmatpush1.msra.mxu0 0.0
  %91 = vmatprep.subr.mxu0 0.0
  %92 = vmatpush1.msra.mxu0 0.0
  %93 = vmatprep.subr.mxu0 0.0
  %94 = vmatpush1.msra.mxu0 0.0
  %95 = vmatprep.subr.mxu0 0.0
  %96 = vmatpush1.msra.mxu0 0.0
  %97 = vmatprep.subr.mxu0 0.0
  %98 = vmatpush1.msra.mxu0 0.0
  %99 = vmatprep.subr.mxu0 0.0
  %100 = vmatpush1.msra.mxu0 0.0
  %101 = vmatprep.subr.mxu0 0.0
  %102 = vmatpush1.msra.mxu0 0.0
  %103 = vmatprep.subr.mxu0 0.0
  %104 = vmatpush1.msra.mxu0 0.0
  %105 = vmatprep.subr.mxu0 0.0
  %106 = vmatpush1.msra.mxu0 0.0
  %107 = vmatprep.subr.mxu0 0.0
  %108 = vmatpush1.msra.mxu0 0.0
  %109 = vmatprep.subr.mxu0 0.0
  %110 = vmatpush1.msra.mxu0 0.0
  %111 = vmatprep.subr.mxu0 0.0
  %112 = vmatpush1.msra.mxu0 0.0
  %113 = vmatprep.mubr.f32.mxu0 0.0
  %114 = vmatmul.mubr.f32.gmra.mrb[0].mxu0 %v44
  %v115 = vpop.f32.mrb[0].mxu0
  %v116 = vadd.f32 %v35, %v115
  %v117 = vpop.f32.mrb[0].mxu0
  %v118 = vadd.f32 %v39, %v117
  %119 = vmatprep.mubr.f32.mxu0 0.0
  %120 = vmatmul.mubr.f32.gmra.mrb[0].mxu0 %v47
  %v121 = vpop.f32.mrb[0].mxu0
  %v122 = vadd.f32 %v35, %v121
  %v123 = vpop.f32.mrb[0].mxu0
  %v124 = vadd.f32 %v39, %v123
  %125 = vdwg.mxu0
  %v126 = vld [vmem:[%s1] sm:$0xff]
  %v127 = vld [vmem:[%s1 + $0x8] sm:$0xff]
  %v128 = vld [vmem:[%s3] sm:$0xff]
  %v129 = vld [vmem:[%s3 + $0x8] sm:$0xff]
  %v130 = vld [vmem:[%s3 + $0x10] sm:$0xff]
  %v131 = vld [vmem:[%s3 + $0x18] sm:$0xff]
  %v132 = vld [vmem:[%s3 + $0x20] sm:$0xff]
  %v133 = vld [vmem:[%s3 + $0x28] sm:$0xff]
  %v134 = vld [vmem:[%s3 + $0x30] sm:$0xff]
  %v135 = vld [vmem:[%s3 + $0x38] sm:$0xff]
  %v137 = vsel %vm42, %v126, 0
  %v140 = vsel %vm42, %v127, 0
  %142 = vmatprep.subr.mxu0 %v129
  %143 = vmatpush1.msra.mxu0 %v128
  %144 = vmatprep.subr.mxu0 %v131
  %145 = vmatpush1.msra.mxu0 %v130
  %146 = vmatprep.subr.mxu0 %v133
  %147 = vmatpush1.msra.mxu0 %v132
  %148 = vmatprep.subr.mxu0 %v135
  %149 = vmatpush1.msra.mxu0 %v134
  %150 = vmatprep.subr.mxu0 0.0
  %151 = vmatpush1.msra.mxu0 0.0
  %152 = vmatprep.subr.mxu0 0.0
  %153 = vmatpush1.msra.mxu0 0.0
  %154 = vmatprep.subr.mxu0 0.0
  %155 = vmatpush1.msra.mxu0 0.0
  %156 = vmatprep.subr.mxu0 0.0
  %157 = vmatpush1.msra.mxu0 0.0
  %158 = vmatprep.subr.mxu0 0.0
  %159 = vmatpush1.msra.mxu0 0.0
  %160 = vmatprep.subr.mxu0 0.0
  %161 = vmatpush1.msra.mxu0 0.0
  %162 = vmatprep.subr.mxu0 0.0
  %163 = vmatpush1.msra.mxu0 0.0
  %164 = vmatprep.subr.mxu0 0.0
  %165 = vmatpush1.msra.mxu0 0.0
  %166 = vmatprep.subr.mxu0 0.0
  %167 = vmatpush1.msra.mxu0 0.0
  %168 = vmatprep.subr.mxu0 0.0
  %169 = vmatpush1.msra.mxu0 0.0
  %170 = vmatprep.subr.mxu0 0.0
  %171 = vmatpush1.msra.mxu0 0.0
  %172 = vmatprep.subr.mxu0 0.0
  %173 = vmatpush1.msra.mxu0 0.0
  %174 = vmatprep.subr.mxu0 0.0
  %175 = vmatpush1.msra.mxu0 0.0
  %176 = vmatprep.subr.mxu0 0.0
  %177 = vmatpush1.msra.mxu0 0.0
  %178 = vmatprep.subr.mxu0 0.0
  %179 = vmatpush1.msra.mxu0 0.0
  %180 = vmatprep.subr.mxu0 0.0
  %181 = vmatpush1.msra.mxu0 0.0
  %182 = vmatprep.subr.mxu0 0.0
  %183 = vmatpush1.msra.mxu0 0.0
  %184 = vmatprep.subr.mxu0 0.0
  %185 = vmatpush1.msra.mxu0 0.0
  %186 = vmatprep.subr.mxu0 0.0
  %187 = vmatpush1.msra.mxu0 0.0
  %188 = vmatprep.subr.mxu0 0.0
  %189 = vmatpush1.msra.mxu0 0.0
  %190 = vmatprep.subr.mxu0 0.0
  %191 = vmatpush1.msra.mxu0 0.0
  %192 = vmatprep.subr.mxu0 0.0
  %193 = vmatpush1.msra.mxu0 0.0
  %194 = vmatprep.subr.mxu0 0.0
  %195 = vmatpush1.msra.mxu0 0.0
  %196 = vmatprep.subr.mxu0 0.0
  %197 = vmatpush1.msra.mxu0 0.0
  %198 = vmatprep.subr.mxu0 0.0
  %199 = vmatpush1.msra.mxu0 0.0
  %200 = vmatprep.subr.mxu0 0.0
  %201 = vmatpush1.msra.mxu0 0.0
  %202 = vmatprep.subr.mxu0 0.0
  %203 = vmatpush1.msra.mxu0 0.0
  %204 = vmatprep.subr.mxu0 0.0
  %205 = vmatpush1.msra.mxu0 0.0
  %206 = vmatprep.mubr.f32.mxu0 0.0
  %207 = vmatmul.mubr.f32.gmra.mrb[0].mxu0 %v137
  %v208 = vpop.f32.mrb[0].mxu0
  %v209 = vadd.f32 0.0, %v208
  %v210 = vpop.f32.mrb[0].mxu0
  %v211 = vadd.f32 0.0, %v210
  %212 = vmatprep.mubr.f32.mxu0 0.0
  %213 = vmatmul.mubr.f32.gmra.mrb[0].mxu0 %v140
  %v214 = vpop.f32.mrb[0].mxu0
  %v215 = vadd.f32 0.0, %v214
  %v216 = vpop.f32.mrb[0].mxu0
  %v217 = vadd.f32 0.0, %v216
  %218 = vdwg.mxu0
  %v219 = vadd.f32 %v116, %v209
  %v220 = vadd.f32 %v118, %v211
  %v221 = vadd.f32 %v122, %v215
  %v222 = vadd.f32 %v124, %v217
  %223 = vst [vmem:[%s5] sm:$0xff] %v219
  %224 = vst [vmem:[%s5 + $0x8] sm:$0xff] %v220
  %225 = vst [vmem:[%s5 + $0x10] sm:$0xff] %v221
  %226 = vst [vmem:[%s5 + $0x18] sm:$0xff] %v222
  // Predicated region
  $region22: #{rnn_classifier_forward.6} parent=0 // pred_check
    _
  $region23: #{rnn_classifier_forward.6} parent=0 // pred_check_branch
    %228 = sbr.rel (0) target = $region25
  $region24: #{rnn_classifier_forward.6} parent=0 // pred_region
    _
  $region25: #{rnn_classifier_forward.6} parent=0 // pred_fallthru
    _
  // Predicated region
  $region26: #{rnn_classifier_forward.6} parent=0 // pred_check
    _
  $region27: #{rnn_classifier_forward.6} parent=0 // pred_check_branch
    %230 = sbr.rel (0) target = $region29
  $region28: #{rnn_classifier_forward.6} parent=0 // pred_region
    _
  $region29: #{rnn_classifier_forward.6} parent=0 // pred_fallthru
    _

// kernel: rnn_classifier_forward.4
$region0: #{rnn_classifier_forward.4}
  #allocation0 [shape = 'u32[]', space=smem, size = 0x4, offset = 0x4, fixed_abs, tag = 'smem constant byte address 0x4 - core index']
  #allocation1 [shape = 'u32[144,128]{1,0:T(1,128)}', space=vmem, size = 0x12000, scoped, tag = 'internal scratch']
  %s0 = inlined_call_operand.vmem [shape: f32[16,32], index: 0, kind: input, shape index: {}]
  %s1 = inlined_call_operand.hbm [shape: f32[32,256], index: 1, kind: input, shape index: {}]
  %s2 = inlined_call_operand.vmem [shape: f32[1,256], index: 2, kind: input, shape index: {}]
  %s3 = inlined_call_operand.vmem [shape: f32[16,256], index: 3, kind: output, shape index: {}]
  %s4 = sld [smem:[#allocation0]]
  $region26: #{rnn_classifier_forward.4} parent=0
    _
  %s6 = ssub.s32 1, %s4
  %s7 = scalar_select 0, %s6, %s4
  $region1: #{rnn_classifier_forward.4} parent=0
    #allocation2 [shape = 'u8[32768]{0}', space=vmem, size = 0x8000, scoped, tag = 'input window, operand 1, single buffered']
    #allocation3 [shape = 's32[1]{0}', space=sflag, size = 0x4, scoped, tag = 'scoped memory for rnn_classifier_forward.4']
    %8 = vsyncpa [#allocation3], 0
    // Predicated region
    $region2: #{rnn_classifier_forward.4} parent=1 // pred_check
      _
    $region3: #{rnn_classifier_forward.4} parent=1 // pred_check_branch
      %10 = sbr.rel (0) target = $region5
    $region4: #{rnn_classifier_forward.4} parent=1 // pred_region
      _
    $region5: #{rnn_classifier_forward.4} parent=1 // pred_fallthru
      _
    // Predicated region
    $region6: #{rnn_classifier_forward.4} parent=1 // pred_check
      _
    $region7: #{rnn_classifier_forward.4} parent=1 // pred_check_branch
      %12 = sbr.rel (0) target = $region9
    $region8: #{rnn_classifier_forward.4} parent=1 // pred_region
      %s14 = ssub.s32 1024, 1024
      %15 = vsyncadd [#allocation3], %s14
      %s16 = sshll.u32 [#allocation2], 4
      %s17 = int_to_ptr.vmem [resolvable:$true] %s16
      %22 = dma.hbm_to_vmem [thread:$0]  %s1, 1024, %s17, [#allocation3], 256, 256, 16
    $region9: #{rnn_classifier_forward.4} parent=1 // pred_fallthru
      _
    // Predicated region
    $region10: #{rnn_classifier_forward.4} parent=1 // pred_check
      _
    $region11: #{rnn_classifier_forward.4} parent=1 // pred_check_branch
      %24 = sbr.rel (0) target = $region13
    $region12: #{rnn_classifier_forward.4} parent=1 // pred_region
      _
    $region13: #{rnn_classifier_forward.4} parent=1 // pred_fallthru
      _
    // Predicated region
    $region14: #{rnn_classifier_forward.4} parent=1 // pred_check
      _
    $region15: #{rnn_classifier_forward.4} parent=1 // pred_check_branch
      %26 = sbr.rel (0) target = $region17
    $region16: #{rnn_classifier_forward.4} parent=1 // pred_region
      %27 = dma.done [#allocation3], 1024
    $region17: #{rnn_classifier_forward.4} parent=1 // pred_fallthru
      _
    %v28 = vld [vmem:[%s0] sm:$0xff]
    %v29 = vld [vmem:[%s0 + $0x8] sm:$0xff]
    %v30 = vld [vmem:[#allocation2] sm:$0xff]
    %v31 = vld [vmem:[#allocation2 + $0x8] sm:$0xff]
    %v32 = vld [vmem:[#allocation2 + $0x10] sm:$0xff]
    %v33 = vld [vmem:[#allocation2 + $0x18] sm:$0xff]
    %v34 = vld [vmem:[#allocation2 + $0x20] sm:$0xff]
    %v35 = vld [vmem:[#allocation2 + $0x28] sm:$0xff]
    %v36 = vld [vmem:[#allocation2 + $0x30] sm:$0xff]
    %v37 = vld [vmem:[#allocation2 + $0x38] sm:$0xff]
    %v38 = vld [vmem:[%s2] sm:$0x3]
    %v40 = vlaneseq
    %v41 = vshrl.u32 %v40, 7
    %v42 = vsub.s32 0, %v41
    %v43 = vrot.slane %v38, %v42
    %v44 = vlaneseq
    %v45 = vshrl.u32 %v44, 7
    %v46 = vsub.s32 1, %v45
    %v47 = vrot.slane %v38, %v46
    %vm50 = vcmask 261120
    %v52 = vsel %vm50, %v28, 0
    %v55 = vsel %vm50, %v29, 0
    %57 = vmatprep.subr.mxu0 %v31
    %58 = vmatpush1.msra.mxu0 %v30
    %59 = vmatprep.subr.mxu0 %v33
    %60 = vmatpush1.msra.mxu0 %v32
    %61 = vmatprep.subr.mxu0 %v35
    %62 = vmatpush1.msra.mxu0 %v34
    %63 = vmatprep.subr.mxu0 %v37
    %64 = vmatpush1.msra.mxu0 %v36
    %65 = vmatprep.subr.mxu0 0.0
    %66 = vmatpush1.msra.mxu0 0.0
    %67 = vmatprep.subr.mxu0 0.0
    %68 = vmatpush1.msra.mxu0 0.0
    %69 = vmatprep.subr.mxu0 0.0
    %70 = vmatpush1.msra.mxu0 0.0
    %71 = vmatprep.subr.mxu0 0.0
    %72 = vmatpush1.msra.mxu0 0.0
    %73 = vmatprep.subr.mxu0 0.0
    %74 = vmatpush1.msra.mxu0 0.0
    %75 = vmatprep.subr.mxu0 0.0
    %76 = vmatpush1.msra.mxu0 0.0
    %77 = vmatprep.subr.mxu0 0.0
    %78 = vmatpush1.msra.mxu0 0.0
    %79 = vmatprep.subr.mxu0 0.0
    %80 = vmatpush1.msra.mxu0 0.0
    %81 = vmatprep.subr.mxu0 0.0
    %82 = vmatpush1.msra.mxu0 0.0
    %83 = vmatprep.subr.mxu0 0.0
    %84 = vmatpush1.msra.mxu0 0.0
    %85 = vmatprep.subr.mxu0 0.0
    %86 = vmatpush1.msra.mxu0 0.0
    %87 = vmatprep.subr.mxu0 0.0
    %88 = vmatpush1.msra.mxu0 0.0
    %89 = vmatprep.subr.mxu0 0.0
    %90 = vmatpush1.msra.mxu0 0.0
    %91 = vmatprep.subr.mxu0 0.0
    %92 = vmatpush1.msra.mxu0 0.0
    %93 = vmatprep.subr.mxu0 0.0
    %94 = vmatpush1.msra.mxu0 0.0
    %95 = vmatprep.subr.mxu0 0.0
    %96 = vmatpush1.msra.mxu0 0.0
    %97 = vmatprep.subr.mxu0 0.0
    %98 = vmatpush1.msra.mxu0 0.0
    %99 = vmatprep.subr.mxu0 0.0
    %100 = vmatpush1.msra.mxu0 0.0
    %101 = vmatprep.subr.mxu0 0.0
    %102 = vmatpush1.msra.mxu0 0.0
    %103 = vmatprep.subr.mxu0 0.0
    %104 = vmatpush1.msra.mxu0 0.0
    %105 = vmatprep.subr.mxu0 0.0
    %106 = vmatpush1.msra.mxu0 0.0
    %107 = vmatprep.subr.mxu0 0.0
    %108 = vmatpush1.msra.mxu0 0.0
    %109 = vmatprep.subr.mxu0 0.0
    %110 = vmatpush1.msra.mxu0 0.0
    %111 = vmatprep.subr.mxu0 0.0
    %112 = vmatpush1.msra.mxu0 0.0
    %113 = vmatprep.subr.mxu0 0.0
    %114 = vmatpush1.msra.mxu0 0.0
    %115 = vmatprep.subr.mxu0 0.0
    %116 = vmatpush1.msra.mxu0 0.0
    %117 = vmatprep.subr.mxu0 0.0
    %118 = vmatpush1.msra.mxu0 0.0
    %119 = vmatprep.subr.mxu0 0.0
    %120 = vmatpush1.msra.mxu0 0.0
    %121 = vmatprep.mubr.f32.mxu0 0.0
    %122 = vmatmul.mubr.f32.gmra.mrb[0].mxu0 %v52
    %v123 = vpop.f32.mrb[0].mxu0
    %v124 = vadd.f32 %v43, %v123
    %v125 = vpop.f32.mrb[0].mxu0
    %v126 = vadd.f32 %v47, %v125
    %127 = vmatprep.mubr.f32.mxu0 0.0
    %128 = vmatmul.mubr.f32.gmra.mrb[0].mxu0 %v55
    %v129 = vpop.f32.mrb[0].mxu0
    %v130 = vadd.f32 %v43, %v129
    %v131 = vpop.f32.mrb[0].mxu0
    %v132 = vadd.f32 %v47, %v131
    %133 = vdwg.mxu0
    %134 = vst [vmem:[%s3] sm:$0xff] %v124
    %135 = vst [vmem:[%s3 + $0x8] sm:$0xff] %v126
    %136 = vst [vmem:[%s3 + $0x10] sm:$0xff] %v130
    %137 = vst [vmem:[%s3 + $0x18] sm:$0xff] %v132
    // Predicated region
    $region18: #{rnn_classifier_forward.4} parent=1 // pred_check
      _
    $region19: #{rnn_classifier_forward.4} parent=1 // pred_check_branch
      %139 = sbr.rel (0) target = $region21
    $region20: #{rnn_classifier_forward.4} parent=1 // pred_region
      _
    $region21: #{rnn_classifier_forward.4} parent=1 // pred_fallthru
      _
    // Predicated region
    $region22: #{rnn_classifier_forward.4} parent=1 // pred_check
      _
    $region23: #{rnn_classifier_forward.4} parent=1 // pred_check_branch
      %141 = sbr.rel (0) target = $region25
    $region24: #{rnn_classifier_forward.4} parent=1 // pred_region
      _
    $region25: #{rnn_classifier_forward.4} parent=1 // pred_fallthru
      _
    %142 = vsyncpa [#allocation3], 1

// kernel: rnn_classifier_forward.5
$region0: #{rnn_classifier_forward.5}
  #allocation0 [shape = 'u32[]', space=smem, size = 0x4, offset = 0x4, fixed_abs, tag = 'smem constant byte address 0x4 - core index']
  #allocation1 [shape = 'u32[144,128]{1,0:T(1,128)}', space=vmem, size = 0x12000, scoped, tag = 'internal scratch']
  %s0 = inlined_call_operand.vmem [shape: f32[8,2,256], index: 0, kind: input, shape index: {}]
  %s1 = inlined_call_operand.vmem [shape: f32[32,128], index: 1, kind: input, shape index: {}]
  %s2 = inlined_call_operand.vmem [shape: f32[32,128], index: 2, kind: input, shape index: {}]
  %s3 = inlined_call_operand.vmem [shape: f32[2,8,2,32], index: 3, kind: output, shape index: {}]
  %s4 = sld [smem:[#allocation0]]
  $region22: #{rnn_classifier_forward.5} parent=0
    _
  %s6 = ssub.s32 1, %s4
  %s7 = scalar_select 0, %s6, %s4
  // Predicated region
  $region2: #{rnn_classifier_forward.5} parent=0 // pred_check
    _
  $region3: #{rnn_classifier_forward.5} parent=0 // pred_check_branch
    %9 = sbr.rel (0) target = $region5
  $region4: #{rnn_classifier_forward.5} parent=0 // pred_region
    _
  $region5: #{rnn_classifier_forward.5} parent=0 // pred_fallthru
    _
  // Predicated region
  $region6: #{rnn_classifier_forward.5} parent=0 // pred_check
    _
  $region7: #{rnn_classifier_forward.5} parent=0 // pred_check_branch
    %11 = sbr.rel (0) target = $region9
  $region8: #{rnn_classifier_forward.5} parent=0 // pred_region
    _
  $region9: #{rnn_classifier_forward.5} parent=0 // pred_fallthru
    _
  // Predicated region
  $region10: #{rnn_classifier_forward.5} parent=0 // pred_check
    _
  $region11: #{rnn_classifier_forward.5} parent=0 // pred_check_branch
    %13 = sbr.rel (0) target = $region13
  $region12: #{rnn_classifier_forward.5} parent=0 // pred_region
    _
  $region13: #{rnn_classifier_forward.5} parent=0 // pred_fallthru
    _
  %v14 = vld [vmem:[%s1] sm:$0xff]
  %v15 = vld [vmem:[%s1 + $0x8] sm:$0xff]
  %v16 = vld [vmem:[%s1 + $0x10] sm:$0xff]
  %v17 = vld [vmem:[%s1 + $0x18] sm:$0xff]
  %v18 = vld [vmem:[%s2] sm:$0xff]
  %v19 = vld [vmem:[%s2 + $0x8] sm:$0xff]
  %v20 = vld [vmem:[%s2 + $0x10] sm:$0xff]
  %v21 = vld [vmem:[%s2 + $0x18] sm:$0xff]
  %v22 = vld [vmem:[%s0] sm:$0xf]
  %s23 = scalar_lea.vmem %s0, 28
  %v24 = vld [vmem:[%s23] sm:$0xf]
  %vm25 = vcmask 261120
  %v27 = vsel %vm25, 0.0, 0
  %29 = vmatprep.subr.mxu0 0.0
  %30 = vmatpush1.msra.mxu0 %v14
  %31 = vmatprep.subr.mxu0 0.0
  %32 = vmatpush1.msra.mxu0 %v15
  %33 = vmatprep.subr.mxu0 0.0
  %34 = vmatpush1.msra.mxu0 %v16
  %35 = vmatprep.subr.mxu0 0.0
  %36 = vmatpush1.msra.mxu0 %v17
  %37 = vmatprep.subr.mxu0 0.0
  %38 = vmatpush1.msra.mxu0 0.0
  %39 = vmatprep.subr.mxu0 0.0
  %40 = vmatpush1.msra.mxu0 0.0
  %41 = vmatprep.subr.mxu0 0.0
  %42 = vmatpush1.msra.mxu0 0.0
  %43 = vmatprep.subr.mxu0 0.0
  %44 = vmatpush1.msra.mxu0 0.0
  %45 = vmatprep.subr.mxu0 0.0
  %46 = vmatpush1.msra.mxu0 0.0
  %47 = vmatprep.subr.mxu0 0.0
  %48 = vmatpush1.msra.mxu0 0.0
  %49 = vmatprep.subr.mxu0 0.0
  %50 = vmatpush1.msra.mxu0 0.0
  %51 = vmatprep.subr.mxu0 0.0
  %52 = vmatpush1.msra.mxu0 0.0
  %53 = vmatprep.subr.mxu0 0.0
  %54 = vmatpush1.msra.mxu0 0.0
  %55 = vmatprep.subr.mxu0 0.0
  %56 = vmatpush1.msra.mxu0 0.0
  %57 = vmatprep.subr.mxu0 0.0
  %58 = vmatpush1.msra.mxu0 0.0
  %59 = vmatprep.subr.mxu0 0.0
  %60 = vmatpush1.msra.mxu0 0.0
  %61 = vmatprep.subr.mxu0 0.0
  %62 = vmatpush1.msra.mxu0 0.0
  %63 = vmatprep.subr.mxu0 0.0
  %64 = vmatpush1.msra.mxu0 0.0
  %65 = vmatprep.subr.mxu0 0.0
  %66 = vmatpush1.msra.mxu0 0.0
  %67 = vmatprep.subr.mxu0 0.0
  %68 = vmatpush1.msra.mxu0 0.0
  %69 = vmatprep.subr.mxu0 0.0
  %70 = vmatpush1.msra.mxu0 0.0
  %71 = vmatprep.subr.mxu0 0.0
  %72 = vmatpush1.msra.mxu0 0.0
  %73 = vmatprep.subr.mxu0 0.0
  %74 = vmatpush1.msra.mxu0 0.0
  %75 = vmatprep.subr.mxu0 0.0
  %76 = vmatpush1.msra.mxu0 0.0
  %77 = vmatprep.subr.mxu0 0.0
  %78 = vmatpush1.msra.mxu0 0.0
  %79 = vmatprep.subr.mxu0 0.0
  %80 = vmatpush1.msra.mxu0 0.0
  %81 = vmatprep.subr.mxu0 0.0
  %82 = vmatpush1.msra.mxu0 0.0
  %83 = vmatprep.subr.mxu0 0.0
  %84 = vmatpush1.msra.mxu0 0.0
  %85 = vmatprep.subr.mxu0 0.0
  %86 = vmatpush1.msra.mxu0 0.0
  %87 = vmatprep.subr.mxu0 0.0
  %88 = vmatpush1.msra.mxu0 0.0
  %89 = vmatprep.subr.mxu0 0.0
  %90 = vmatpush1.msra.mxu0 0.0
  %91 = vmatprep.subr.mxu0 0.0
  %92 = vmatpush1.msra.mxu0 0.0
  %93 = vmatprep.mubr.f32.mxu0 0.0
  %94 = vmatmul.mubr.f32.gmra.mrb[0].mxu0 %v27
  %v95 = vpop.f32.mrb[0].mxu0
  %v96 = vadd.f32 0.0, %v95
  %v97 = vpop.f32.mrb[0].mxu0
  %98 = vdwg.mxu0
  %v99 = vadd.f32 %v22, %v96
  %100 = vmatprep.subr.mxu0 0.0
  %101 = vmatpush1.msra.mxu0 %v18
  %102 = vmatprep.subr.mxu0 0.0
  %103 = vmatpush1.msra.mxu0 %v19
  %104 = vmatprep.subr.mxu0 0.0
  %105 = vmatpush1.msra.mxu0 %v20
  %106 = vmatprep.subr.mxu0 0.0
  %107 = vmatpush1.msra.mxu0 %v21
  %108 = vmatprep.subr.mxu0 0.0
  %109 = vmatpush1.msra.mxu0 0.0
  %110 = vmatprep.subr.mxu0 0.0
  %111 = vmatpush1.msra.mxu0 0.0
  %112 = vmatprep.subr.mxu0 0.0
  %113 = vmatpush1.msra.mxu0 0.0
  %114 = vmatprep.subr.mxu0 0.0
  %115 = vmatpush1.msra.mxu0 0.0
  %116 = vmatprep.subr.mxu0 0.0
  %117 = vmatpush1.msra.mxu0 0.0
  %118 = vmatprep.subr.mxu0 0.0
  %119 = vmatpush1.msra.mxu0 0.0
  %120 = vmatprep.subr.mxu0 0.0
  %121 = vmatpush1.msra.mxu0 0.0
  %122 = vmatprep.subr.mxu0 0.0
  %123 = vmatpush1.msra.mxu0 0.0
  %124 = vmatprep.subr.mxu0 0.0
  %125 = vmatpush1.msra.mxu0 0.0
  %126 = vmatprep.subr.mxu0 0.0
  %127 = vmatpush1.msra.mxu0 0.0
  %128 = vmatprep.subr.mxu0 0.0
  %129 = vmatpush1.msra.mxu0 0.0
  %130 = vmatprep.subr.mxu0 0.0
  %131 = vmatpush1.msra.mxu0 0.0
  %132 = vmatprep.subr.mxu0 0.0
  %133 = vmatpush1.msra.mxu0 0.0
  %134 = vmatprep.subr.mxu0 0.0
  %135 = vmatpush1.msra.mxu0 0.0
  %136 = vmatprep.subr.mxu0 0.0
  %137 = vmatpush1.msra.mxu0 0.0
  %138 = vmatprep.subr.mxu0 0.0
  %139 = vmatpush1.msra.mxu0 0.0
  %140 = vmatprep.subr.mxu0 0.0
  %141 = vmatpush1.msra.mxu0 0.0
  %142 = vmatprep.subr.mxu0 0.0
  %143 = vmatpush1.msra.mxu0 0.0
  %144 = vmatprep.subr.mxu0 0.0
  %145 = vmatpush1.msra.mxu0 0.0
  %146 = vmatprep.subr.mxu0 0.0
  %147 = vmatpush1.msra.mxu0 0.0
  %148 = vmatprep.subr.mxu0 0.0
  %149 = vmatpush1.msra.mxu0 0.0
  %150 = vmatprep.subr.mxu0 0.0
  %151 = vmatpush1.msra.mxu0 0.0
  %152 = vmatprep.subr.mxu0 0.0
  %153 = vmatpush1.msra.mxu0 0.0
  %154 = vmatprep.subr.mxu0 0.0
  %155 = vmatpush1.msra.mxu0 0.0
  %156 = vmatprep.subr.mxu0 0.0
  %157 = vmatpush1.msra.mxu0 0.0
  %158 = vmatprep.subr.mxu0 0.0
  %159 = vmatpush1.msra.mxu0 0.0
  %160 = vmatprep.subr.mxu0 0.0
  %161 = vmatpush1.msra.mxu0 0.0
  %162 = vmatprep.subr.mxu0 0.0
  %163 = vmatpush1.msra.mxu0 0.0
  %164 = vmatprep.mubr.f32.mxu0 0.0
  %165 = vmatmul.mubr.f32.gmra.mrb[0].mxu0 %v27
  %v166 = vpop.f32.mrb[0].mxu0
  %v167 = vadd.f32 0.0, %v166
  %v168 = vpop.f32.mrb[0].mxu0
  %169 = vdwg.mxu0
  %v171 = vrot.slane %v24, 2
  %v173 = vadd.f32 %v171, %v167
  %v174 = vxor.u32 %v99, 2147483648
  %v175 = vmul.f32 %v174, 1.442695
  %v176 = vpow.pop %v175
  %v177 = vadd.f32 %v176, 1.0
  %v178 = vrcp.pop %v177
  %v179 = vmul.f32 1.0, %v178
  %v180 = vtanh.pop %v99
  %v181 = vmul.f32 %v179, 0.0
  %183 = vrot.lane.b32.xlu0 %v180, 64
  %v184 = vpop.permute.xlu0 %183
  %v186 = vmul.f32 %v179, %v184
  %188 = vrot.lane.b32.xlu0 %v186, 32
  %v189 = vpop.permute.xlu0 %188
  %v191 = vadd.f32 %v181, %v189
  %v192 = vtanh.pop %v191
  %194 = vrot.lane.b32.xlu0 %v192, 64
  %v195 = vpop.permute.xlu0 %194
  %v197 = vmul.f32 %v179, %v195
  %v198 = vxor.u32 %v173, 2147483648
  %v199 = vmul.f32 %v198, 1.442695
  %v200 = vpow.pop %v199
  %v201 = vadd.f32 %v200, 1.0
  %v202 = vrcp.pop %v201
  %v203 = vmul.f32 1.0, %v202
  %v204 = vtanh.pop %v173
  %v205 = vmul.f32 %v203, 0.0
  %207 = vrot.lane.b32.xlu0 %v204, 64
  %v208 = vpop.permute.xlu0 %207
  %v210 = vmul.f32 %v203, %v208
  %212 = vrot.lane.b32.xlu0 %v210, 32
  %v213 = vpop.permute.xlu0 %212
  %v215 = vadd.f32 %v205, %v213
  %v216 = vtanh.pop %v215
  %218 = vrot.lane.b32.xlu0 %v216, 64
  %v219 = vpop.permute.xlu0 %218
  %v221 = vmul.f32 %v203, %v219
  %v224 = vunpack.c.l.s4 1983009808
  %v225 = vunpack.c.0.s8 %v224
  %v226 = vlaneseq
  %v227 = vshrl.u32 %v226, 7
  %v228 = vsub.s32 %v225, %v227
  %v229 = vrot.slane %v197, %v228
  %230 = vrot.lane.b32.xlu0 %v229, 32
  %v231 = vpop.permute.xlu0 %230
  %vm233 = vcmask 254976
  %234 = vst.msk [vmem:[%s3] sm:$0x3] %vm233, %v231
  %v237 = vunpack.c.l.s4 1983009808
  %v238 = vunpack.c.0.s8 %v237
  %v239 = vlaneseq
  %v240 = vshrl.u32 %v239, 7
  %v241 = vsub.s32 %v238, %v240
  %v242 = vrot.slane %v221, %v241
  %243 = vrot.lane.b32.xlu0 %v242, 32
  %v244 = vpop.permute.xlu0 %243
  %s246 = scalar_lea.vmem %s3, 30
  %247 = vst.msk [vmem:[%s246] sm:$0x3] %vm233, %v244
  %s248 = scalar_lea.vmem %s0, 4
  %v249 = vld [vmem:[%s248] sm:$0xf]
  %s250 = scalar_lea.vmem %s0, 24
  %v251 = vld [vmem:[%s250] sm:$0xf]
  %v252 = vsel %vm25, %v231, 0
  %254 = vmatprep.subr.mxu0 0.0
  %255 = vmatpush1.msra.mxu0 %v14
  %256 = vmatprep.subr.mxu0 0.0
  %257 = vmatpush1.msra.mxu0 %v15
  %258 = vmatprep.subr.mxu0 0.0
  %259 = vmatpush1.msra.mxu0 %v16
  %260 = vmatprep.subr.mxu0 0.0
  %261 = vmatpush1.msra.mxu0 %v17
  %262 = vmatprep.subr.mxu0 0.0
  %263 = vmatpush1.msra.mxu0 0.0
  %264 = vmatprep.subr.mxu0 0.0
  %265 = vmatpush1.msra.mxu0 0.0
  %266 = vmatprep.subr.mxu0 0.0
  %267 = vmatpush1.msra.mxu0 0.0
  %268 = vmatprep.subr.mxu0 0.0
  %269 = vmatpush1.msra.mxu0 0.0
  %270 = vmatprep.subr.mxu0 0.0
  %271 = vmatpush1.msra.mxu0 0.0
  %272 = vmatprep.subr.mxu0 0.0
  %273 = vmatpush1.msra.mxu0 0.0
  %274 = vmatprep.subr.mxu0 0.0
  %275 = vmatpush1.msra.mxu0 0.0
  %276 = vmatprep.subr.mxu0 0.0
  %277 = vmatpush1.msra.mxu0 0.0
  %278 = vmatprep.subr.mxu0 0.0
  %279 = vmatpush1.msra.mxu0 0.0
  %280 = vmatprep.subr.mxu0 0.0
  %281 = vmatpush1.msra.mxu0 0.0
  %282 = vmatprep.subr.mxu0 0.0
  %283 = vmatpush1.msra.mxu0 0.0
  %284 = vmatprep.subr.mxu0 0.0
  %285 = vmatpush1.msra.mxu0 0.0
  %286 = vmatprep.subr.mxu0 0.0
  %287 = vmatpush1.msra.mxu0 0.0
  %288 = vmatprep.subr.mxu0 0.0
  %289 = vmatpush1.msra.mxu0 0.0
  %290 = vmatprep.subr.mxu0 0.0
  %291 = vmatpush1.msra.mxu0 0.0
  %292 = vmatprep.subr.mxu0 0.0
  %293 = vmatpush1.msra.mxu0 0.0
  %294 = vmatprep.subr.mxu0 0.0
  %295 = vmatpush1.msra.mxu0 0.0
  %296 = vmatprep.subr.mxu0 0.0
  %297 = vmatpush1.msra.mxu0 0.0
  %298 = vmatprep.subr.mxu0 0.0
  %299 = vmatpush1.msra.mxu0 0.0
  %300 = vmatprep.subr.mxu0 0.0
  %301 = vmatpush1.msra.mxu0 0.0
  %302 = vmatprep.subr.mxu0 0.0
  %303 = vmatpush1.msra.mxu0 0.0
  %304 = vmatprep.subr.mxu0 0.0
  %305 = vmatpush1.msra.mxu0 0.0
  %306 = vmatprep.subr.mxu0 0.0
  %307 = vmatpush1.msra.mxu0 0.0
  %308 = vmatprep.subr.mxu0 0.0
  %309 = vmatpush1.msra.mxu0 0.0
  %310 = vmatprep.subr.mxu0 0.0
  %311 = vmatpush1.msra.mxu0 0.0
  %312 = vmatprep.subr.mxu0 0.0
  %313 = vmatpush1.msra.mxu0 0.0
  %314 = vmatprep.subr.mxu0 0.0
  %315 = vmatpush1.msra.mxu0 0.0
  %316 = vmatprep.subr.mxu0 0.0
  %317 = vmatpush1.msra.mxu0 0.0
  %318 = vmatprep.mubr.f32.mxu0 0.0
  %319 = vmatmul.mubr.f32.gmra.mrb[0].mxu0 %v252
  %v320 = vpop.f32.mrb[0].mxu0
  %v321 = vadd.f32 0.0, %v320
  %v322 = vpop.f32.mrb[0].mxu0
  %323 = vdwg.mxu0
  %v324 = vadd.f32 %v249, %v321
  %v325 = vsel %vm25, %v244, 0
  %327 = vmatprep.subr.mxu0 0.0
  %328 = vmatpush1.msra.mxu0 %v18
  %329 = vmatprep.subr.mxu0 0.0
  %330 = vmatpush1.msra.mxu0 %v19
  %331 = vmatprep.subr.mxu0 0.0
  %332 = vmatpush1.msra.mxu0 %v20
  %333 = vmatprep.subr.mxu0 0.0
  %334 = vmatpush1.msra.mxu0 %v21
  %335 = vmatprep.subr.mxu0 0.0
  %336 = vmatpush1.msra.mxu0 0.0
  %337 = vmatprep.subr.mxu0 0.0
  %338 = vmatpush1.msra.mxu0 0.0
  %339 = vmatprep.subr.mxu0 0.0
  %340 = vmatpush1.msra.mxu0 0.0
  %341 = vmatprep.subr.mxu0 0.0
  %342 = vmatpush1.msra.mxu0 0.0
  %343 = vmatprep.subr.mxu0 0.0
  %344 = vmatpush1.msra.mxu0 0.0
  %345 = vmatprep.subr.mxu0 0.0
  %346 = vmatpush1.msra.mxu0 0.0
  %347 = vmatprep.subr.mxu0 0.0
  %348 = vmatpush1.msra.mxu0 0.0
  %349 = vmatprep.subr.mxu0 0.0
  %350 = vmatpush1.msra.mxu0 0.0
  %351 = vmatprep.subr.mxu0 0.0
  %352 = vmatpush1.msra.mxu0 0.0
  %353 = vmatprep.subr.mxu0 0.0
  %354 = vmatpush1.msra.mxu0 0.0
  %355 = vmatprep.subr.mxu0 0.0
  %356 = vmatpush1.msra.mxu0 0.0
  %357 = vmatprep.subr.mxu0 0.0
  %358 = vmatpush1.msra.mxu0 0.0
  %359 = vmatprep.subr.mxu0 0.0
  %360 = vmatpush1.msra.mxu0 0.0
  %361 = vmatprep.subr.mxu0 0.0
  %362 = vmatpush1.msra.mxu0 0.0
  %363 = vmatprep.subr.mxu0 0.0
  %364 = vmatpush1.msra.mxu0 0.0
  %365 = vmatprep.subr.mxu0 0.0
  %366 = vmatpush1.msra.mxu0 0.0
  %367 = vmatprep.subr.mxu0 0.0
  %368 = vmatpush1.msra.mxu0 0.0
  %369 = vmatprep.subr.mxu0 0.0
  %370 = vmatpush1.msra.mxu0 0.0
  %371 = vmatprep.subr.mxu0 0.0
  %372 = vmatpush1.msra.mxu0 0.0
  %373 = vmatprep.subr.mxu0 0.0
  %374 = vmatpush1.msra.mxu0 0.0
  %375 = vmatprep.subr.mxu0 0.0
  %376 = vmatpush1.msra.mxu0 0.0
  %377 = vmatprep.subr.mxu0 0.0
  %378 = vmatpush1.msra.mxu0 0.0
  %379 = vmatprep.subr.mxu0 0.0
  %380 = vmatpush1.msra.mxu0 0.0
  %381 = vmatprep.subr.mxu0 0.0
  %382 = vmatpush1.msra.mxu0 0.0
  %383 = vmatprep.subr.mxu0 0.0
  %384 = vmatpush1.msra.mxu0 0.0
  %385 = vmatprep.subr.mxu0 0.0
  %386 = vmatpush1.msra.mxu0 0.0
  %387 = vmatprep.subr.mxu0 0.0
  %388 = vmatpush1.msra.mxu0 0.0
  %389 = vmatprep.subr.mxu0 0.0
  %390 = vmatpush1.msra.mxu0 0.0
  %391 = vmatprep.mubr.f32.mxu0 0.0
  %392 = vmatmul.mubr.f32.gmra.mrb[0].mxu0 %v325
  %v393 = vpop.f32.mrb[0].mxu0
  %v394 = vadd.f32 0.0, %v393
  %v395 = vpop.f32.mrb[0].mxu0
  %396 = vdwg.mxu0
  %v398 = vrot.slane %v251, 2
  %v400 = vadd.f32 %v398, %v394
  %v401 = vxor.u32 %v324, 2147483648
  %v402 = vmul.f32 %v401, 1.442695
  %v403 = vpow.pop %v402
  %v404 = vadd.f32 %v403, 1.0
  %v405 = vrcp.pop %v404
  %v406 = vmul.f32 1.0, %v405
  %v407 = vtanh.pop %v324
  %v408 = vmul.f32 %v406, %v191
  %410 = vrot.lane.b32.xlu0 %v407, 64
  %v411 = vpop.permute.xlu0 %410
  %v413 = vmul.f32 %v406, %v411
  %415 = vrot.lane.b32.xlu0 %v413, 32
  %v416 = vpop.permute.xlu0 %415
  %v418 = vadd.f32 %v408, %v416
  %v419 = vtanh.pop %v418
  %421 = vrot.lane.b32.xlu0 %v419, 64
  %v422 = vpop.permute.xlu0 %421
  %v424 = vmul.f32 %v406, %v422
  %v425 = vxor.u32 %v400, 2147483648
  %v426 = vmul.f32 %v425, 1.442695
  %v427 = vpow.pop %v426
  %v428 = vadd.f32 %v427, 1.0
  %v429 = vrcp.pop %v428
  %v430 = vmul.f32 1.0, %v429
  %v431 = vtanh.pop %v400
  %v432 = vmul.f32 %v430, %v215
  %434 = vrot.lane.b32.xlu0 %v431, 64
  %v435 = vpop.permute.xlu0 %434
  %v437 = vmul.f32 %v430, %v435
  %439 = vrot.lane.b32.xlu0 %v437, 32
  %v440 = vpop.permute.xlu0 %439
  %v442 = vadd.f32 %v432, %v440
  %v443 = vtanh.pop %v442
  %445 = vrot.lane.b32.xlu0 %v443, 64
  %v446 = vpop.permute.xlu0 %445
  %v448 = vmul.f32 %v430, %v446
  %v451 = vunpack.c.l.s4 1983009808
  %v452 = vunpack.c.0.s8 %v451
  %v453 = vlaneseq
  %v454 = vshrl.u32 %v453, 7
  %v455 = vsub.s32 %v452, %v454
  %v456 = vrot.slane %v424, %v455
  %457 = vrot.lane.b32.xlu0 %v456, 32
  %v458 = vpop.permute.xlu0 %457
  %s460 = scalar_lea.vmem %s3, 2
  %461 = vst.msk [vmem:[%s460] sm:$0x3] %vm233, %v458
  %v464 = vunpack.c.l.s4 1983009808
  %v465 = vunpack.c.0.s8 %v464
  %v466 = vlaneseq
  %v467 = vshrl.u32 %v466, 7
  %v468 = vsub.s32 %v465, %v467
  %v469 = vrot.slane %v448, %v468
  %470 = vrot.lane.b32.xlu0 %v469, 32
  %v471 = vpop.permute.xlu0 %470
  %s473 = scalar_lea.vmem %s3, 28
  %474 = vst.msk [vmem:[%s473] sm:$0x3] %vm233, %v471
  %s475 = scalar_lea.vmem %s0, 8
  %v476 = vld [vmem:[%s475] sm:$0xf]
  %s477 = scalar_lea.vmem %s0, 20
  %v478 = vld [vmem:[%s477] sm:$0xf]
  %v479 = vsel %vm25, %v458, 0
  %481 = vmatprep.subr.mxu0 0.0
  %482 = vmatpush1.msra.mxu0 %v14
  %483 = vmatprep.subr.mxu0 0.0
  %484 = vmatpush1.msra.mxu0 %v15
  %485 = vmatprep.subr.mxu0 0.0
  %486 = vmatpush1.msra.mxu0 %v16
  %487 = vmatprep.subr.mxu0 0.0
  %488 = vmatpush1.msra.mxu0 %v17
  %489 = vmatprep.subr.mxu0 0.0
  %490 = vmatpush1.msra.mxu0 0.0
  %491 = vmatprep.subr.mxu0 0.0
  %492 = vmatpush1.msra.mxu0 0.0
  %493 = vmatprep.subr.mxu0 0.0
  %494 = vmatpush1.msra.mxu0 0.0
  %495 = vmatprep.subr.mxu0 0.0
  %496 = vmatpush1.msra.mxu0 0.0
  %497 = vmatprep.subr.mxu0 0.0
  %498 = vmatpush1.msra.mxu0 0.0
  %499 = vmatprep.subr.mxu0 0.0
  %500 = vmatpush1.msra.mxu0 0.0
  %501 = vmatprep.subr.mxu0 0.0
  %502 = vmatpush1.msra.mxu0 0.0
  %503 = vmatprep.subr.mxu0 0.0
  %504 = vmatpush1.msra.mxu0 0.0
  %505 = vmatprep.subr.mxu0 0.0
  %506 = vmatpush1.msra.mxu0 0.0
  %507 = vmatprep.subr.mxu0 0.0
  %508 = vmatpush1.msra.mxu0 0.0
  %509 = vmatprep.subr.mxu0 0.0
  %510 = vmatpush1.msra.mxu0 0.0
  %511 = vmatprep.subr.mxu0 0.0
  %512 = vmatpush1.msra.mxu0 0.0
  %513 = vmatprep.subr.mxu0 0.0
  %514 = vmatpush1.msra.mxu0 0.0
  %515 = vmatprep.subr.mxu0 0.0
  %516 = vmatpush1.msra.mxu0 0.0
  %517 = vmatprep.subr.mxu0 0.0
  %518 = vmatpush1.msra.mxu0 0.0
  %519 = vmatprep.subr.mxu0 0.0
  %520 = vmatpush1.msra.mxu0 0.0
  %521 = vmatprep.subr.mxu0 0.0
  %522 = vmatpush1.msra.mxu0 0.0
  %523 = vmatprep.subr.mxu0 0.0
  %524 = vmatpush1.msra.mxu0 0.0
  %525 = vmatprep.subr.mxu0 0.0
  %526 = vmatpush1.msra.mxu0 0.0
  %527 = vmatprep.subr.mxu0 0.0
  %528 = vmatpush1.msra.mxu0 0.0
  %529 = vmatprep.subr.mxu0 0.0
  %530 = vmatpush1.msra.mxu0 0.0
  %531 = vmatprep.subr.mxu0 0.0
  %532 = vmatpush1.msra.mxu0 0.0
  %533 = vmatprep.subr.mxu0 0.0
  %534 = vmatpush1.msra.mxu0 0.0
  %535 = vmatprep.subr.mxu0 0.0
  %536 = vmatpush1.msra.mxu0 0.0
  %537 = vmatprep.subr.mxu0 0.0
  %538 = vmatpush1.msra.mxu0 0.0
  %539 = vmatprep.subr.mxu0 0.0
  %540 = vmatpush1.msra.mxu0 0.0
  %541 = vmatprep.subr.mxu0 0.0
  %542 = vmatpush1.msra.mxu0 0.0
  %543 = vmatprep.subr.mxu0 0.0
  %544 = vmatpush1.msra.mxu0 0.0
  %545 = vmatprep.mubr.f32.mxu0 0.0
  %546 = vmatmul.mubr.f32.gmra.mrb[0].mxu0 %v479
  %v547 = vpop.f32.mrb[0].mxu0
  %v548 = vadd.f32 0.0, %v547
  %v549 = vpop.f32.mrb[0].mxu0
  %550 = vdwg.mxu0
  %v551 = vadd.f32 %v476, %v548
  %v552 = vsel %vm25, %v471, 0
  %554 = vmatprep.subr.mxu0 0.0
  %555 = vmatpush1.msra.mxu0 %v18
  %556 = vmatprep.subr.mxu0 0.0
  %557 = vmatpush1.msra.mxu0 %v19
  %558 = vmatprep.subr.mxu0 0.0
  %559 = vmatpush1.msra.mxu0 %v20
  %560 = vmatprep.subr.mxu0 0.0
  %561 = vmatpush1.msra.mxu0 %v21
  %562 = vmatprep.subr.mxu0 0.0
  %563 = vmatpush1.msra.mxu0 0.0
  %564 = vmatprep.subr.mxu0 0.0
  %565 = vmatpush1.msra.mxu0 0.0
  %566 = vmatprep.subr.mxu0 0.0
  %567 = vmatpush1.msra.mxu0 0.0
  %568 = vmatprep.subr.mxu0 0.0
  %569 = vmatpush1.msra.mxu0 0.0
  %570 = vmatprep.subr.mxu0 0.0
  %571 = vmatpush1.msra.mxu0 0.0
  %572 = vmatprep.subr.mxu0 0.0
  %573 = vmatpush1.msra.mxu0 0.0
  %574 = vmatprep.subr.mxu0 0.0
  %575 = vmatpush1.msra.mxu0 0.0
  %576 = vmatprep.subr.mxu0 0.0
  %577 = vmatpush1.msra.mxu0 0.0
  %578 = vmatprep.subr.mxu0 0.0
  %579 = vmatpush1.msra.mxu0 0.0
  %580 = vmatprep.subr.mxu0 0.0
  %581 = vmatpush1.msra.mxu0 0.0
  %582 = vmatprep.subr.mxu0 0.0
  %583 = vmatpush1.msra.mxu0 0.0
  %584 = vmatprep.subr.mxu0 0.0
  %585 = vmatpush1.msra.mxu0 0.0
  %586 = vmatprep.subr.mxu0 0.0
  %587 = vmatpush1.msra.mxu0 0.0
  %588 = vmatprep.subr.mxu0 0.0
  %589 = vmatpush1.msra.mxu0 0.0
  %590 = vmatprep.subr.mxu0 0.0
  %591 = vmatpush1.msra.mxu0 0.0
  %592 = vmatprep.subr.mxu0 0.0
  %593 = vmatpush1.msra.mxu0 0.0
  %594 = vmatprep.subr.mxu0 0.0
  %595 = vmatpush1.msra.mxu0 0.0
  %596 = vmatprep.subr.mxu0 0.0
  %597 = vmatpush1.msra.mxu0 0.0
  %598 = vmatprep.subr.mxu0 0.0
  %599 = vmatpush1.msra.mxu0 0.0
  %600 = vmatprep.subr.mxu0 0.0
  %601 = vmatpush1.msra.mxu0 0.0
  %602 = vmatprep.subr.mxu0 0.0
  %603 = vmatpush1.msra.mxu0 0.0
  %604 = vmatprep.subr.mxu0 0.0
  %605 = vmatpush1.msra.mxu0 0.0
  %606 = vmatprep.subr.mxu0 0.0
  %607 = vmatpush1.msra.mxu0 0.0
  %608 = vmatprep.subr.mxu0 0.0
  %609 = vmatpush1.msra.mxu0 0.0
  %610 = vmatprep.subr.mxu0 0.0
  %611 = vmatpush1.msra.mxu0 0.0
  %612 = vmatprep.subr.mxu0 0.0
  %613 = vmatpush1.msra.mxu0 0.0
  %614 = vmatprep.subr.mxu0 0.0
  %615 = vmatpush1.msra.mxu0 0.0
  %616 = vmatprep.subr.mxu0 0.0
  %617 = vmatpush1.msra.mxu0 0.0
  %618 = vmatprep.mubr.f32.mxu0 0.0
  %619 = vmatmul.mubr.f32.gmra.mrb[0].mxu0 %v552
  %v620 = vpop.f32.mrb[0].mxu0
  %v621 = vadd.f32 0.0, %v620
  %v622 = vpop.f32.mrb[0].mxu0
  %623 = vdwg.mxu0
  %v625 = vrot.slane %v478, 2
  %v627 = vadd.f32 %v625, %v621
  %v628 = vxor.u32 %v551, 2147483648
  %v629 = vmul.f32 %v628, 1.442695
  %v630 = vpow.pop %v629
  %v631 = vadd.f32 %v630, 1.0
  %v632 = vrcp.pop %v631
  %v633 = vmul.f32 1.0, %v632
  %v634 = vtanh.pop %v551
  %v635 = vmul.f32 %v633, %v418
  %637 = vrot.lane.b32.xlu0 %v634, 64
  %v638 = vpop.permute.xlu0 %637
  %v640 = vmul.f32 %v633, %v638
  %642 = vrot.lane.b32.xlu0 %v640, 32
  %v643 = vpop.permute.xlu0 %642
  %v645 = vadd.f32 %v635, %v643
  %v646 = vtanh.pop %v645
  %648 = vrot.lane.b32.xlu0 %v646, 64
  %v649 = vpop.permute.xlu0 %648
  %v651 = vmul.f32 %v633, %v649
  %v652 = vxor.u32 %v627, 2147483648
  %v653 = vmul.f32 %v652, 1.442695
  %v654 = vpow.pop %v653
  %v655 = vadd.f32 %v654, 1.0
  %v656 = vrcp.pop %v655
  %v657 = vmul.f32 1.0, %v656
  %v658 = vtanh.pop %v627
  %v659 = vmul.f32 %v657, %v442
  %661 = vrot.lane.b32.xlu0 %v658, 64
  %v662 = vpop.permute.xlu0 %661
  %v664 = vmul.f32 %v657, %v662
  %666 = vrot.lane.b32.xlu0 %v664, 32
  %v667 = vpop.permute.xlu0 %666
  %v669 = vadd.f32 %v659, %v667
  %v670 = vtanh.pop %v669
  %672 = vrot.lane.b32.xlu0 %v670, 64
  %v673 = vpop.permute.xlu0 %672
  %v675 = vmul.f32 %v657, %v673
  %v678 = vunpack.c.l.s4 1983009808
  %v679 = vunpack.c.0.s8 %v678
  %v680 = vlaneseq
  %v681 = vshrl.u32 %v680, 7
  %v682 = vsub.s32 %v679, %v681
  %v683 = vrot.slane %v651, %v682
  %684 = vrot.lane.b32.xlu0 %v683, 32
  %v685 = vpop.permute.xlu0 %684
  %s687 = scalar_lea.vmem %s3, 4
  %688 = vst.msk [vmem:[%s687] sm:$0x3] %vm233, %v685
  %v691 = vunpack.c.l.s4 1983009808
  %v692 = vunpack.c.0.s8 %v691
  %v693 = vlaneseq
  %v694 = vshrl.u32 %v693, 7
  %v695 = vsub.s32 %v692, %v694
  %v696 = vrot.slane %v675, %v695
  %697 = vrot.lane.b32.xlu0 %v696, 32
  %v698 = vpop.permute.xlu0 %697
  %s700 = scalar_lea.vmem %s3, 26
  %701 = vst.msk [vmem:[%s700] sm:$0x3] %vm233, %v698
  %s702 = scalar_lea.vmem %s0, 12
  %v703 = vld [vmem:[%s702] sm:$0xf]
  %s704 = scalar_lea.vmem %s0, 16
  %v705 = vld [vmem:[%s704] sm:$0xf]
  %v706 = vsel %vm25, %v685, 0
  %708 = vmatprep.subr.mxu0 0.0
  %709 = vmatpush1.msra.mxu0 %v14
  %710 = vmatprep.subr.mxu0 0.0
  %711 = vmatpush1.msra.mxu0 %v15
  %712 = vmatprep.subr.mxu0 0.0
  %713 = vmatpush1.msra.mxu0 %v16
  %714 = vmatprep.subr.mxu0 0.0
  %715 = vmatpush1.msra.mxu0 %v17
  %716 = vmatprep.subr.mxu0 0.0
  %717 = vmatpush1.msra.mxu0 0.0
  %718 = vmatprep.subr.mxu0 0.0
  %719 = vmatpush1.msra.mxu0 0.0
  %720 = vmatprep.subr.mxu0 0.0
  %721 = vmatpush1.msra.mxu0 0.0
  %722 = vmatprep.subr.mxu0 0.0
  %723 = vmatpush1.msra.mxu0 0.0
  %724 = vmatprep.subr.mxu0 0.0
  %725 = vmatpush1.msra.mxu0 0.0
  %726 = vmatprep.subr.mxu0 0.0
  %727 = vmatpush1.msra.mxu0 0.0
  %728 = vmatprep.subr.mxu0 0.0
  %729 = vmatpush1.msra.mxu0 0.0
  %730 = vmatprep.subr.mxu0 0.0
  %731 = vmatpush1.msra.mxu0 0.0
  %732 = vmatprep.subr.mxu0 0.0
  %733 = vmatpush1.msra.mxu0 0.0
  %734 = vmatprep.subr.mxu0 0.0
  %735 = vmatpush1.msra.mxu0 0.0
  %736 = vmatprep.subr.mxu0 0.0
  %737 = vmatpush1.msra.mxu0 0.0
  %738 = vmatprep.subr.mxu0 0.0
  %739 = vmatpush1.msra.mxu0 0.0
  %740 = vmatprep.subr.mxu0 0.0
  %741 = vmatpush1.msra.mxu0 0.0
  %742 = vmatprep.subr.mxu0 0.0
  %743 = vmatpush1.msra.mxu0 0.0
  %744 = vmatprep.subr.mxu0 0.0
  %745 = vmatpush1.msra.mxu0 0.0
  %746 = vmatprep.subr.mxu0 0.0
  %747 = vmatpush1.msra.mxu0 0.0
  %748 = vmatprep.subr.mxu0 0.0
  %749 = vmatpush1.msra.mxu0 0.0
  %750 = vmatprep.subr.mxu0 0.0
  %751 = vmatpush1.msra.mxu0 0.0
  %752 = vmatprep.subr.mxu0 0.0
  %753 = vmatpush1.msra.mxu0 0.0
  %754 = vmatprep.subr.mxu0 0.0
  %755 = vmatpush1.msra.mxu0 0.0
  %756 = vmatprep.subr.mxu0 0.0
  %757 = vmatpush1.msra.mxu0 0.0
  %758 = vmatprep.subr.mxu0 0.0
  %759 = vmatpush1.msra.mxu0 0.0
  %760 = vmatprep.subr.mxu0 0.0
  %761 = vmatpush1.msra.mxu0 0.0
  %762 = vmatprep.subr.mxu0 0.0
  %763 = vmatpush1.msra.mxu0 0.0
  %764 = vmatprep.subr.mxu0 0.0
  %765 = vmatpush1.msra.mxu0 0.0
  %766 = vmatprep.subr.mxu0 0.0
  %767 = vmatpush1.msra.mxu0 0.0
  %768 = vmatprep.subr.mxu0 0.0
  %769 = vmatpush1.msra.mxu0 0.0
  %770 = vmatprep.subr.mxu0 0.0
  %771 = vmatpush1.msra.mxu0 0.0
  %772 = vmatprep.mubr.f32.mxu0 0.0
  %773 = vmatmul.mubr.f32.gmra.mrb[0].mxu0 %v706
  %v774 = vpop.f32.mrb[0].mxu0
  %v775 = vadd.f32 0.0, %v774
  %v776 = vpop.f32.mrb[0].mxu0
  %777 = vdwg.mxu0
  %v778 = vadd.f32 %v703, %v775
  %v779 = vsel %vm25, %v698, 0
  %781 = vmatprep.subr.mxu0 0.0
  %782 = vmatpush1.msra.mxu0 %v18
  %783 = vmatprep.subr.mxu0 0.0
  %784 = vmatpush1.msra.mxu0 %v19
  %785 = vmatprep.subr.mxu0 0.0
  %786 = vmatpush1.msra.mxu0 %v20
  %787 = vmatprep.subr.mxu0 0.0
  %788 = vmatpush1.msra.mxu0 %v21
  %789 = vmatprep.subr.mxu0 0.0
  %790 = vmatpush1.msra.mxu0 0.0
  %791 = vmatprep.subr.mxu0 0.0
  %792 = vmatpush1.msra.mxu0 0.0
  %793 = vmatprep.subr.mxu0 0.0
  %794 = vmatpush1.msra.mxu0 0.0
  %795 = vmatprep.subr.mxu0 0.0
  %796 = vmatpush1.msra.mxu0 0.0
  %797 = vmatprep.subr.mxu0 0.0
  %798 = vmatpush1.msra.mxu0 0.0
  %799 = vmatprep.subr.mxu0 0.0
  %800 = vmatpush1.msra.mxu0 0.0
  %801 = vmatprep.subr.mxu0 0.0
  %802 = vmatpush1.msra.mxu0 0.0
  %803 = vmatprep.subr.mxu0 0.0
  %804 = vmatpush1.msra.mxu0 0.0
  %805 = vmatprep.subr.mxu0 0.0
  %806 = vmatpush1.msra.mxu0 0.0
  %807 = vmatprep.subr.mxu0 0.0
  %808 = vmatpush1.msra.mxu0 0.0
  %809 = vmatprep.subr.mxu0 0.0
  %810 = vmatpush1.msra.mxu0 0.0
  %811 = vmatprep.subr.mxu0 0.0
  %812 = vmatpush1.msra.mxu0 0.0
  %813 = vmatprep.subr.mxu0 0.0
  %814 = vmatpush1.msra.mxu0 0.0
  %815 = vmatprep.subr.mxu0 0.0
  %816 = vmatpush1.msra.mxu0 0.0
  %817 = vmatprep.subr.mxu0 0.0
  %818 = vmatpush1.msra.mxu0 0.0
  %819 = vmatprep.subr.mxu0 0.0
  %820 = vmatpush1.msra.mxu0 0.0
  %821 = vmatprep.subr.mxu0 0.0
  %822 = vmatpush1.msra.mxu0 0.0
  %823 = vmatprep.subr.mxu0 0.0
  %824 = vmatpush1.msra.mxu0 0.0
  %825 = vmatprep.subr.mxu0 0.0
  %826 = vmatpush1.msra.mxu0 0.0
  %827 = vmatprep.subr.mxu0 0.0
  %828 = vmatpush1.msra.mxu0 0.0
  %829 = vmatprep.subr.mxu0 0.0
  %830 = vmatpush1.msra.mxu0 0.0
  %831 = vmatprep.subr.mxu0 0.0
  %832 = vmatpush1.msra.mxu0 0.0
  %833 = vmatprep.subr.mxu0 0.0
  %834 = vmatpush1.msra.mxu0 0.0
  %835 = vmatprep.subr.mxu0 0.0
  %836 = vmatpush1.msra.mxu0 0.0
  %837 = vmatprep.subr.mxu0 0.0
  %838 = vmatpush1.msra.mxu0 0.0
  %839 = vmatprep.subr.mxu0 0.0
  %840 = vmatpush1.msra.mxu0 0.0
  %841 = vmatprep.subr.mxu0 0.0
  %842 = vmatpush1.msra.mxu0 0.0
  %843 = vmatprep.subr.mxu0 0.0
  %844 = vmatpush1.msra.mxu0 0.0
  %845 = vmatprep.mubr.f32.mxu0 0.0
  %846 = vmatmul.mubr.f32.gmra.mrb[0].mxu0 %v779
  %v847 = vpop.f32.mrb[0].mxu0
  %v848 = vadd.f32 0.0, %v847
  %v849 = vpop.f32.mrb[0].mxu0
  %850 = vdwg.mxu0
  %v852 = vrot.slane %v705, 2
  %v854 = vadd.f32 %v852, %v848
  %v855 = vxor.u32 %v778, 2147483648
  %v856 = vmul.f32 %v855, 1.442695
  %v857 = vpow.pop %v856
  %v858 = vadd.f32 %v857, 1.0
  %v859 = vrcp.pop %v858
  %v860 = vmul.f32 1.0, %v859
  %v861 = vtanh.pop %v778
  %v862 = vmul.f32 %v860, %v645
  %864 = vrot.lane.b32.xlu0 %v861, 64
  %v865 = vpop.permute.xlu0 %864
  %v867 = vmul.f32 %v860, %v865
  %869 = vrot.lane.b32.xlu0 %v867, 32
  %v870 = vpop.permute.xlu0 %869
  %v872 = vadd.f32 %v862, %v870
  %v873 = vtanh.pop %v872
  %875 = vrot.lane.b32.xlu0 %v873, 64
  %v876 = vpop.permute.xlu0 %875
  %v878 = vmul.f32 %v860, %v876
  %v879 = vxor.u32 %v854, 2147483648
  %v880 = vmul.f32 %v879, 1.442695
  %v881 = vpow.pop %v880
  %v882 = vadd.f32 %v881, 1.0
  %v883 = vrcp.pop %v882
  %v884 = vmul.f32 1.0, %v883
  %v885 = vtanh.pop %v854
  %v886 = vmul.f32 %v884, %v669
  %888 = vrot.lane.b32.xlu0 %v885, 64
  %v889 = vpop.permute.xlu0 %888
  %v891 = vmul.f32 %v884, %v889
  %893 = vrot.lane.b32.xlu0 %v891, 32
  %v894 = vpop.permute.xlu0 %893
  %v896 = vadd.f32 %v886, %v894
  %v897 = vtanh.pop %v896
  %899 = vrot.lane.b32.xlu0 %v897, 64
  %v900 = vpop.permute.xlu0 %899
  %v902 = vmul.f32 %v884, %v900
  %v905 = vunpack.c.l.s4 1983009808
  %v906 = vunpack.c.0.s8 %v905
  %v907 = vlaneseq
  %v908 = vshrl.u32 %v907, 7
  %v909 = vsub.s32 %v906, %v908
  %v910 = vrot.slane %v878, %v909
  %911 = vrot.lane.b32.xlu0 %v910, 32
  %v912 = vpop.permute.xlu0 %911
  %s914 = scalar_lea.vmem %s3, 6
  %915 = vst.msk [vmem:[%s914] sm:$0x3] %vm233, %v912
  %v918 = vunpack.c.l.s4 1983009808
  %v919 = vunpack.c.0.s8 %v918
  %v920 = vlaneseq
  %v921 = vshrl.u32 %v920, 7
  %v922 = vsub.s32 %v919, %v921
  %v923 = vrot.slane %v902, %v922
  %924 = vrot.lane.b32.xlu0 %v923, 32
  %v925 = vpop.permute.xlu0 %924
  %s927 = scalar_lea.vmem %s3, 24
  %928 = vst.msk [vmem:[%s927] sm:$0x3] %vm233, %v925
  %v929 = vld [vmem:[%s704] sm:$0xf]
  %v930 = vld [vmem:[%s702] sm:$0xf]
  %v931 = vsel %vm25, %v912, 0
  %933 = vmatprep.subr.mxu0 0.0
  %934 = vmatpush1.msra.mxu0 %v14
  %935 = vmatprep.subr.mxu0 0.0
  %936 = vmatpush1.msra.mxu0 %v15
  %937 = vmatprep.subr.mxu0 0.0
  %938 = vmatpush1.msra.mxu0 %v16
  %939 = vmatprep.subr.mxu0 0.0
  %940 = vmatpush1.msra.mxu0 %v17
  %941 = vmatprep.subr.mxu0 0.0
  %942 = vmatpush1.msra.mxu0 0.0
  %943 = vmatprep.subr.mxu0 0.0
  %944 = vmatpush1.msra.mxu0 0.0
  %945 = vmatprep.subr.mxu0 0.0
  %946 = vmatpush1.msra.mxu0 0.0
  %947 = vmatprep.subr.mxu0 0.0
  %948 = vmatpush1.msra.mxu0 0.0
  %949 = vmatprep.subr.mxu0 0.0
  %950 = vmatpush1.msra.mxu0 0.0
  %951 = vmatprep.subr.mxu0 0.0
  %952 = vmatpush1.msra.mxu0 0.0
  %953 = vmatprep.subr.mxu0 0.0
  %954 = vmatpush1.msra.mxu0 0.0
  %955 = vmatprep.subr.mxu0 0.0
  %956 = vmatpush1.msra.mxu0 0.0
  %957 = vmatprep.subr.mxu0 0.0
  %958 = vmatpush1.msra.mxu0 0.0
  %959 = vmatprep.subr.mxu0 0.0
  %960 = vmatpush1.msra.mxu0 0.0
  %961 = vmatprep.subr.mxu0 0.0
  %962 = vmatpush1.msra.mxu0 0.0
  %963 = vmatprep.subr.mxu0 0.0
  %964 = vmatpush1.msra.mxu0 0.0
  %965 = vmatprep.subr.mxu0 0.0
  %966 = vmatpush1.msra.mxu0 0.0
  %967 = vmatprep.subr.mxu0 0.0
  %968 = vmatpush1.msra.mxu0 0.0
  %969 = vmatprep.subr.mxu0 0.0
  %970 = vmatpush1.msra.mxu0 0.0
  %971 = vmatprep.subr.mxu0 0.0
  %972 = vmatpush1.msra.mxu0 0.0
  %973 = vmatprep.subr.mxu0 0.0
  %974 = vmatpush1.msra.mxu0 0.0
  %975 = vmatprep.subr.mxu0 0.0
  %976 = vmatpush1.msra.mxu0 0.0
  %977 = vmatprep.subr.mxu0 0.0
  %978 = vmatpush1.msra.mxu0 0.0
  %979 = vmatprep.subr.mxu0 0.0
  %980 = vmatpush1.msra.mxu0 0.0
  %981 = vmatprep.subr.mxu0 0.0
  %982 = vmatpush1.msra.mxu0 0.0
  %983 = vmatprep.subr.mxu0 0.0
  %984 = vmatpush1.msra.mxu0 0.0
  %985 = vmatprep.subr.mxu0 0.0
  %986 = vmatpush1.msra.mxu0 0.0
  %987 = vmatprep.subr.mxu0 0.0
  %988 = vmatpush1.msra.mxu0 0.0
  %989 = vmatprep.subr.mxu0 0.0
  %990 = vmatpush1.msra.mxu0 0.0
  %991 = vmatprep.subr.mxu0 0.0
  %992 = vmatpush1.msra.mxu0 0.0
  %993 = vmatprep.subr.mxu0 0.0
  %994 = vmatpush1.msra.mxu0 0.0
  %995 = vmatprep.subr.mxu0 0.0
  %996 = vmatpush1.msra.mxu0 0.0
  %997 = vmatprep.mubr.f32.mxu0 0.0
  %998 = vmatmul.mubr.f32.gmra.mrb[0].mxu0 %v931
  %v999 = vpop.f32.mrb[0].mxu0
  %v1000 = vadd.f32 0.0, %v999
  %v1001 = vpop.f32.mrb[0].mxu0
  %1002 = vdwg.mxu0
  %v1003 = vadd.f32 %v929, %v1000
  %v1004 = vsel %vm25, %v925, 0
  %1006 = vmatprep.subr.mxu0 0.0
  %1007 = vmatpush1.msra.mxu0 %v18
  %1008 = vmatprep.subr.mxu0 0.0
  %1009 = vmatpush1.msra.mxu0 %v19
  %1010 = vmatprep.subr.mxu0 0.0
  %1011 = vmatpush1.msra.mxu0 %v20
  %1012 = vmatprep.subr.mxu0 0.0
  %1013 = vmatpush1.msra.mxu0 %v21
  %1014 = vmatprep.subr.mxu0 0.0
  %1015 = vmatpush1.msra.mxu0 0.0
  %1016 = vmatprep.subr.mxu0 0.0
  %1017 = vmatpush1.msra.mxu0 0.0
  %1018 = vmatprep.subr.mxu0 0.0
  %1019 = vmatpush1.msra.mxu0 0.0
  %1020 = vmatprep.subr.mxu0 0.0
  %1021 = vmatpush1.msra.mxu0 0.0
  %1022 = vmatprep.subr.mxu0 0.0
  %1023 = vmatpush1.msra.mxu0 0.0
  %1024 = vmatprep.subr.mxu0 0.0
  %1025 = vmatpush1.msra.mxu0 0.0
  %1026 = vmatprep.subr.mxu0 0.0
  %1027 = vmatpush1.msra.mxu0 0.0
  %1028 = vmatprep.subr.mxu0 0.0
  %1029 = vmatpush1.msra.mxu0 0.0
  %1030 = vmatprep.subr.mxu0 0.0
  %1031 = vmatpush1.msra.mxu0 0.0
  %1032 = vmatprep.subr.mxu0 0.0
  %1033 = vmatpush1.msra.mxu0 0.0
  %1034 = vmatprep.subr.mxu0 0.0
  %1035 = vmatpush1.msra.mxu0 0.0
  %1036 = vmatprep.subr.mxu0 0.0
  %1037 = vmatpush1.msra.mxu0 0.0
  %1038 = vmatprep.subr.mxu0 0.0
  %1039 = vmatpush1.msra.mxu0 0.0
  %1040 = vmatprep.subr.mxu0 0.0
  %1041 = vmatpush1.msra.mxu0 0.0
  %1042 = vmatprep.subr.mxu0 0.0
  %1043 = vmatpush1.msra.mxu0 0.0
  %1044 = vmatprep.subr.mxu0 0.0
  %1045 = vmatpush1.msra.mxu0 0.0
  %1046 = vmatprep.subr.mxu0 0.0
  %1047 = vmatpush1.msra.mxu0 0.0
  %1048 = vmatprep.subr.mxu0 0.0
  %1049 = vmatpush1.msra.mxu0 0.0
  %1050 = vmatprep.subr.mxu0 0.0
  %1051 = vmatpush1.msra.mxu0 0.0
  %1052 = vmatprep.subr.mxu0 0.0
  %1053 = vmatpush1.msra.mxu0 0.0
  %1054 = vmatprep.subr.mxu0 0.0
  %1055 = vmatpush1.msra.mxu0 0.0
  %1056 = vmatprep.subr.mxu0 0.0
  %1057 = vmatpush1.msra.mxu0 0.0
  %1058 = vmatprep.subr.mxu0 0.0
  %1059 = vmatpush1.msra.mxu0 0.0
  %1060 = vmatprep.subr.mxu0 0.0
  %1061 = vmatpush1.msra.mxu0 0.0
  %1062 = vmatprep.subr.mxu0 0.0
  %1063 = vmatpush1.msra.mxu0 0.0
  %1064 = vmatprep.subr.mxu0 0.0
  %1065 = vmatpush1.msra.mxu0 0.0
  %1066 = vmatprep.subr.mxu0 0.0
  %1067 = vmatpush1.msra.mxu0 0.0
  %1068 = vmatprep.subr.mxu0 0.0
  %1069 = vmatpush1.msra.mxu0 0.0
  %1070 = vmatprep.mubr.f32.mxu0 0.0
  %1071 = vmatmul.mubr.f32.gmra.mrb[0].mxu0 %v1004
  %v1072 = vpop.f32.mrb[0].mxu0
  %v1073 = vadd.f32 0.0, %v1072
  %v1074 = vpop.f32.mrb[0].mxu0
  %1075 = vdwg.mxu0
  %v1077 = vrot.slane %v930, 2
  %v1079 = vadd.f32 %v1077, %v1073
  %v1080 = vxor.u32 %v1003, 2147483648
  %v1081 = vmul.f32 %v1080, 1.442695
  %v1082 = vpow.pop %v1081
  %v1083 = vadd.f32 %v1082, 1.0
  %v1084 = vrcp.pop %v1083
  %v1085 = vmul.f32 1.0, %v1084
  %v1086 = vtanh.pop %v1003
  %v1087 = vmul.f32 %v1085, %v872
  %1089 = vrot.lane.b32.xlu0 %v1086, 64
  %v1090 = vpop.permute.xlu0 %1089
  %v1092 = vmul.f32 %v1085, %v1090
  %1094 = vrot.lane.b32.xlu0 %v1092, 32
  %v1095 = vpop.permute.xlu0 %1094
  %v1097 = vadd.f32 %v1087, %v1095
  %v1098 = vtanh.pop %v1097
  %1100 = vrot.lane.b32.xlu0 %v1098, 64
  %v1101 = vpop.permute.xlu0 %1100
  %v1103 = vmul.f32 %v1085, %v1101
  %v1104 = vxor.u32 %v1079, 2147483648
  %v1105 = vmul.f32 %v1104, 1.442695
  %v1106 = vpow.pop %v1105
  %v1107 = vadd.f32 %v1106, 1.0
  %v1108 = vrcp.pop %v1107
  %v1109 = vmul.f32 1.0, %v1108
  %v1110 = vtanh.pop %v1079
  %v1111 = vmul.f32 %v1109, %v896
  %1113 = vrot.lane.b32.xlu0 %v1110, 64
  %v1114 = vpop.permute.xlu0 %1113
  %v1116 = vmul.f32 %v1109, %v1114
  %1118 = vrot.lane.b32.xlu0 %v1116, 32
  %v1119 = vpop.permute.xlu0 %1118
  %v1121 = vadd.f32 %v1111, %v1119
  %v1122 = vtanh.pop %v1121
  %1124 = vrot.lane.b32.xlu0 %v1122, 64
  %v1125 = vpop.permute.xlu0 %1124
  %v1127 = vmul.f32 %v1109, %v1125
  %v1130 = vunpack.c.l.s4 1983009808
  %v1131 = vunpack.c.0.s8 %v1130
  %v1132 = vlaneseq
  %v1133 = vshrl.u32 %v1132, 7
  %v1134 = vsub.s32 %v1131, %v1133
  %v1135 = vrot.slane %v1103, %v1134
  %1136 = vrot.lane.b32.xlu0 %v1135, 32
  %v1137 = vpop.permute.xlu0 %1136
  %s1139 = scalar_lea.vmem %s3, 8
  %1140 = vst.msk [vmem:[%s1139] sm:$0x3] %vm233, %v1137
  %v1143 = vunpack.c.l.s4 1983009808
  %v1144 = vunpack.c.0.s8 %v1143
  %v1145 = vlaneseq
  %v1146 = vshrl.u32 %v1145, 7
  %v1147 = vsub.s32 %v1144, %v1146
  %v1148 = vrot.slane %v1127, %v1147
  %1149 = vrot.lane.b32.xlu0 %v1148, 32
  %v1150 = vpop.permute.xlu0 %1149
  %s1152 = scalar_lea.vmem %s3, 22
  %1153 = vst.msk [vmem:[%s1152] sm:$0x3] %vm233, %v1150
  %v1154 = vld [vmem:[%s477] sm:$0xf]
  %v1155 = vld [vmem:[%s475] sm:$0xf]
  %v1156 = vsel %vm25, %v1137, 0
  %1158 = vmatprep.subr.mxu0 0.0
  %1159 = vmatpush1.msra.mxu0 %v14
  %1160 = vmatprep.subr.mxu0 0.0
  %1161 = vmatpush1.msra.mxu0 %v15
  %1162 = vmatprep.subr.mxu0 0.0
  %1163 = vmatpush1.msra.mxu0 %v16
  %1164 = vmatprep.subr.mxu0 0.0
  %1165 = vmatpush1.msra.mxu0 %v17
  %1166 = vmatprep.subr.mxu0 0.0
  %1167 = vmatpush1.msra.mxu0 0.0
  %1168 = vmatprep.subr.mxu0 0.0
  %1169 = vmatpush1.msra.mxu0 0.0
  %1170 = vmatprep.subr.mxu0 0.0
  %1171 = vmatpush1.msra.mxu0 0.0
  %1172 = vmatprep.subr.mxu0 0.0
  %1173 = vmatpush1.msra.mxu0 0.0
  %1174 = vmatprep.subr.mxu0 0.0
  %1175 = vmatpush1.msra.mxu0 0.0
  %1176 = vmatprep.subr.mxu0 0.0
  %1177 = vmatpush1.msra.mxu0 0.0
  %1178 = vmatprep.subr.mxu0 0.0
  %1179 = vmatpush1.msra.mxu0 0.0
  %1180 = vmatprep.subr.mxu0 0.0
  %1181 = vmatpush1.msra.mxu0 0.0
  %1182 = vmatprep.subr.mxu0 0.0
  %1183 = vmatpush1.msra.mxu0 0.0
  %1184 = vmatprep.subr.mxu0 0.0
  %1185 = vmatpush1.msra.mxu0 0.0
  %1186 = vmatprep.subr.mxu0 0.0
  %1187 = vmatpush1.msra.mxu0 0.0
  %1188 = vmatprep.subr.mxu0 0.0
  %1189 = vmatpush1.msra.mxu0 0.0
  %1190 = vmatprep.subr.mxu0 0.0
  %1191 = vmatpush1.msra.mxu0 0.0
  %1192 = vmatprep.subr.mxu0 0.0
  %1193 = vmatpush1.msra.mxu0 0.0
  %1194 = vmatprep.subr.mxu0 0.0
  %1195 = vmatpush1.msra.mxu0 0.0
  %1196 = vmatprep.subr.mxu0 0.0
  %1197 = vmatpush1.msra.mxu0 0.0
  %1198 = vmatprep.subr.mxu0 0.0
  %1199 = vmatpush1.msra.mxu0 0.0
  %1200 = vmatprep.subr.mxu0 0.0
  %1201 = vmatpush1.msra.mxu0 0.0
  %1202 = vmatprep.subr.mxu0 0.0
  %1203 = vmatpush1.msra.mxu0 0.0
  %1204 = vmatprep.subr.mxu0 0.0
  %1205 = vmatpush1.msra.mxu0 0.0
  %1206 = vmatprep.subr.mxu0 0.0
  %1207 = vmatpush1.msra.mxu0 0.0
  %1208 = vmatprep.subr.mxu0 0.0
  %1209 = vmatpush1.msra.mxu0 0.0
  %1210 = vmatprep.subr.mxu0 0.0
  %1211 = vmatpush1.msra.mxu0 0.0
  %1212 = vmatprep.subr.mxu0 0.0
  %1213 = vmatpush1.msra.mxu0 0.0
  %1214 = vmatprep.subr.mxu0 0.0
  %1215 = vmatpush1.msra.mxu0 0.0
  %1216 = vmatprep.subr.mxu0 0.0
  %1217 = vmatpush1.msra.mxu0 0.0
  %1218 = vmatprep.subr.mxu0 0.0
  %1219 = vmatpush1.msra.mxu0 0.0
  %1220 = vmatprep.subr.mxu0 0.0
  %1221 = vmatpush1.msra.mxu0 0.0
  %1222 = vmatprep.mubr.f32.mxu0 0.0
  %1223 = vmatmul.mubr.f32.gmra.mrb[0].mxu0 %v1156
  %v1224 = vpop.f32.mrb[0].mxu0
  %v1225 = vadd.f32 0.0, %v1224
  %v1226 = vpop.f32.mrb[0].mxu0
  %1227 = vdwg.mxu0
  %v1228 = vadd.f32 %v1154, %v1225
  %v1229 = vsel %vm25, %v1150, 0
  %1231 = vmatprep.subr.mxu0 0.0
  %1232 = vmatpush1.msra.mxu0 %v18
  %1233 = vmatprep.subr.mxu0 0.0
  %1234 = vmatpush1.msra.mxu0 %v19
  %1235 = vmatprep.subr.mxu0 0.0
  %1236 = vmatpush1.msra.mxu0 %v20
  %1237 = vmatprep.subr.mxu0 0.0
  %1238 = vmatpush1.msra.mxu0 %v21
  %1239 = vmatprep.subr.mxu0 0.0
  %1240 = vmatpush1.msra.mxu0 0.0
  %1241 = vmatprep.subr.mxu0 0.0
  %1242 = vmatpush1.msra.mxu0 0.0
  %1243 = vmatprep.subr.mxu0 0.0
  %1244 = vmatpush1.msra.mxu0 0.0
  %1245 = vmatprep.subr.mxu0 0.0
  %1246 = vmatpush1.msra.mxu0 0.0
  %1247 = vmatprep.subr.mxu0 0.0
  %1248 = vmatpush1.msra.mxu0 0.0
  %1249 = vmatprep.subr.mxu0 0.0
  %1250 = vmatpush1.msra.mxu0 0.0
  %1251 = vmatprep.subr.mxu0 0.0
  %1252 = vmatpush1.msra.mxu0 0.0
  %1253 = vmatprep.subr.mxu0 0.0
  %1254 = vmatpush1.msra.mxu0 0.0
  %1255 = vmatprep.subr.mxu0 0.0
  %1256 = vmatpush1.msra.mxu0 0.0
  %1257 = vmatprep.subr.mxu0 0.0
  %1258 = vmatpush1.msra.mxu0 0.0
  %1259 = vmatprep.subr.mxu0 0.0
  %1260 = vmatpush1.msra.mxu0 0.0
  %1261 = vmatprep.subr.mxu0 0.0
  %1262 = vmatpush1.msra.mxu0 0.0
  %1263 = vmatprep.subr.mxu0 0.0
  %1264 = vmatpush1.msra.mxu0 0.0
  %1265 = vmatprep.subr.mxu0 0.0
  %1266 = vmatpush1.msra.mxu0 0.0
  %1267 = vmatprep.subr.mxu0 0.0
  %1268 = vmatpush1.msra.mxu0 0.0
  %1269 = vmatprep.subr.mxu0 0.0
  %1270 = vmatpush1.msra.mxu0 0.0
  %1271 = vmatprep.subr.mxu0 0.0
  %1272 = vmatpush1.msra.mxu0 0.0
  %1273 = vmatprep.subr.mxu0 0.0
  %1274 = vmatpush1.msra.mxu0 0.0
  %1275 = vmatprep.subr.mxu0 0.0
  %1276 = vmatpush1.msra.mxu0 0.0
  %1277 = vmatprep.subr.mxu0 0.0
  %1278 = vmatpush1.msra.mxu0 0.0
  %1279 = vmatprep.subr.mxu0 0.0
  %1280 = vmatpush1.msra.mxu0 0.0
  %1281 = vmatprep.subr.mxu0 0.0
  %1282 = vmatpush1.msra.mxu0 0.0
  %1283 = vmatprep.subr.mxu0 0.0
  %1284 = vmatpush1.msra.mxu0 0.0
  %1285 = vmatprep.subr.mxu0 0.0
  %1286 = vmatpush1.msra.mxu0 0.0
  %1287 = vmatprep.subr.mxu0 0.0
  %1288 = vmatpush1.msra.mxu0 0.0
  %1289 = vmatprep.subr.mxu0 0.0
  %1290 = vmatpush1.msra.mxu0 0.0
  %1291 = vmatprep.subr.mxu0 0.0
  %1292 = vmatpush1.msra.mxu0 0.0
  %1293 = vmatprep.subr.mxu0 0.0
  %1294 = vmatpush1.msra.mxu0 0.0
  %1295 = vmatprep.mubr.f32.mxu0 0.0
  %1296 = vmatmul.mubr.f32.gmra.mrb[0].mxu0 %v1229
  %v1297 = vpop.f32.mrb[0].mxu0
  %v1298 = vadd.f32 0.0, %v1297
  %v1299 = vpop.f32.mrb[0].mxu0
  %1300 = vdwg.mxu0
  %v1302 = vrot.slane %v1155, 2
  %v1304 = vadd.f32 %v1302, %v1298
  %v1305 = vxor.u32 %v1228, 2147483648
  %v1306 = vmul.f32 %v1305, 1.442695
  %v1307 = vpow.pop %v1306
  %v1308 = vadd.f32 %v1307, 1.0
  %v1309 = vrcp.pop %v1308
  %v1310 = vmul.f32 1.0, %v1309
  %v1311 = vtanh.pop %v1228
  %v1312 = vmul.f32 %v1310, %v1097
  %1314 = vrot.lane.b32.xlu0 %v1311, 64
  %v1315 = vpop.permute.xlu0 %1314
  %v1317 = vmul.f32 %v1310, %v1315
  %1319 = vrot.lane.b32.xlu0 %v1317, 32
  %v1320 = vpop.permute.xlu0 %1319
  %v1322 = vadd.f32 %v1312, %v1320
  %v1323 = vtanh.pop %v1322
  %1325 = vrot.lane.b32.xlu0 %v1323, 64
  %v1326 = vpop.permute.xlu0 %1325
  %v1328 = vmul.f32 %v1310, %v1326
  %v1329 = vxor.u32 %v1304, 2147483648
  %v1330 = vmul.f32 %v1329, 1.442695
  %v1331 = vpow.pop %v1330
  %v1332 = vadd.f32 %v1331, 1.0
  %v1333 = vrcp.pop %v1332
  %v1334 = vmul.f32 1.0, %v1333
  %v1335 = vtanh.pop %v1304
  %v1336 = vmul.f32 %v1334, %v1121
  %1338 = vrot.lane.b32.xlu0 %v1335, 64
  %v1339 = vpop.permute.xlu0 %1338
  %v1341 = vmul.f32 %v1334, %v1339
  %1343 = vrot.lane.b32.xlu0 %v1341, 32
  %v1344 = vpop.permute.xlu0 %1343
  %v1346 = vadd.f32 %v1336, %v1344
  %v1347 = vtanh.pop %v1346
  %1349 = vrot.lane.b32.xlu0 %v1347, 64
  %v1350 = vpop.permute.xlu0 %1349
  %v1352 = vmul.f32 %v1334, %v1350
  %v1355 = vunpack.c.l.s4 1983009808
  %v1356 = vunpack.c.0.s8 %v1355
  %v1357 = vlaneseq
  %v1358 = vshrl.u32 %v1357, 7
  %v1359 = vsub.s32 %v1356, %v1358
  %v1360 = vrot.slane %v1328, %v1359
  %1361 = vrot.lane.b32.xlu0 %v1360, 32
  %v1362 = vpop.permute.xlu0 %1361
  %s1364 = scalar_lea.vmem %s3, 10
  %1365 = vst.msk [vmem:[%s1364] sm:$0x3] %vm233, %v1362
  %v1368 = vunpack.c.l.s4 1983009808
  %v1369 = vunpack.c.0.s8 %v1368
  %v1370 = vlaneseq
  %v1371 = vshrl.u32 %v1370, 7
  %v1372 = vsub.s32 %v1369, %v1371
  %v1373 = vrot.slane %v1352, %v1372
  %1374 = vrot.lane.b32.xlu0 %v1373, 32
  %v1375 = vpop.permute.xlu0 %1374
  %s1377 = scalar_lea.vmem %s3, 20
  %1378 = vst.msk [vmem:[%s1377] sm:$0x3] %vm233, %v1375
  %v1379 = vld [vmem:[%s250] sm:$0xf]
  %v1380 = vld [vmem:[%s248] sm:$0xf]
  %v1381 = vsel %vm25, %v1362, 0
  %1383 = vmatprep.subr.mxu0 0.0
  %1384 = vmatpush1.msra.mxu0 %v14
  %1385 = vmatprep.subr.mxu0 0.0
  %1386 = vmatpush1.msra.mxu0 %v15
  %1387 = vmatprep.subr.mxu0 0.0
  %1388 = vmatpush1.msra.mxu0 %v16
  %1389 = vmatprep.subr.mxu0 0.0
  %1390 = vmatpush1.msra.mxu0 %v17
  %1391 = vmatprep.subr.mxu0 0.0
  %1392 = vmatpush1.msra.mxu0 0.0
  %1393 = vmatprep.subr.mxu0 0.0
  %1394 = vmatpush1.msra.mxu0 0.0
  %1395 = vmatprep.subr.mxu0 0.0
  %1396 = vmatpush1.msra.mxu0 0.0
  %1397 = vmatprep.subr.mxu0 0.0
  %1398 = vmatpush1.msra.mxu0 0.0
  %1399 = vmatprep.subr.mxu0 0.0
  %1400 = vmatpush1.msra.mxu0 0.0
  %1401 = vmatprep.subr.mxu0 0.0
  %1402 = vmatpush1.msra.mxu0 0.0
  %1403 = vmatprep.subr.mxu0 0.0
  %1404 = vmatpush1.msra.mxu0 0.0
  %1405 = vmatprep.subr.mxu0 0.0
  %1406 = vmatpush1.msra.mxu0 0.0
  %1407 = vmatprep.subr.mxu0 0.0
  %1408 = vmatpush1.msra.mxu0 0.0
  %1409 = vmatprep.subr.mxu0 0.0
  %1410 = vmatpush1.msra.mxu0 0.0
  %1411 = vmatprep.subr.mxu0 0.0
  %1412 = vmatpush1.msra.mxu0 0.0
  %1413 = vmatprep.subr.mxu0 0.0
  %1414 = vmatpush1.msra.mxu0 0.0
  %1415 = vmatprep.subr.mxu0 0.0
  %1416 = vmatpush1.msra.mxu0 0.0
  %1417 = vmatprep.subr.mxu0 0.0
  %1418 = vmatpush1.msra.mxu0 0.0
  %1419 = vmatprep.subr.mxu0 0.0
  %1420 = vmatpush1.msra.mxu0 0.0
  %1421 = vmatprep.subr.mxu0 0.0
  %1422 = vmatpush1.msra.mxu0 0.0
  %1423 = vmatprep.subr.mxu0 0.0
  %1424 = vmatpush1.msra.mxu0 0.0
  %1425 = vmatprep.subr.mxu0 0.0
  %1426 = vmatpush1.msra.mxu0 0.0
  %1427 = vmatprep.subr.mxu0 0.0
  %1428 = vmatpush1.msra.mxu0 0.0
  %1429 = vmatprep.subr.mxu0 0.0
  %1430 = vmatpush1.msra.mxu0 0.0
  %1431 = vmatprep.subr.mxu0 0.0
  %1432 = vmatpush1.msra.mxu0 0.0
  %1433 = vmatprep.subr.mxu0 0.0
  %1434 = vmatpush1.msra.mxu0 0.0
  %1435 = vmatprep.subr.mxu0 0.0
  %1436 = vmatpush1.msra.mxu0 0.0
  %1437 = vmatprep.subr.mxu0 0.0
  %1438 = vmatpush1.msra.mxu0 0.0
  %1439 = vmatprep.subr.mxu0 0.0
  %1440 = vmatpush1.msra.mxu0 0.0
  %1441 = vmatprep.subr.mxu0 0.0
  %1442 = vmatpush1.msra.mxu0 0.0
  %1443 = vmatprep.subr.mxu0 0.0
  %1444 = vmatpush1.msra.mxu0 0.0
  %1445 = vmatprep.subr.mxu0 0.0
  %1446 = vmatpush1.msra.mxu0 0.0
  %1447 = vmatprep.mubr.f32.mxu0 0.0
  %1448 = vmatmul.mubr.f32.gmra.mrb[0].mxu0 %v1381
  %v1449 = vpop.f32.mrb[0].mxu0
  %v1450 = vadd.f32 0.0, %v1449
  %v1451 = vpop.f32.mrb[0].mxu0
  %1452 = vdwg.mxu0
  %v1453 = vadd.f32 %v1379, %v1450
  %v1454 = vsel %vm25, %v1375, 0
  %1456 = vmatprep.subr.mxu0 0.0
  %1457 = vmatpush1.msra.mxu0 %v18
  %1458 = vmatprep.subr.mxu0 0.0
  %1459 = vmatpush1.msra.mxu0 %v19
  %1460 = vmatprep.subr.mxu0 0.0
  %1461 = vmatpush1.msra.mxu0 %v20
  %1462 = vmatprep.subr.mxu0 0.0
  %1463 = vmatpush1.msra.mxu0 %v21
  %1464 = vmatprep.subr.mxu0 0.0
  %1465 = vmatpush1.msra.mxu0 0.0
  %1466 = vmatprep.subr.mxu0 0.0
  %1467 = vmatpush1.msra.mxu0 0.0
  %1468 = vmatprep.subr.mxu0 0.0
  %1469 = vmatpush1.msra.mxu0 0.0
  %1470 = vmatprep.subr.mxu0 0.0
  %1471 = vmatpush1.msra.mxu0 0.0
  %1472 = vmatprep.subr.mxu0 0.0
  %1473 = vmatpush1.msra.mxu0 0.0
  %1474 = vmatprep.subr.mxu0 0.0
  %1475 = vmatpush1.msra.mxu0 0.0
  %1476 = vmatprep.subr.mxu0 0.0
  %1477 = vmatpush1.msra.mxu0 0.0
  %1478 = vmatprep.subr.mxu0 0.0
  %1479 = vmatpush1.msra.mxu0 0.0
  %1480 = vmatprep.subr.mxu0 0.0
  %1481 = vmatpush1.msra.mxu0 0.0
  %1482 = vmatprep.subr.mxu0 0.0
  %1483 = vmatpush1.msra.mxu0 0.0
  %1484 = vmatprep.subr.mxu0 0.0
  %1485 = vmatpush1.msra.mxu0 0.0
  %1486 = vmatprep.subr.mxu0 0.0
  %1487 = vmatpush1.msra.mxu0 0.0
  %1488 = vmatprep.subr.mxu0 0.0
  %1489 = vmatpush1.msra.mxu0 0.0
  %1490 = vmatprep.subr.mxu0 0.0
  %1491 = vmatpush1.msra.mxu0 0.0
  %1492 = vmatprep.subr.mxu0 0.0
  %1493 = vmatpush1.msra.mxu0 0.0
  %1494 = vmatprep.subr.mxu0 0.0
  %1495 = vmatpush1.msra.mxu0 0.0
  %1496 = vmatprep.subr.mxu0 0.0
  %1497 = vmatpush1.msra.mxu0 0.0
  %1498 = vmatprep.subr.mxu0 0.0
  %1499 = vmatpush1.msra.mxu0 0.0
  %1500 = vmatprep.subr.mxu0 0.0
  %1501 = vmatpush1.msra.mxu0 0.0
  %1502 = vmatprep.subr.mxu0 0.0
  %1503 = vmatpush1.msra.mxu0 0.0
  %1504 = vmatprep.subr.mxu0 0.0
  %1505 = vmatpush1.msra.mxu0 0.0
  %1506 = vmatprep.subr.mxu0 0.0
  %1507 = vmatpush1.msra.mxu0 0.0
  %1508 = vmatprep.subr.mxu0 0.0
  %1509 = vmatpush1.msra.mxu0 0.0
  %1510 = vmatprep.subr.mxu0 0.0
  %1511 = vmatpush1.msra.mxu0 0.0
  %1512 = vmatprep.subr.mxu0 0.0
  %1513 = vmatpush1.msra.mxu0 0.0
  %1514 = vmatprep.subr.mxu0 0.0
  %1515 = vmatpush1.msra.mxu0 0.0
  %1516 = vmatprep.subr.mxu0 0.0
  %1517 = vmatpush1.msra.mxu0 0.0
  %1518 = vmatprep.subr.mxu0 0.0
  %1519 = vmatpush1.msra.mxu0 0.0
  %1520 = vmatprep.mubr.f32.mxu0 0.0
  %1521 = vmatmul.mubr.f32.gmra.mrb[0].mxu0 %v1454
  %v1522 = vpop.f32.mrb[0].mxu0
  %v1523 = vadd.f32 0.0, %v1522
  %v1524 = vpop.f32.mrb[0].mxu0
  %1525 = vdwg.mxu0
  %v1527 = vrot.slane %v1380, 2
  %v1529 = vadd.f32 %v1527, %v1523
  %v1530 = vxor.u32 %v1453, 2147483648
  %v1531 = vmul.f32 %v1530, 1.442695
  %v1532 = vpow.pop %v1531
  %v1533 = vadd.f32 %v1532, 1.0
  %v1534 = vrcp.pop %v1533
  %v1535 = vmul.f32 1.0, %v1534
  %v1536 = vtanh.pop %v1453
  %v1537 = vmul.f32 %v1535, %v1322
  %1539 = vrot.lane.b32.xlu0 %v1536, 64
  %v1540 = vpop.permute.xlu0 %1539
  %v1542 = vmul.f32 %v1535, %v1540
  %1544 = vrot.lane.b32.xlu0 %v1542, 32
  %v1545 = vpop.permute.xlu0 %1544
  %v1547 = vadd.f32 %v1537, %v1545
  %v1548 = vtanh.pop %v1547
  %1550 = vrot.lane.b32.xlu0 %v1548, 64
  %v1551 = vpop.permute.xlu0 %1550
  %v1553 = vmul.f32 %v1535, %v1551
  %v1554 = vxor.u32 %v1529, 2147483648
  %v1555 = vmul.f32 %v1554, 1.442695
  %v1556 = vpow.pop %v1555
  %v1557 = vadd.f32 %v1556, 1.0
  %v1558 = vrcp.pop %v1557
  %v1559 = vmul.f32 1.0, %v1558
  %v1560 = vtanh.pop %v1529
  %v1561 = vmul.f32 %v1559, %v1346
  %1563 = vrot.lane.b32.xlu0 %v1560, 64
  %v1564 = vpop.permute.xlu0 %1563
  %v1566 = vmul.f32 %v1559, %v1564
  %1568 = vrot.lane.b32.xlu0 %v1566, 32
  %v1569 = vpop.permute.xlu0 %1568
  %v1571 = vadd.f32 %v1561, %v1569
  %v1572 = vtanh.pop %v1571
  %1574 = vrot.lane.b32.xlu0 %v1572, 64
  %v1575 = vpop.permute.xlu0 %1574
  %v1577 = vmul.f32 %v1559, %v1575
  %v1580 = vunpack.c.l.s4 1983009808
  %v1581 = vunpack.c.0.s8 %v1580
  %v1582 = vlaneseq
  %v1583 = vshrl.u32 %v1582, 7
  %v1584 = vsub.s32 %v1581, %v1583
  %v1585 = vrot.slane %v1553, %v1584
  %1586 = vrot.lane.b32.xlu0 %v1585, 32
  %v1587 = vpop.permute.xlu0 %1586
  %s1589 = scalar_lea.vmem %s3, 12
  %1590 = vst.msk [vmem:[%s1589] sm:$0x3] %vm233, %v1587
  %v1593 = vunpack.c.l.s4 1983009808
  %v1594 = vunpack.c.0.s8 %v1593
  %v1595 = vlaneseq
  %v1596 = vshrl.u32 %v1595, 7
  %v1597 = vsub.s32 %v1594, %v1596
  %v1598 = vrot.slane %v1577, %v1597
  %1599 = vrot.lane.b32.xlu0 %v1598, 32
  %v1600 = vpop.permute.xlu0 %1599
  %s1602 = scalar_lea.vmem %s3, 18
  %1603 = vst.msk [vmem:[%s1602] sm:$0x3] %vm233, %v1600
  %v1604 = vld [vmem:[%s23] sm:$0xf]
  %v1605 = vld [vmem:[%s0] sm:$0xf]
  %v1606 = vsel %vm25, %v1587, 0
  %1608 = vmatprep.subr.mxu0 0.0
  %1609 = vmatpush1.msra.mxu0 %v14
  %1610 = vmatprep.subr.mxu0 0.0
  %1611 = vmatpush1.msra.mxu0 %v15
  %1612 = vmatprep.subr.mxu0 0.0
  %1613 = vmatpush1.msra.mxu0 %v16
  %1614 = vmatprep.subr.mxu0 0.0
  %1615 = vmatpush1.msra.mxu0 %v17
  %1616 = vmatprep.subr.mxu0 0.0
  %1617 = vmatpush1.msra.mxu0 0.0
  %1618 = vmatprep.subr.mxu0 0.0
  %1619 = vmatpush1.msra.mxu0 0.0
  %1620 = vmatprep.subr.mxu0 0.0
  %1621 = vmatpush1.msra.mxu0 0.0
  %1622 = vmatprep.subr.mxu0 0.0
  %1623 = vmatpush1.msra.mxu0 0.0
  %1624 = vmatprep.subr.mxu0 0.0
  %1625 = vmatpush1.msra.mxu0 0.0
  %1626 = vmatprep.subr.mxu0 0.0
  %1627 = vmatpush1.msra.mxu0 0.0
  %1628 = vmatprep.subr.mxu0 0.0
  %1629 = vmatpush1.msra.mxu0 0.0
  %1630 = vmatprep.subr.mxu0 0.0
  %1631 = vmatpush1.msra.mxu0 0.0
  %1632 = vmatprep.subr.mxu0 0.0
  %1633 = vmatpush1.msra.mxu0 0.0
  %1634 = vmatprep.subr.mxu0 0.0
  %1635 = vmatpush1.msra.mxu0 0.0
  %1636 = vmatprep.subr.mxu0 0.0
  %1637 = vmatpush1.msra.mxu0 0.0
  %1638 = vmatprep.subr.mxu0 0.0
  %1639 = vmatpush1.msra.mxu0 0.0
  %1640 = vmatprep.subr.mxu0 0.0
  %1641 = vmatpush1.msra.mxu0 0.0
  %1642 = vmatprep.subr.mxu0 0.0
  %1643 = vmatpush1.msra.mxu0 0.0
  %1644 = vmatprep.subr.mxu0 0.0
  %1645 = vmatpush1.msra.mxu0 0.0
  %1646 = vmatprep.subr.mxu0 0.0
  %1647 = vmatpush1.msra.mxu0 0.0
  %1648 = vmatprep.subr.mxu0 0.0
  %1649 = vmatpush1.msra.mxu0 0.0
  %1650 = vmatprep.subr.mxu0 0.0
  %1651 = vmatpush1.msra.mxu0 0.0
  %1652 = vmatprep.subr.mxu0 0.0
  %1653 = vmatpush1.msra.mxu0 0.0
  %1654 = vmatprep.subr.mxu0 0.0
  %1655 = vmatpush1.msra.mxu0 0.0
  %1656 = vmatprep.subr.mxu0 0.0
  %1657 = vmatpush1.msra.mxu0 0.0
  %1658 = vmatprep.subr.mxu0 0.0
  %1659 = vmatpush1.msra.mxu0 0.0
  %1660 = vmatprep.subr.mxu0 0.0
  %1661 = vmatpush1.msra.mxu0 0.0
  %1662 = vmatprep.subr.mxu0 0.0
  %1663 = vmatpush1.msra.mxu0 0.0
  %1664 = vmatprep.subr.mxu0 0.0
  %1665 = vmatpush1.msra.mxu0 0.0
  %1666 = vmatprep.subr.mxu0 0.0
  %1667 = vmatpush1.msra.mxu0 0.0
  %1668 = vmatprep.subr.mxu0 0.0
  %1669 = vmatpush1.msra.mxu0 0.0
  %1670 = vmatprep.subr.mxu0 0.0
  %1671 = vmatpush1.msra.mxu0 0.0
  %1672 = vmatprep.mubr.f32.mxu0 0.0
  %1673 = vmatmul.mubr.f32.gmra.mrb[0].mxu0 %v1606
  %v1674 = vpop.f32.mrb[0].mxu0
  %v1675 = vadd.f32 0.0, %v1674
  %v1676 = vpop.f32.mrb[0].mxu0
  %1677 = vdwg.mxu0
  %v1678 = vadd.f32 %v1604, %v1675
  %v1679 = vsel %vm25, %v1600, 0
  %1681 = vmatprep.subr.mxu0 0.0
  %1682 = vmatpush1.msra.mxu0 %v18
  %1683 = vmatprep.subr.mxu0 0.0
  %1684 = vmatpush1.msra.mxu0 %v19
  %1685 = vmatprep.subr.mxu0 0.0
  %1686 = vmatpush1.msra.mxu0 %v20
  %1687 = vmatprep.subr.mxu0 0.0
  %1688 = vmatpush1.msra.mxu0 %v21
  %1689 = vmatprep.subr.mxu0 0.0
  %1690 = vmatpush1.msra.mxu0 0.0
  %1691 = vmatprep.subr.mxu0 0.0
  %1692 = vmatpush1.msra.mxu0 0.0
  %1693 = vmatprep.subr.mxu0 0.0
  %1694 = vmatpush1.msra.mxu0 0.0
  %1695 = vmatprep.subr.mxu0 0.0
  %1696 = vmatpush1.msra.mxu0 0.0
  %1697 = vmatprep.subr.mxu0 0.0
  %1698 = vmatpush1.msra.mxu0 0.0
  %1699 = vmatprep.subr.mxu0 0.0
  %1700 = vmatpush1.msra.mxu0 0.0
  %1701 = vmatprep.subr.mxu0 0.0
  %1702 = vmatpush1.msra.mxu0 0.0
  %1703 = vmatprep.subr.mxu0 0.0
  %1704 = vmatpush1.msra.mxu0 0.0
  %1705 = vmatprep.subr.mxu0 0.0
  %1706 = vmatpush1.msra.mxu0 0.0
  %1707 = vmatprep.subr.mxu0 0.0
  %1708 = vmatpush1.msra.mxu0 0.0
  %1709 = vmatprep.subr.mxu0 0.0
  %1710 = vmatpush1.msra.mxu0 0.0
  %1711 = vmatprep.subr.mxu0 0.0
  %1712 = vmatpush1.msra.mxu0 0.0
  %1713 = vmatprep.subr.mxu0 0.0
  %1714 = vmatpush1.msra.mxu0 0.0
  %1715 = vmatprep.subr.mxu0 0.0
  %1716 = vmatpush1.msra.mxu0 0.0
  %1717 = vmatprep.subr.mxu0 0.0
  %1718 = vmatpush1.msra.mxu0 0.0
  %1719 = vmatprep.subr.mxu0 0.0
  %1720 = vmatpush1.msra.mxu0 0.0
  %1721 = vmatprep.subr.mxu0 0.0
  %1722 = vmatpush1.msra.mxu0 0.0
  %1723 = vmatprep.subr.mxu0 0.0
  %1724 = vmatpush1.msra.mxu0 0.0
  %1725 = vmatprep.subr.mxu0 0.0
  %1726 = vmatpush1.msra.mxu0 0.0
  %1727 = vmatprep.subr.mxu0 0.0
  %1728 = vmatpush1.msra.mxu0 0.0
  %1729 = vmatprep.subr.mxu0 0.0
  %1730 = vmatpush1.msra.mxu0 0.0
  %1731 = vmatprep.subr.mxu0 0.0
  %1732 = vmatpush1.msra.mxu0 0.0
  %1733 = vmatprep.subr.mxu0 0.0
  %1734 = vmatpush1.msra.mxu0 0.0
  %1735 = vmatprep.subr.mxu0 0.0
  %1736 = vmatpush1.msra.mxu0 0.0
  %1737 = vmatprep.subr.mxu0 0.0
  %1738 = vmatpush1.msra.mxu0 0.0
  %1739 = vmatprep.subr.mxu0 0.0
  %1740 = vmatpush1.msra.mxu0 0.0
  %1741 = vmatprep.subr.mxu0 0.0
  %1742 = vmatpush1.msra.mxu0 0.0
  %1743 = vmatprep.subr.mxu0 0.0
  %1744 = vmatpush1.msra.mxu0 0.0
  %1745 = vmatprep.mubr.f32.mxu0 0.0
  %1746 = vmatmul.mubr.f32.gmra.mrb[0].mxu0 %v1679
  %v1747 = vpop.f32.mrb[0].mxu0
  %v1748 = vadd.f32 0.0, %v1747
  %v1749 = vpop.f32.mrb[0].mxu0
  %1750 = vdwg.mxu0
  %v1752 = vrot.slane %v1605, 2
  %v1754 = vadd.f32 %v1752, %v1748
  %v1755 = vxor.u32 %v1678, 2147483648
  %v1756 = vmul.f32 %v1755, 1.442695
  %v1757 = vpow.pop %v1756
  %v1758 = vadd.f32 %v1757, 1.0
  %v1759 = vrcp.pop %v1758
  %v1760 = vmul.f32 1.0, %v1759
  %v1761 = vtanh.pop %v1678
  %v1762 = vmul.f32 %v1760, %v1547
  %1764 = vrot.lane.b32.xlu0 %v1761, 64
  %v1765 = vpop.permute.xlu0 %1764
  %v1767 = vmul.f32 %v1760, %v1765
  %1769 = vrot.lane.b32.xlu0 %v1767, 32
  %v1770 = vpop.permute.xlu0 %1769
  %v1772 = vadd.f32 %v1762, %v1770
  %v1773 = vtanh.pop %v1772
  %1775 = vrot.lane.b32.xlu0 %v1773, 64
  %v1776 = vpop.permute.xlu0 %1775
  %v1778 = vmul.f32 %v1760, %v1776
  %v1779 = vxor.u32 %v1754, 2147483648
  %v1780 = vmul.f32 %v1779, 1.442695
  %v1781 = vpow.pop %v1780
  %v1782 = vadd.f32 %v1781, 1.0
  %v1783 = vrcp.pop %v1782
  %v1784 = vmul.f32 1.0, %v1783
  %v1785 = vtanh.pop %v1754
  %v1786 = vmul.f32 %v1784, %v1571
  %1788 = vrot.lane.b32.xlu0 %v1785, 64
  %v1789 = vpop.permute.xlu0 %1788
  %v1791 = vmul.f32 %v1784, %v1789
  %1793 = vrot.lane.b32.xlu0 %v1791, 32
  %v1794 = vpop.permute.xlu0 %1793
  %v1796 = vadd.f32 %v1786, %v1794
  %v1797 = vtanh.pop %v1796
  %1799 = vrot.lane.b32.xlu0 %v1797, 64
  %v1800 = vpop.permute.xlu0 %1799
  %v1802 = vmul.f32 %v1784, %v1800
  %v1805 = vunpack.c.l.s4 1983009808
  %v1806 = vunpack.c.0.s8 %v1805
  %v1807 = vlaneseq
  %v1808 = vshrl.u32 %v1807, 7
  %v1809 = vsub.s32 %v1806, %v1808
  %v1810 = vrot.slane %v1778, %v1809
  %1811 = vrot.lane.b32.xlu0 %v1810, 32
  %v1812 = vpop.permute.xlu0 %1811
  %s1814 = scalar_lea.vmem %s3, 14
  %1815 = vst.msk [vmem:[%s1814] sm:$0x3] %vm233, %v1812
  %v1818 = vunpack.c.l.s4 1983009808
  %v1819 = vunpack.c.0.s8 %v1818
  %v1820 = vlaneseq
  %v1821 = vshrl.u32 %v1820, 7
  %v1822 = vsub.s32 %v1819, %v1821
  %v1823 = vrot.slane %v1802, %v1822
  %1824 = vrot.lane.b32.xlu0 %v1823, 32
  %v1825 = vpop.permute.xlu0 %1824
  %s1827 = scalar_lea.vmem %s3, 16
  %1828 = vst.msk [vmem:[%s1827] sm:$0x3] %vm233, %v1825
  // Predicated region
  $region14: #{rnn_classifier_forward.5} parent=0 // pred_check
    _
  $region15: #{rnn_classifier_forward.5} parent=0 // pred_check_branch
    %1830 = sbr.rel (0) target = $region17
  $region16: #{rnn_classifier_forward.5} parent=0 // pred_region
    _
  $region17: #{rnn_classifier_forward.5} parent=0 // pred_fallthru
    _
  // Predicated region
  $region18: #{rnn_classifier_forward.5} parent=0 // pred_check
    _
  $region19: #{rnn_classifier_forward.5} parent=0 // pred_check_branch
    %1832 = sbr.rel (0) target = $region21
  $region20: #{rnn_classifier_forward.5} parent=0 // pred_region
    _
  $region21: #{rnn_classifier_forward.5} parent=0 // pred_fallthru
    _

</llo_original>
